<compile_context>
chip_gen: v5e
topology: v5e:2x2
jax: 0.10.0
libtpu: 0.0.40
codegen_flags: <defaults>
</compile_context>

<pallas_src>
import jax
import jax.numpy as jnp
from jax.experimental import pallas as pl
from jax.experimental.pallas import tpu as pltpu  # noqa: F401  (TPU backend)

# Small, TPU-friendly test shapes:
# batch, cnn_feat, emb, hidden, vocab, seq_len, num_layers
B, F, E, H, V, T, L = 8, 64, 32, 128, 128, 8, 2


def caption_kernel(img_ref, wh_ref, bh_ref, wc_ref, bc_ref,
                   x_ref, wih0_ref, b0_ref, whh0_ref,
                   w1cat_ref, b1_ref, wout_ref, bout_ref,
                   out_ref):
    f32 = jnp.float32

    # --- init state: h0 = tanh(fc_h(img)), c0 = tanh(fc_c(img)); replicated to both layers ---
    img = img_ref[...]                                                   # [B, F]
    h_lo = jnp.tanh(jnp.dot(img, wh_ref[...], preferred_element_type=f32) + bh_ref[...])
    c_lo = jnp.tanh(jnp.dot(img, wc_ref[...], preferred_element_type=f32) + bc_ref[...])
    h_hi = h_lo
    c_hi = c_lo
    # TODO(synk): nn.Dropout(0.1) on the init state and the LSTM inter-layer
    # dropout(0.2) are identity in eval mode; training-mode stochastic dropout
    # (pltpu.prng_seed / prng_random_bits masks) is not implemented here.

    # --- hoist the layer-0 input projection out of the recurrence (one big matmul) ---
    # gx0[t*B:(t+1)*B] = x_t @ W_ih0^T + (b_ih0 + b_hh0)
    gx0 = jnp.dot(x_ref[...], wih0_ref[...], preferred_element_type=f32) + b0_ref[...]  # [T*B, 4H]

    whh0 = whh0_ref[...]                                                 # [H, 4H]
    w1cat = w1cat_ref[...]                                               # [2H, 4H]
    b1 = b1_ref[...]                                                     # [1, 4H]

    def gates_split(g):
        # PyTorch gate order: input, forget, cell(g), output; H=128 -> lane-aligned slices.
        i = jax.nn.sigmoid(g[:, 0 * H:1 * H])
        f = jax.nn.sigmoid(g[:, 1 * H:2 * H])
        gg = jnp.tanh(g[:, 2 * H:3 * H])
        o = jax.nn.sigmoid(g[:, 3 * H:4 * H])
        return i, f, gg, o

    hs = []
    # Fully-unrolled serial time loop (T=8, static); h/c carried as vreg values.
    for t in range(T):
        # layer 0: only the recurrent h @ W_hh matmul stays on the serial path
        g0 = gx0[t * B:(t + 1) * B, :] + jnp.dot(h_lo, whh0, preferred_element_type=f32)
        i0, f0, gg0, o0 = gates_split(g0)
        c_lo = f0 * c_lo + i0 * gg0
        h_lo = o0 * jnp.tanh(c_lo)

        # layer 1: x/h matmuls fused into one MXU push via stacked weights
        g1 = jnp.dot(jnp.concatenate([h_lo, h_hi], axis=-1), w1cat,
                     preferred_element_type=f32) + b1
        i1, f1, gg1, o1 = gates_split(g1)
        c_hi = f1 * c_hi + i1 * gg1
        h_hi = o1 * jnp.tanh(c_hi)
        hs.append(h_hi)

    # --- fc_out batched over all time steps: one [T*B,H] x [H,V] matmul, lane-dense store ---
    h_all = jnp.concatenate(hs, axis=0)                                  # [T*B, H]
    out_ref[...] = (jnp.dot(h_all, wout_ref[...], preferred_element_type=f32)
                    + bout_ref[...])                                     # [T*B, V]


def caption_net_forward(params, image_vectors, captions_ix):
    # Embedding gather + seq-major permute (pure indexing glue, stays in JAX).
    emb_seq = params["emb"][captions_ix]                  # [B, T, E]
    emb_seq = jnp.transpose(emb_seq, (1, 0, 2))           # [T, B, E]  (== torch.permute(1,0,2))
    emb_flat = emb_seq.reshape(T * B, E)                  # [T*B, E]

    # Wrapper-side layout plumbing: pre-transpose weights to [in, out], stack the
    # layer-1 input/recurrent weights, and pre-sum LSTM bias pairs.
    wh_t = params["wh"].T                                 # [F, H]
    wc_t = params["wc"].T                                 # [F, H]
    bh = params["bh"].reshape(1, H)
    bc = params["bc"].reshape(1, H)
    wih0_t = params["wih0"].T                             # [E, 4H]
    whh0_t = params["whh0"].T                             # [H, 4H]
    b0 = (params["bih0"] + params["bhh0"]).reshape(1, 4 * H)
    w1cat = jnp.concatenate([params["wih1"].T, params["whh1"].T], axis=0)  # [2H, 4H]
    b1 = (params["bih1"] + params["bhh1"]).reshape(1, 4 * H)
    wout_t = params["wout"].T                             # [H, V]
    bout = params["bout"].reshape(1, V)

    flops = 2 * (2 * B * F * H                            # fc_h + fc_c
                 + T * B * E * 4 * H                      # hoisted input projection
                 + T * B * H * 4 * H                      # layer-0 recurrent matmuls
                 + T * B * 2 * H * 4 * H                  # layer-1 fused matmuls
                 + T * B * H * V)                         # batched fc_out
    transcendentals = 2 * B * H + 5 * T * B * H * L + T * B * H * L
    bytes_accessed = 4 * (image_vectors.size + emb_flat.size
                          + wh_t.size + wc_t.size + bh.size + bc.size
                          + wih0_t.size + b0.size + whh0_t.size
                          + w1cat.size + b1.size + wout_t.size + bout.size
                          + T * B * V)
    cost = pl.CostEstimate(flops=int(flops), transcendentals=int(transcendentals),
                           bytes_accessed=int(bytes_accessed))

    # Single invocation, no grid: every operand is small enough to sit whole in VMEM
    # (weights read once, not T times); the recurrence cannot be pipelined anyway.
    out_flat = pl.pallas_call(
        caption_kernel,
        out_shape=jax.ShapeDtypeStruct((T * B, V), jnp.float32),
        cost_estimate=cost,
    )(image_vectors, wh_t, bh, wc_t, bc,
      emb_flat, wih0_t, b0, whh0_t,
      w1cat, b1, wout_t, bout)

    return out_flat.reshape(T, B, V)                      # [sent_len, batch, vocab]


def reference_forward(params, image_vectors, captions_ix):
    """Pure-JAX reference mirroring the PyTorch forward (eval mode), untransposed params."""
    h0 = jnp.tanh(image_vectors @ params["wh"].T + params["bh"])
    c0 = jnp.tanh(image_vectors @ params["wc"].T + params["bc"])
    emb_seq = jnp.transpose(params["emb"][captions_ix], (1, 0, 2))
    h = [h0, h0]
    c = [c0, c0]

    def cell(x, h_prev, c_prev, wih, whh, bih, bhh):
        gates = x @ wih.T + bih + h_prev @ whh.T + bhh
        i = jax.nn.sigmoid(gates[:, :H])
        f = jax.nn.sigmoid(gates[:, H:2 * H])
        g = jnp.tanh(gates[:, 2 * H:3 * H])
        o = jax.nn.sigmoid(gates[:, 3 * H:])
        cn = f * c_prev + i * g
        return o * jnp.tanh(cn), cn

    outs = []
    for t in range(T):
        x = emb_seq[t]
        h[0], c[0] = cell(x, h[0], c[0], params["wih0"], params["whh0"],
                          params["bih0"], params["bhh0"])
        h[1], c[1] = cell(h[0], h[1], c[1], params["wih1"], params["whh1"],
                          params["bih1"], params["bhh1"])
        outs.append(h[1] @ params["wout"].T + params["bout"])
    return jnp.stack(outs, axis=0)


def init_params(key):
    ks = jax.random.split(key, 16)
    s = 0.1
    return {
        "wh":   jax.random.normal(ks[0],  (H, F), jnp.float32) * s,
        "bh":   jax.random.normal(ks[1],  (H,), jnp.float32) * s,
        "wc":   jax.random.normal(ks[2],  (H, F), jnp.float32) * s,
        "bc":   jax.random.normal(ks[3],  (H,), jnp.float32) * s,
        "emb":  jax.random.normal(ks[4],  (V, E), jnp.float32) * s,
        "wih0": jax.random.normal(ks[5],  (4 * H, E), jnp.float32) * s,
        "whh0": jax.random.normal(ks[6],  (4 * H, H), jnp.float32) * s,
        "bih0": jax.random.normal(ks[7],  (4 * H,), jnp.float32) * s,
        "bhh0": jax.random.normal(ks[8],  (4 * H,), jnp.float32) * s,
        "wih1": jax.random.normal(ks[9],  (4 * H, H), jnp.float32) * s,
        "whh1": jax.random.normal(ks[10], (4 * H, H), jnp.float32) * s,
        "bih1": jax.random.normal(ks[11], (4 * H,), jnp.float32) * s,
        "bhh1": jax.random.normal(ks[12], (4 * H,), jnp.float32) * s,
        "wout": jax.random.normal(ks[13], (V, H), jnp.float32) * s,
        "bout": jax.random.normal(ks[14], (V,), jnp.float32) * s,
    }


if __name__ == "__main__":
    key = jax.random.PRNGKey(0)
    k_param, k_img, k_cap = jax.random.split(key, 3)

    params = init_params(k_param)
    image_vectors = jax.random.normal(k_img, (B, F), jnp.float32)
    captions_ix = jax.random.randint(k_cap, (B, T), 0, V, dtype=jnp.int32)

    out = jax.block_until_ready(caption_net_forward(params, image_vectors, captions_ix))
    assert out.shape == (T, B, V), out.shape

    ref = jax.block_until_ready(reference_forward(params, image_vectors, captions_ix))
    err = float(jnp.max(jnp.abs(out - ref)))
    assert jnp.allclose(out, ref, atol=1e-4, rtol=1e-4), f"max abs diff {err}"

    print("KERNEL_OK")
</pallas_src>

<mosaic_0001>
module attributes {stable_mosaic.version = 11 : i64} {
  func.func @caption_kernel(%arg0: memref<8x64xf32, #tpu.memory_space<vmem>>, %arg1: memref<64x128xf32, #tpu.memory_space<vmem>>, %arg2: memref<1x128xf32, #tpu.memory_space<vmem>>, %arg3: memref<64x128xf32, #tpu.memory_space<vmem>>, %arg4: memref<1x128xf32, #tpu.memory_space<vmem>>, %arg5: memref<64x32xf32, #tpu.memory_space<vmem>>, %arg6: memref<32x512xf32, #tpu.memory_space<vmem>>, %arg7: memref<1x512xf32, #tpu.memory_space<vmem>>, %arg8: memref<128x512xf32, #tpu.memory_space<vmem>>, %arg9: memref<256x512xf32, #tpu.memory_space<vmem>>, %arg10: memref<1x512xf32, #tpu.memory_space<vmem>>, %arg11: memref<128x128xf32, #tpu.memory_space<vmem>>, %arg12: memref<1x128xf32, #tpu.memory_space<vmem>>, %arg13: memref<64x128xf32, #tpu.memory_space<vmem>>) attributes {dimension_semantics = [], scalar_prefetch = 0 : i64, scratch_operands = 0 : i64, tpu.core_type = #tpu.core_type<tc>} {
    %c0 = arith.constant 0 : index
    %c0_0 = arith.constant 0 : index
    %0 = vector.load %arg0[%c0, %c0_0] : memref<8x64xf32, #tpu.memory_space<vmem>>, vector<8x64xf32>
    %c0_1 = arith.constant 0 : index
    %c0_2 = arith.constant 0 : index
    %1 = vector.load %arg1[%c0_1, %c0_2] : memref<64x128xf32, #tpu.memory_space<vmem>>, vector<64x128xf32>
    %cst = arith.constant dense<0.000000e+00> : vector<8x128xf32>
    %2 = tpu.matmul %0, %1, %cst {dimension_numbers = #tpu.dot_dimension_numbers<[1], [0], [0], [1], [0, 0, 1, 1], [], []>} : vector<8x64xf32>, vector<64x128xf32>, vector<8x128xf32> -> vector<8x128xf32>
    %c0_3 = arith.constant 0 : index
    %c0_4 = arith.constant 0 : index
    %3 = vector.load %arg2[%c0_3, %c0_4] : memref<1x128xf32, #tpu.memory_space<vmem>>, vector<1x128xf32>
    %4 = vector.broadcast %3 : vector<1x128xf32> to vector<8x128xf32>
    %5 = arith.addf %2, %4 : vector<8x128xf32>
    %6 = math.tanh %5 : vector<8x128xf32>
    %c0_5 = arith.constant 0 : index
    %c0_6 = arith.constant 0 : index
    %7 = vector.load %arg3[%c0_5, %c0_6] : memref<64x128xf32, #tpu.memory_space<vmem>>, vector<64x128xf32>
    %cst_7 = arith.constant dense<0.000000e+00> : vector<8x128xf32>
    %8 = tpu.matmul %0, %7, %cst_7 {dimension_numbers = #tpu.dot_dimension_numbers<[1], [0], [0], [1], [0, 0, 1, 1], [], []>} : vector<8x64xf32>, vector<64x128xf32>, vector<8x128xf32> -> vector<8x128xf32>
    %c0_8 = arith.constant 0 : index
    %c0_9 = arith.constant 0 : index
    %9 = vector.load %arg4[%c0_8, %c0_9] : memref<1x128xf32, #tpu.memory_space<vmem>>, vector<1x128xf32>
    %10 = vector.broadcast %9 : vector<1x128xf32> to vector<8x128xf32>
    %11 = arith.addf %8, %10 : vector<8x128xf32>
    %12 = math.tanh %11 : vector<8x128xf32>
    %c0_10 = arith.constant 0 : index
    %c0_11 = arith.constant 0 : index
    %13 = vector.load %arg5[%c0_10, %c0_11] : memref<64x32xf32, #tpu.memory_space<vmem>>, vector<64x32xf32>
    %c0_12 = arith.constant 0 : index
    %c0_13 = arith.constant 0 : index
    %14 = vector.load %arg6[%c0_12, %c0_13] : memref<32x512xf32, #tpu.memory_space<vmem>>, vector<32x512xf32>
    %cst_14 = arith.constant dense<0.000000e+00> : vector<64x512xf32>
    %15 = tpu.matmul %13, %14, %cst_14 {dimension_numbers = #tpu.dot_dimension_numbers<[1], [0], [0], [1], [0, 0, 1, 1], [], []>} : vector<64x32xf32>, vector<32x512xf32>, vector<64x512xf32> -> vector<64x512xf32>
    %c0_15 = arith.constant 0 : index
    %c0_16 = arith.constant 0 : index
    %16 = vector.load %arg7[%c0_15, %c0_16] : memref<1x512xf32, #tpu.memory_space<vmem>>, vector<1x512xf32>
    %17 = vector.broadcast %16 : vector<1x512xf32> to vector<64x512xf32>
    %18 = arith.addf %15, %17 : vector<64x512xf32>
    %c0_17 = arith.constant 0 : index
    %c0_18 = arith.constant 0 : index
    %19 = vector.load %arg8[%c0_17, %c0_18] : memref<128x512xf32, #tpu.memory_space<vmem>>, vector<128x512xf32>
    %c0_19 = arith.constant 0 : index
    %c0_20 = arith.constant 0 : index
    %20 = vector.load %arg9[%c0_19, %c0_20] : memref<256x512xf32, #tpu.memory_space<vmem>>, vector<256x512xf32>
    %c0_21 = arith.constant 0 : index
    %c0_22 = arith.constant 0 : index
    %21 = vector.load %arg10[%c0_21, %c0_22] : memref<1x512xf32, #tpu.memory_space<vmem>>, vector<1x512xf32>
    %22 = vector.extract_strided_slice %18 {offsets = [0, 0], sizes = [8, 512], strides = [1, 1]} : vector<64x512xf32> to vector<8x512xf32>
    %cst_23 = arith.constant dense<0.000000e+00> : vector<8x512xf32>
    %23 = tpu.matmul %6, %19, %cst_23 {dimension_numbers = #tpu.dot_dimension_numbers<[1], [0], [0], [1], [0, 0, 1, 1], [], []>} : vector<8x128xf32>, vector<128x512xf32>, vector<8x512xf32> -> vector<8x512xf32>
    %24 = arith.addf %22, %23 : vector<8x512xf32>
    %25 = vector.extract_strided_slice %24 {offsets = [0, 0], sizes = [8, 128], strides = [1, 1]} : vector<8x512xf32> to vector<8x128xf32>
    %26 = arith.negf %25 : vector<8x128xf32>
    %27 = math.exp %26 : vector<8x128xf32>
    %cst_24 = arith.constant 1.000000e+00 : f32
    %28 = vector.broadcast %cst_24 : f32 to vector<8x128xf32>
    %29 = arith.addf %28, %27 : vector<8x128xf32>
    %30 = arith.divf %28, %29 : vector<8x128xf32>
    %31 = vector.extract_strided_slice %24 {offsets = [0, 128], sizes = [8, 128], strides = [1, 1]} : vector<8x512xf32> to vector<8x128xf32>
    %32 = arith.negf %31 : vector<8x128xf32>
    %33 = math.exp %32 : vector<8x128xf32>
    %cst_25 = arith.constant 1.000000e+00 : f32
    %34 = vector.broadcast %cst_25 : f32 to vector<8x128xf32>
    %35 = arith.addf %34, %33 : vector<8x128xf32>
    %36 = arith.divf %34, %35 : vector<8x128xf32>
    %37 = vector.extract_strided_slice %24 {offsets = [0, 256], sizes = [8, 128], strides = [1, 1]} : vector<8x512xf32> to vector<8x128xf32>
    %38 = math.tanh %37 : vector<8x128xf32>
    %39 = vector.extract_strided_slice %24 {offsets = [0, 384], sizes = [8, 128], strides = [1, 1]} : vector<8x512xf32> to vector<8x128xf32>
    %40 = arith.negf %39 : vector<8x128xf32>
    %41 = math.exp %40 : vector<8x128xf32>
    %cst_26 = arith.constant 1.000000e+00 : f32
    %42 = vector.broadcast %cst_26 : f32 to vector<8x128xf32>
    %43 = arith.addf %42, %41 : vector<8x128xf32>
    %44 = arith.divf %42, %43 : vector<8x128xf32>
    %45 = arith.mulf %36, %12 : vector<8x128xf32>
    %46 = arith.mulf %30, %38 : vector<8x128xf32>
    %47 = arith.addf %45, %46 : vector<8x128xf32>
    %48 = math.tanh %47 : vector<8x128xf32>
    %49 = arith.mulf %44, %48 : vector<8x128xf32>
    %50 = tpu.concatenate %49, %6 in 1 : vector<8x128xf32>, vector<8x128xf32> -> vector<8x256xf32>
    %cst_27 = arith.constant dense<0.000000e+00> : vector<8x512xf32>
    %51 = tpu.matmul %50, %20, %cst_27 {dimension_numbers = #tpu.dot_dimension_numbers<[1], [0], [0], [1], [0, 0, 1, 1], [], []>} : vector<8x256xf32>, vector<256x512xf32>, vector<8x512xf32> -> vector<8x512xf32>
    %52 = vector.broadcast %21 : vector<1x512xf32> to vector<8x512xf32>
    %53 = arith.addf %51, %52 : vector<8x512xf32>
    %54 = vector.extract_strided_slice %53 {offsets = [0, 0], sizes = [8, 128], strides = [1, 1]} : vector<8x512xf32> to vector<8x128xf32>
    %55 = arith.negf %54 : vector<8x128xf32>
    %56 = math.exp %55 : vector<8x128xf32>
    %cst_28 = arith.constant 1.000000e+00 : f32
    %57 = vector.broadcast %cst_28 : f32 to vector<8x128xf32>
    %58 = arith.addf %57, %56 : vector<8x128xf32>
    %59 = arith.divf %57, %58 : vector<8x128xf32>
    %60 = vector.extract_strided_slice %53 {offsets = [0, 128], sizes = [8, 128], strides = [1, 1]} : vector<8x512xf32> to vector<8x128xf32>
    %61 = arith.negf %60 : vector<8x128xf32>
    %62 = math.exp %61 : vector<8x128xf32>
    %cst_29 = arith.constant 1.000000e+00 : f32
    %63 = vector.broadcast %cst_29 : f32 to vector<8x128xf32>
    %64 = arith.addf %63, %62 : vector<8x128xf32>
    %65 = arith.divf %63, %64 : vector<8x128xf32>
    %66 = vector.extract_strided_slice %53 {offsets = [0, 256], sizes = [8, 128], strides = [1, 1]} : vector<8x512xf32> to vector<8x128xf32>
    %67 = math.tanh %66 : vector<8x128xf32>
    %68 = vector.extract_strided_slice %53 {offsets = [0, 384], sizes = [8, 128], strides = [1, 1]} : vector<8x512xf32> to vector<8x128xf32>
    %69 = arith.negf %68 : vector<8x128xf32>
    %70 = math.exp %69 : vector<8x128xf32>
    %cst_30 = arith.constant 1.000000e+00 : f32
    %71 = vector.broadcast %cst_30 : f32 to vector<8x128xf32>
    %72 = arith.addf %71, %70 : vector<8x128xf32>
    %73 = arith.divf %71, %72 : vector<8x128xf32>
    %74 = arith.mulf %65, %12 : vector<8x128xf32>
    %75 = arith.mulf %59, %67 : vector<8x128xf32>
    %76 = arith.addf %74, %75 : vector<8x128xf32>
    %77 = math.tanh %76 : vector<8x128xf32>
    %78 = arith.mulf %73, %77 : vector<8x128xf32>
    %79 = vector.extract_strided_slice %18 {offsets = [8, 0], sizes = [8, 512], strides = [1, 1]} : vector<64x512xf32> to vector<8x512xf32>
    %cst_31 = arith.constant dense<0.000000e+00> : vector<8x512xf32>
    %80 = tpu.matmul %49, %19, %cst_31 {dimension_numbers = #tpu.dot_dimension_numbers<[1], [0], [0], [1], [0, 0, 1, 1], [], []>} : vector<8x128xf32>, vector<128x512xf32>, vector<8x512xf32> -> vector<8x512xf32>
    %81 = arith.addf %79, %80 : vector<8x512xf32>
    %82 = vector.extract_strided_slice %81 {offsets = [0, 0], sizes = [8, 128], strides = [1, 1]} : vector<8x512xf32> to vector<8x128xf32>
    %83 = arith.negf %82 : vector<8x128xf32>
    %84 = math.exp %83 : vector<8x128xf32>
    %cst_32 = arith.constant 1.000000e+00 : f32
    %85 = vector.broadcast %cst_32 : f32 to vector<8x128xf32>
    %86 = arith.addf %85, %84 : vector<8x128xf32>
    %87 = arith.divf %85, %86 : vector<8x128xf32>
    %88 = vector.extract_strided_slice %81 {offsets = [0, 128], sizes = [8, 128], strides = [1, 1]} : vector<8x512xf32> to vector<8x128xf32>
    %89 = arith.negf %88 : vector<8x128xf32>
    %90 = math.exp %89 : vector<8x128xf32>
    %cst_33 = arith.constant 1.000000e+00 : f32
    %91 = vector.broadcast %cst_33 : f32 to vector<8x128xf32>
    %92 = arith.addf %91, %90 : vector<8x128xf32>
    %93 = arith.divf %91, %92 : vector<8x128xf32>
    %94 = vector.extract_strided_slice %81 {offsets = [0, 256], sizes = [8, 128], strides = [1, 1]} : vector<8x512xf32> to vector<8x128xf32>
    %95 = math.tanh %94 : vector<8x128xf32>
    %96 = vector.extract_strided_slice %81 {offsets = [0, 384], sizes = [8, 128], strides = [1, 1]} : vector<8x512xf32> to vector<8x128xf32>
    %97 = arith.negf %96 : vector<8x128xf32>
    %98 = math.exp %97 : vector<8x128xf32>
    %cst_34 = arith.constant 1.000000e+00 : f32
    %99 = vector.broadcast %cst_34 : f32 to vector<8x128xf32>
    %100 = arith.addf %99, %98 : vector<8x128xf32>
    %101 = arith.divf %99, %100 : vector<8x128xf32>
    %102 = arith.mulf %93, %47 : vector<8x128xf32>
    %103 = arith.mulf %87, %95 : vector<8x128xf32>
    %104 = arith.addf %102, %103 : vector<8x128xf32>
    %105 = math.tanh %104 : vector<8x128xf32>
    %106 = arith.mulf %101, %105 : vector<8x128xf32>
    %107 = tpu.concatenate %106, %78 in 1 : vector<8x128xf32>, vector<8x128xf32> -> vector<8x256xf32>
    %cst_35 = arith.constant dense<0.000000e+00> : vector<8x512xf32>
    %108 = tpu.matmul %107, %20, %cst_35 {dimension_numbers = #tpu.dot_dimension_numbers<[1], [0], [0], [1], [0, 0, 1, 1], [], []>} : vector<8x256xf32>, vector<256x512xf32>, vector<8x512xf32> -> vector<8x512xf32>
    %109 = vector.broadcast %21 : vector<1x512xf32> to vector<8x512xf32>
    %110 = arith.addf %108, %109 : vector<8x512xf32>
    %111 = vector.extract_strided_slice %110 {offsets = [0, 0], sizes = [8, 128], strides = [1, 1]} : vector<8x512xf32> to vector<8x128xf32>
    %112 = arith.negf %111 : vector<8x128xf32>
    %113 = math.exp %112 : vector<8x128xf32>
    %cst_36 = arith.constant 1.000000e+00 : f32
    %114 = vector.broadcast %cst_36 : f32 to vector<8x128xf32>
    %115 = arith.addf %114, %113 : vector<8x128xf32>
    %116 = arith.divf %114, %115 : vector<8x128xf32>
    %117 = vector.extract_strided_slice %110 {offsets = [0, 128], sizes = [8, 128], strides = [1, 1]} : vector<8x512xf32> to vector<8x128xf32>
    %118 = arith.negf %117 : vector<8x128xf32>
    %119 = math.exp %118 : vector<8x128xf32>
    %cst_37 = arith.constant 1.000000e+00 : f32
    %120 = vector.broadcast %cst_37 : f32 to vector<8x128xf32>
    %121 = arith.addf %120, %119 : vector<8x128xf32>
    %122 = arith.divf %120, %121 : vector<8x128xf32>
    %123 = vector.extract_strided_slice %110 {offsets = [0, 256], sizes = [8, 128], strides = [1, 1]} : vector<8x512xf32> to vector<8x128xf32>
    %124 = math.tanh %123 : vector<8x128xf32>
    %125 = vector.extract_strided_slice %110 {offsets = [0, 384], sizes = [8, 128], strides = [1, 1]} : vector<8x512xf32> to vector<8x128xf32>
    %126 = arith.negf %125 : vector<8x128xf32>
    %127 = math.exp %126 : vector<8x128xf32>
    %cst_38 = arith.constant 1.000000e+00 : f32
    %128 = vector.broadcast %cst_38 : f32 to vector<8x128xf32>
    %129 = arith.addf %128, %127 : vector<8x128xf32>
    %130 = arith.divf %128, %129 : vector<8x128xf32>
    %131 = arith.mulf %122, %76 : vector<8x128xf32>
    %132 = arith.mulf %116, %124 : vector<8x128xf32>
    %133 = arith.addf %131, %132 : vector<8x128xf32>
    %134 = math.tanh %133 : vector<8x128xf32>
    %135 = arith.mulf %130, %134 : vector<8x128xf32>
    %136 = vector.extract_strided_slice %18 {offsets = [16, 0], sizes = [8, 512], strides = [1, 1]} : vector<64x512xf32> to vector<8x512xf32>
    %cst_39 = arith.constant dense<0.000000e+00> : vector<8x512xf32>
    %137 = tpu.matmul %106, %19, %cst_39 {dimension_numbers = #tpu.dot_dimension_numbers<[1], [0], [0], [1], [0, 0, 1, 1], [], []>} : vector<8x128xf32>, vector<128x512xf32>, vector<8x512xf32> -> vector<8x512xf32>
    %138 = arith.addf %136, %137 : vector<8x512xf32>
    %139 = vector.extract_strided_slice %138 {offsets = [0, 0], sizes = [8, 128], strides = [1, 1]} : vector<8x512xf32> to vector<8x128xf32>
    %140 = arith.negf %139 : vector<8x128xf32>
    %141 = math.exp %140 : vector<8x128xf32>
    %cst_40 = arith.constant 1.000000e+00 : f32
    %142 = vector.broadcast %cst_40 : f32 to vector<8x128xf32>
    %143 = arith.addf %142, %141 : vector<8x128xf32>
    %144 = arith.divf %142, %143 : vector<8x128xf32>
    %145 = vector.extract_strided_slice %138 {offsets = [0, 128], sizes = [8, 128], strides = [1, 1]} : vector<8x512xf32> to vector<8x128xf32>
    %146 = arith.negf %145 : vector<8x128xf32>
    %147 = math.exp %146 : vector<8x128xf32>
    %cst_41 = arith.constant 1.000000e+00 : f32
    %148 = vector.broadcast %cst_41 : f32 to vector<8x128xf32>
    %149 = arith.addf %148, %147 : vector<8x128xf32>
    %150 = arith.divf %148, %149 : vector<8x128xf32>
    %151 = vector.extract_strided_slice %138 {offsets = [0, 256], sizes = [8, 128], strides = [1, 1]} : vector<8x512xf32> to vector<8x128xf32>
    %152 = math.tanh %151 : vector<8x128xf32>
    %153 = vector.extract_strided_slice %138 {offsets = [0, 384], sizes = [8, 128], strides = [1, 1]} : vector<8x512xf32> to vector<8x128xf32>
    %154 = arith.negf %153 : vector<8x128xf32>
    %155 = math.exp %154 : vector<8x128xf32>
    %cst_42 = arith.constant 1.000000e+00 : f32
    %156 = vector.broadcast %cst_42 : f32 to vector<8x128xf32>
    %157 = arith.addf %156, %155 : vector<8x128xf32>
    %158 = arith.divf %156, %157 : vector<8x128xf32>
    %159 = arith.mulf %150, %104 : vector<8x128xf32>
    %160 = arith.mulf %144, %152 : vector<8x128xf32>
    %161 = arith.addf %159, %160 : vector<8x128xf32>
    %162 = math.tanh %161 : vector<8x128xf32>
    %163 = arith.mulf %158, %162 : vector<8x128xf32>
    %164 = tpu.concatenate %163, %135 in 1 : vector<8x128xf32>, vector<8x128xf32> -> vector<8x256xf32>
    %cst_43 = arith.constant dense<0.000000e+00> : vector<8x512xf32>
    %165 = tpu.matmul %164, %20, %cst_43 {dimension_numbers = #tpu.dot_dimension_numbers<[1], [0], [0], [1], [0, 0, 1, 1], [], []>} : vector<8x256xf32>, vector<256x512xf32>, vector<8x512xf32> -> vector<8x512xf32>
    %166 = vector.broadcast %21 : vector<1x512xf32> to vector<8x512xf32>
    %167 = arith.addf %165, %166 : vector<8x512xf32>
    %168 = vector.extract_strided_slice %167 {offsets = [0, 0], sizes = [8, 128], strides = [1, 1]} : vector<8x512xf32> to vector<8x128xf32>
    %169 = arith.negf %168 : vector<8x128xf32>
    %170 = math.exp %169 : vector<8x128xf32>
    %cst_44 = arith.constant 1.000000e+00 : f32
    %171 = vector.broadcast %cst_44 : f32 to vector<8x128xf32>
    %172 = arith.addf %171, %170 : vector<8x128xf32>
    %173 = arith.divf %171, %172 : vector<8x128xf32>
    %174 = vector.extract_strided_slice %167 {offsets = [0, 128], sizes = [8, 128], strides = [1, 1]} : vector<8x512xf32> to vector<8x128xf32>
    %175 = arith.negf %174 : vector<8x128xf32>
    %176 = math.exp %175 : vector<8x128xf32>
    %cst_45 = arith.constant 1.000000e+00 : f32
    %177 = vector.broadcast %cst_45 : f32 to vector<8x128xf32>
    %178 = arith.addf %177, %176 : vector<8x128xf32>
    %179 = arith.divf %177, %178 : vector<8x128xf32>
    %180 = vector.extract_strided_slice %167 {offsets = [0, 256], sizes = [8, 128], strides = [1, 1]} : vector<8x512xf32> to vector<8x128xf32>
    %181 = math.tanh %180 : vector<8x128xf32>
    %182 = vector.extract_strided_slice %167 {offsets = [0, 384], sizes = [8, 128], strides = [1, 1]} : vector<8x512xf32> to vector<8x128xf32>
    %183 = arith.negf %182 : vector<8x128xf32>
    %184 = math.exp %183 : vector<8x128xf32>
    %cst_46 = arith.constant 1.000000e+00 : f32
    %185 = vector.broadcast %cst_46 : f32 to vector<8x128xf32>
    %186 = arith.addf %185, %184 : vector<8x128xf32>
    %187 = arith.divf %185, %186 : vector<8x128xf32>
    %188 = arith.mulf %179, %133 : vector<8x128xf32>
    %189 = arith.mulf %173, %181 : vector<8x128xf32>
    %190 = arith.addf %188, %189 : vector<8x128xf32>
    %191 = math.tanh %190 : vector<8x128xf32>
    %192 = arith.mulf %187, %191 : vector<8x128xf32>
    %193 = vector.extract_strided_slice %18 {offsets = [24, 0], sizes = [8, 512], strides = [1, 1]} : vector<64x512xf32> to vector<8x512xf32>
    %cst_47 = arith.constant dense<0.000000e+00> : vector<8x512xf32>
    %194 = tpu.matmul %163, %19, %cst_47 {dimension_numbers = #tpu.dot_dimension_numbers<[1], [0], [0], [1], [0, 0, 1, 1], [], []>} : vector<8x128xf32>, vector<128x512xf32>, vector<8x512xf32> -> vector<8x512xf32>
    %195 = arith.addf %193, %194 : vector<8x512xf32>
    %196 = vector.extract_strided_slice %195 {offsets = [0, 0], sizes = [8, 128], strides = [1, 1]} : vector<8x512xf32> to vector<8x128xf32>
    %197 = arith.negf %196 : vector<8x128xf32>
    %198 = math.exp %197 : vector<8x128xf32>
    %cst_48 = arith.constant 1.000000e+00 : f32
    %199 = vector.broadcast %cst_48 : f32 to vector<8x128xf32>
    %200 = arith.addf %199, %198 : vector<8x128xf32>
    %201 = arith.divf %199, %200 : vector<8x128xf32>
    %202 = vector.extract_strided_slice %195 {offsets = [0, 128], sizes = [8, 128], strides = [1, 1]} : vector<8x512xf32> to vector<8x128xf32>
    %203 = arith.negf %202 : vector<8x128xf32>
    %204 = math.exp %203 : vector<8x128xf32>
    %cst_49 = arith.constant 1.000000e+00 : f32
    %205 = vector.broadcast %cst_49 : f32 to vector<8x128xf32>
    %206 = arith.addf %205, %204 : vector<8x128xf32>
    %207 = arith.divf %205, %206 : vector<8x128xf32>
    %208 = vector.extract_strided_slice %195 {offsets = [0, 256], sizes = [8, 128], strides = [1, 1]} : vector<8x512xf32> to vector<8x128xf32>
    %209 = math.tanh %208 : vector<8x128xf32>
    %210 = vector.extract_strided_slice %195 {offsets = [0, 384], sizes = [8, 128], strides = [1, 1]} : vector<8x512xf32> to vector<8x128xf32>
    %211 = arith.negf %210 : vector<8x128xf32>
    %212 = math.exp %211 : vector<8x128xf32>
    %cst_50 = arith.constant 1.000000e+00 : f32
    %213 = vector.broadcast %cst_50 : f32 to vector<8x128xf32>
    %214 = arith.addf %213, %212 : vector<8x128xf32>
    %215 = arith.divf %213, %214 : vector<8x128xf32>
    %216 = arith.mulf %207, %161 : vector<8x128xf32>
    %217 = arith.mulf %201, %209 : vector<8x128xf32>
    %218 = arith.addf %216, %217 : vector<8x128xf32>
    %219 = math.tanh %218 : vector<8x128xf32>
    %220 = arith.mulf %215, %219 : vector<8x128xf32>
    %221 = tpu.concatenate %220, %192 in 1 : vector<8x128xf32>, vector<8x128xf32> -> vector<8x256xf32>
    %cst_51 = arith.constant dense<0.000000e+00> : vector<8x512xf32>
    %222 = tpu.matmul %221, %20, %cst_51 {dimension_numbers = #tpu.dot_dimension_numbers<[1], [0], [0], [1], [0, 0, 1, 1], [], []>} : vector<8x256xf32>, vector<256x512xf32>, vector<8x512xf32> -> vector<8x512xf32>
    %223 = vector.broadcast %21 : vector<1x512xf32> to vector<8x512xf32>
    %224 = arith.addf %222, %223 : vector<8x512xf32>
    %225 = vector.extract_strided_slice %224 {offsets = [0, 0], sizes = [8, 128], strides = [1, 1]} : vector<8x512xf32> to vector<8x128xf32>
    %226 = arith.negf %225 : vector<8x128xf32>
    %227 = math.exp %226 : vector<8x128xf32>
    %cst_52 = arith.constant 1.000000e+00 : f32
    %228 = vector.broadcast %cst_52 : f32 to vector<8x128xf32>
    %229 = arith.addf %228, %227 : vector<8x128xf32>
    %230 = arith.divf %228, %229 : vector<8x128xf32>
    %231 = vector.extract_strided_slice %224 {offsets = [0, 128], sizes = [8, 128], strides = [1, 1]} : vector<8x512xf32> to vector<8x128xf32>
    %232 = arith.negf %231 : vector<8x128xf32>
    %233 = math.exp %232 : vector<8x128xf32>
    %cst_53 = arith.constant 1.000000e+00 : f32
    %234 = vector.broadcast %cst_53 : f32 to vector<8x128xf32>
    %235 = arith.addf %234, %233 : vector<8x128xf32>
    %236 = arith.divf %234, %235 : vector<8x128xf32>
    %237 = vector.extract_strided_slice %224 {offsets = [0, 256], sizes = [8, 128], strides = [1, 1]} : vector<8x512xf32> to vector<8x128xf32>
    %238 = math.tanh %237 : vector<8x128xf32>
    %239 = vector.extract_strided_slice %224 {offsets = [0, 384], sizes = [8, 128], strides = [1, 1]} : vector<8x512xf32> to vector<8x128xf32>
    %240 = arith.negf %239 : vector<8x128xf32>
    %241 = math.exp %240 : vector<8x128xf32>
    %cst_54 = arith.constant 1.000000e+00 : f32
    %242 = vector.broadcast %cst_54 : f32 to vector<8x128xf32>
    %243 = arith.addf %242, %241 : vector<8x128xf32>
    %244 = arith.divf %242, %243 : vector<8x128xf32>
    %245 = arith.mulf %236, %190 : vector<8x128xf32>
    %246 = arith.mulf %230, %238 : vector<8x128xf32>
    %247 = arith.addf %245, %246 : vector<8x128xf32>
    %248 = math.tanh %247 : vector<8x128xf32>
    %249 = arith.mulf %244, %248 : vector<8x128xf32>
    %250 = vector.extract_strided_slice %18 {offsets = [32, 0], sizes = [8, 512], strides = [1, 1]} : vector<64x512xf32> to vector<8x512xf32>
    %cst_55 = arith.constant dense<0.000000e+00> : vector<8x512xf32>
    %251 = tpu.matmul %220, %19, %cst_55 {dimension_numbers = #tpu.dot_dimension_numbers<[1], [0], [0], [1], [0, 0, 1, 1], [], []>} : vector<8x128xf32>, vector<128x512xf32>, vector<8x512xf32> -> vector<8x512xf32>
    %252 = arith.addf %250, %251 : vector<8x512xf32>
    %253 = vector.extract_strided_slice %252 {offsets = [0, 0], sizes = [8, 128], strides = [1, 1]} : vector<8x512xf32> to vector<8x128xf32>
    %254 = arith.negf %253 : vector<8x128xf32>
    %255 = math.exp %254 : vector<8x128xf32>
    %cst_56 = arith.constant 1.000000e+00 : f32
    %256 = vector.broadcast %cst_56 : f32 to vector<8x128xf32>
    %257 = arith.addf %256, %255 : vector<8x128xf32>
    %258 = arith.divf %256, %257 : vector<8x128xf32>
    %259 = vector.extract_strided_slice %252 {offsets = [0, 128], sizes = [8, 128], strides = [1, 1]} : vector<8x512xf32> to vector<8x128xf32>
    %260 = arith.negf %259 : vector<8x128xf32>
    %261 = math.exp %260 : vector<8x128xf32>
    %cst_57 = arith.constant 1.000000e+00 : f32
    %262 = vector.broadcast %cst_57 : f32 to vector<8x128xf32>
    %263 = arith.addf %262, %261 : vector<8x128xf32>
    %264 = arith.divf %262, %263 : vector<8x128xf32>
    %265 = vector.extract_strided_slice %252 {offsets = [0, 256], sizes = [8, 128], strides = [1, 1]} : vector<8x512xf32> to vector<8x128xf32>
    %266 = math.tanh %265 : vector<8x128xf32>
    %267 = vector.extract_strided_slice %252 {offsets = [0, 384], sizes = [8, 128], strides = [1, 1]} : vector<8x512xf32> to vector<8x128xf32>
    %268 = arith.negf %267 : vector<8x128xf32>
    %269 = math.exp %268 : vector<8x128xf32>
    %cst_58 = arith.constant 1.000000e+00 : f32
    %270 = vector.broadcast %cst_58 : f32 to vector<8x128xf32>
    %271 = arith.addf %270, %269 : vector<8x128xf32>
    %272 = arith.divf %270, %271 : vector<8x128xf32>
    %273 = arith.mulf %264, %218 : vector<8x128xf32>
    %274 = arith.mulf %258, %266 : vector<8x128xf32>
    %275 = arith.addf %273, %274 : vector<8x128xf32>
    %276 = math.tanh %275 : vector<8x128xf32>
    %277 = arith.mulf %272, %276 : vector<8x128xf32>
    %278 = tpu.concatenate %277, %249 in 1 : vector<8x128xf32>, vector<8x128xf32> -> vector<8x256xf32>
    %cst_59 = arith.constant dense<0.000000e+00> : vector<8x512xf32>
    %279 = tpu.matmul %278, %20, %cst_59 {dimension_numbers = #tpu.dot_dimension_numbers<[1], [0], [0], [1], [0, 0, 1, 1], [], []>} : vector<8x256xf32>, vector<256x512xf32>, vector<8x512xf32> -> vector<8x512xf32>
    %280 = vector.broadcast %21 : vector<1x512xf32> to vector<8x512xf32>
    %281 = arith.addf %279, %280 : vector<8x512xf32>
    %282 = vector.extract_strided_slice %281 {offsets = [0, 0], sizes = [8, 128], strides = [1, 1]} : vector<8x512xf32> to vector<8x128xf32>
    %283 = arith.negf %282 : vector<8x128xf32>
    %284 = math.exp %283 : vector<8x128xf32>
    %cst_60 = arith.constant 1.000000e+00 : f32
    %285 = vector.broadcast %cst_60 : f32 to vector<8x128xf32>
    %286 = arith.addf %285, %284 : vector<8x128xf32>
    %287 = arith.divf %285, %286 : vector<8x128xf32>
    %288 = vector.extract_strided_slice %281 {offsets = [0, 128], sizes = [8, 128], strides = [1, 1]} : vector<8x512xf32> to vector<8x128xf32>
    %289 = arith.negf %288 : vector<8x128xf32>
    %290 = math.exp %289 : vector<8x128xf32>
    %cst_61 = arith.constant 1.000000e+00 : f32
    %291 = vector.broadcast %cst_61 : f32 to vector<8x128xf32>
    %292 = arith.addf %291, %290 : vector<8x128xf32>
    %293 = arith.divf %291, %292 : vector<8x128xf32>
    %294 = vector.extract_strided_slice %281 {offsets = [0, 256], sizes = [8, 128], strides = [1, 1]} : vector<8x512xf32> to vector<8x128xf32>
    %295 = math.tanh %294 : vector<8x128xf32>
    %296 = vector.extract_strided_slice %281 {offsets = [0, 384], sizes = [8, 128], strides = [1, 1]} : vector<8x512xf32> to vector<8x128xf32>
    %297 = arith.negf %296 : vector<8x128xf32>
    %298 = math.exp %297 : vector<8x128xf32>
    %cst_62 = arith.constant 1.000000e+00 : f32
    %299 = vector.broadcast %cst_62 : f32 to vector<8x128xf32>
    %300 = arith.addf %299, %298 : vector<8x128xf32>
    %301 = arith.divf %299, %300 : vector<8x128xf32>
    %302 = arith.mulf %293, %247 : vector<8x128xf32>
    %303 = arith.mulf %287, %295 : vector<8x128xf32>
    %304 = arith.addf %302, %303 : vector<8x128xf32>
    %305 = math.tanh %304 : vector<8x128xf32>
    %306 = arith.mulf %301, %305 : vector<8x128xf32>
    %307 = vector.extract_strided_slice %18 {offsets = [40, 0], sizes = [8, 512], strides = [1, 1]} : vector<64x512xf32> to vector<8x512xf32>
    %cst_63 = arith.constant dense<0.000000e+00> : vector<8x512xf32>
    %308 = tpu.matmul %277, %19, %cst_63 {dimension_numbers = #tpu.dot_dimension_numbers<[1], [0], [0], [1], [0, 0, 1, 1], [], []>} : vector<8x128xf32>, vector<128x512xf32>, vector<8x512xf32> -> vector<8x512xf32>
    %309 = arith.addf %307, %308 : vector<8x512xf32>
    %310 = vector.extract_strided_slice %309 {offsets = [0, 0], sizes = [8, 128], strides = [1, 1]} : vector<8x512xf32> to vector<8x128xf32>
    %311 = arith.negf %310 : vector<8x128xf32>
    %312 = math.exp %311 : vector<8x128xf32>
    %cst_64 = arith.constant 1.000000e+00 : f32
    %313 = vector.broadcast %cst_64 : f32 to vector<8x128xf32>
    %314 = arith.addf %313, %312 : vector<8x128xf32>
    %315 = arith.divf %313, %314 : vector<8x128xf32>
    %316 = vector.extract_strided_slice %309 {offsets = [0, 128], sizes = [8, 128], strides = [1, 1]} : vector<8x512xf32> to vector<8x128xf32>
    %317 = arith.negf %316 : vector<8x128xf32>
    %318 = math.exp %317 : vector<8x128xf32>
    %cst_65 = arith.constant 1.000000e+00 : f32
    %319 = vector.broadcast %cst_65 : f32 to vector<8x128xf32>
    %320 = arith.addf %319, %318 : vector<8x128xf32>
    %321 = arith.divf %319, %320 : vector<8x128xf32>
    %322 = vector.extract_strided_slice %309 {offsets = [0, 256], sizes = [8, 128], strides = [1, 1]} : vector<8x512xf32> to vector<8x128xf32>
    %323 = math.tanh %322 : vector<8x128xf32>
    %324 = vector.extract_strided_slice %309 {offsets = [0, 384], sizes = [8, 128], strides = [1, 1]} : vector<8x512xf32> to vector<8x128xf32>
    %325 = arith.negf %324 : vector<8x128xf32>
    %326 = math.exp %325 : vector<8x128xf32>
    %cst_66 = arith.constant 1.000000e+00 : f32
    %327 = vector.broadcast %cst_66 : f32 to vector<8x128xf32>
    %328 = arith.addf %327, %326 : vector<8x128xf32>
    %329 = arith.divf %327, %328 : vector<8x128xf32>
    %330 = arith.mulf %321, %275 : vector<8x128xf32>
    %331 = arith.mulf %315, %323 : vector<8x128xf32>
    %332 = arith.addf %330, %331 : vector<8x128xf32>
    %333 = math.tanh %332 : vector<8x128xf32>
    %334 = arith.mulf %329, %333 : vector<8x128xf32>
    %335 = tpu.concatenate %334, %306 in 1 : vector<8x128xf32>, vector<8x128xf32> -> vector<8x256xf32>
    %cst_67 = arith.constant dense<0.000000e+00> : vector<8x512xf32>
    %336 = tpu.matmul %335, %20, %cst_67 {dimension_numbers = #tpu.dot_dimension_numbers<[1], [0], [0], [1], [0, 0, 1, 1], [], []>} : vector<8x256xf32>, vector<256x512xf32>, vector<8x512xf32> -> vector<8x512xf32>
    %337 = vector.broadcast %21 : vector<1x512xf32> to vector<8x512xf32>
    %338 = arith.addf %336, %337 : vector<8x512xf32>
    %339 = vector.extract_strided_slice %338 {offsets = [0, 0], sizes = [8, 128], strides = [1, 1]} : vector<8x512xf32> to vector<8x128xf32>
    %340 = arith.negf %339 : vector<8x128xf32>
    %341 = math.exp %340 : vector<8x128xf32>
    %cst_68 = arith.constant 1.000000e+00 : f32
    %342 = vector.broadcast %cst_68 : f32 to vector<8x128xf32>
    %343 = arith.addf %342, %341 : vector<8x128xf32>
    %344 = arith.divf %342, %343 : vector<8x128xf32>
    %345 = vector.extract_strided_slice %338 {offsets = [0, 128], sizes = [8, 128], strides = [1, 1]} : vector<8x512xf32> to vector<8x128xf32>
    %346 = arith.negf %345 : vector<8x128xf32>
    %347 = math.exp %346 : vector<8x128xf32>
    %cst_69 = arith.constant 1.000000e+00 : f32
    %348 = vector.broadcast %cst_69 : f32 to vector<8x128xf32>
    %349 = arith.addf %348, %347 : vector<8x128xf32>
    %350 = arith.divf %348, %349 : vector<8x128xf32>
    %351 = vector.extract_strided_slice %338 {offsets = [0, 256], sizes = [8, 128], strides = [1, 1]} : vector<8x512xf32> to vector<8x128xf32>
    %352 = math.tanh %351 : vector<8x128xf32>
    %353 = vector.extract_strided_slice %338 {offsets = [0, 384], sizes = [8, 128], strides = [1, 1]} : vector<8x512xf32> to vector<8x128xf32>
    %354 = arith.negf %353 : vector<8x128xf32>
    %355 = math.exp %354 : vector<8x128xf32>
    %cst_70 = arith.constant 1.000000e+00 : f32
    %356 = vector.broadcast %cst_70 : f32 to vector<8x128xf32>
    %357 = arith.addf %356, %355 : vector<8x128xf32>
    %358 = arith.divf %356, %357 : vector<8x128xf32>
    %359 = arith.mulf %350, %304 : vector<8x128xf32>
    %360 = arith.mulf %344, %352 : vector<8x128xf32>
    %361 = arith.addf %359, %360 : vector<8x128xf32>
    %362 = math.tanh %361 : vector<8x128xf32>
    %363 = arith.mulf %358, %362 : vector<8x128xf32>
    %364 = vector.extract_strided_slice %18 {offsets = [48, 0], sizes = [8, 512], strides = [1, 1]} : vector<64x512xf32> to vector<8x512xf32>
    %cst_71 = arith.constant dense<0.000000e+00> : vector<8x512xf32>
    %365 = tpu.matmul %334, %19, %cst_71 {dimension_numbers = #tpu.dot_dimension_numbers<[1], [0], [0], [1], [0, 0, 1, 1], [], []>} : vector<8x128xf32>, vector<128x512xf32>, vector<8x512xf32> -> vector<8x512xf32>
    %366 = arith.addf %364, %365 : vector<8x512xf32>
    %367 = vector.extract_strided_slice %366 {offsets = [0, 0], sizes = [8, 128], strides = [1, 1]} : vector<8x512xf32> to vector<8x128xf32>
    %368 = arith.negf %367 : vector<8x128xf32>
    %369 = math.exp %368 : vector<8x128xf32>
    %cst_72 = arith.constant 1.000000e+00 : f32
    %370 = vector.broadcast %cst_72 : f32 to vector<8x128xf32>
    %371 = arith.addf %370, %369 : vector<8x128xf32>
    %372 = arith.divf %370, %371 : vector<8x128xf32>
    %373 = vector.extract_strided_slice %366 {offsets = [0, 128], sizes = [8, 128], strides = [1, 1]} : vector<8x512xf32> to vector<8x128xf32>
    %374 = arith.negf %373 : vector<8x128xf32>
    %375 = math.exp %374 : vector<8x128xf32>
    %cst_73 = arith.constant 1.000000e+00 : f32
    %376 = vector.broadcast %cst_73 : f32 to vector<8x128xf32>
    %377 = arith.addf %376, %375 : vector<8x128xf32>
    %378 = arith.divf %376, %377 : vector<8x128xf32>
    %379 = vector.extract_strided_slice %366 {offsets = [0, 256], sizes = [8, 128], strides = [1, 1]} : vector<8x512xf32> to vector<8x128xf32>
    %380 = math.tanh %379 : vector<8x128xf32>
    %381 = vector.extract_strided_slice %366 {offsets = [0, 384], sizes = [8, 128], strides = [1, 1]} : vector<8x512xf32> to vector<8x128xf32>
    %382 = arith.negf %381 : vector<8x128xf32>
    %383 = math.exp %382 : vector<8x128xf32>
    %cst_74 = arith.constant 1.000000e+00 : f32
    %384 = vector.broadcast %cst_74 : f32 to vector<8x128xf32>
    %385 = arith.addf %384, %383 : vector<8x128xf32>
    %386 = arith.divf %384, %385 : vector<8x128xf32>
    %387 = arith.mulf %378, %332 : vector<8x128xf32>
    %388 = arith.mulf %372, %380 : vector<8x128xf32>
    %389 = arith.addf %387, %388 : vector<8x128xf32>
    %390 = math.tanh %389 : vector<8x128xf32>
    %391 = arith.mulf %386, %390 : vector<8x128xf32>
    %392 = tpu.concatenate %391, %363 in 1 : vector<8x128xf32>, vector<8x128xf32> -> vector<8x256xf32>
    %cst_75 = arith.constant dense<0.000000e+00> : vector<8x512xf32>
    %393 = tpu.matmul %392, %20, %cst_75 {dimension_numbers = #tpu.dot_dimension_numbers<[1], [0], [0], [1], [0, 0, 1, 1], [], []>} : vector<8x256xf32>, vector<256x512xf32>, vector<8x512xf32> -> vector<8x512xf32>
    %394 = vector.broadcast %21 : vector<1x512xf32> to vector<8x512xf32>
    %395 = arith.addf %393, %394 : vector<8x512xf32>
    %396 = vector.extract_strided_slice %395 {offsets = [0, 0], sizes = [8, 128], strides = [1, 1]} : vector<8x512xf32> to vector<8x128xf32>
    %397 = arith.negf %396 : vector<8x128xf32>
    %398 = math.exp %397 : vector<8x128xf32>
    %cst_76 = arith.constant 1.000000e+00 : f32
    %399 = vector.broadcast %cst_76 : f32 to vector<8x128xf32>
    %400 = arith.addf %399, %398 : vector<8x128xf32>
    %401 = arith.divf %399, %400 : vector<8x128xf32>
    %402 = vector.extract_strided_slice %395 {offsets = [0, 128], sizes = [8, 128], strides = [1, 1]} : vector<8x512xf32> to vector<8x128xf32>
    %403 = arith.negf %402 : vector<8x128xf32>
    %404 = math.exp %403 : vector<8x128xf32>
    %cst_77 = arith.constant 1.000000e+00 : f32
    %405 = vector.broadcast %cst_77 : f32 to vector<8x128xf32>
    %406 = arith.addf %405, %404 : vector<8x128xf32>
    %407 = arith.divf %405, %406 : vector<8x128xf32>
    %408 = vector.extract_strided_slice %395 {offsets = [0, 256], sizes = [8, 128], strides = [1, 1]} : vector<8x512xf32> to vector<8x128xf32>
    %409 = math.tanh %408 : vector<8x128xf32>
    %410 = vector.extract_strided_slice %395 {offsets = [0, 384], sizes = [8, 128], strides = [1, 1]} : vector<8x512xf32> to vector<8x128xf32>
    %411 = arith.negf %410 : vector<8x128xf32>
    %412 = math.exp %411 : vector<8x128xf32>
    %cst_78 = arith.constant 1.000000e+00 : f32
    %413 = vector.broadcast %cst_78 : f32 to vector<8x128xf32>
    %414 = arith.addf %413, %412 : vector<8x128xf32>
    %415 = arith.divf %413, %414 : vector<8x128xf32>
    %416 = arith.mulf %407, %361 : vector<8x128xf32>
    %417 = arith.mulf %401, %409 : vector<8x128xf32>
    %418 = arith.addf %416, %417 : vector<8x128xf32>
    %419 = math.tanh %418 : vector<8x128xf32>
    %420 = arith.mulf %415, %419 : vector<8x128xf32>
    %421 = vector.extract_strided_slice %18 {offsets = [56, 0], sizes = [8, 512], strides = [1, 1]} : vector<64x512xf32> to vector<8x512xf32>
    %cst_79 = arith.constant dense<0.000000e+00> : vector<8x512xf32>
    %422 = tpu.matmul %391, %19, %cst_79 {dimension_numbers = #tpu.dot_dimension_numbers<[1], [0], [0], [1], [0, 0, 1, 1], [], []>} : vector<8x128xf32>, vector<128x512xf32>, vector<8x512xf32> -> vector<8x512xf32>
    %423 = arith.addf %421, %422 : vector<8x512xf32>
    %424 = vector.extract_strided_slice %423 {offsets = [0, 0], sizes = [8, 128], strides = [1, 1]} : vector<8x512xf32> to vector<8x128xf32>
    %425 = arith.negf %424 : vector<8x128xf32>
    %426 = math.exp %425 : vector<8x128xf32>
    %cst_80 = arith.constant 1.000000e+00 : f32
    %427 = vector.broadcast %cst_80 : f32 to vector<8x128xf32>
    %428 = arith.addf %427, %426 : vector<8x128xf32>
    %429 = arith.divf %427, %428 : vector<8x128xf32>
    %430 = vector.extract_strided_slice %423 {offsets = [0, 128], sizes = [8, 128], strides = [1, 1]} : vector<8x512xf32> to vector<8x128xf32>
    %431 = arith.negf %430 : vector<8x128xf32>
    %432 = math.exp %431 : vector<8x128xf32>
    %cst_81 = arith.constant 1.000000e+00 : f32
    %433 = vector.broadcast %cst_81 : f32 to vector<8x128xf32>
    %434 = arith.addf %433, %432 : vector<8x128xf32>
    %435 = arith.divf %433, %434 : vector<8x128xf32>
    %436 = vector.extract_strided_slice %423 {offsets = [0, 256], sizes = [8, 128], strides = [1, 1]} : vector<8x512xf32> to vector<8x128xf32>
    %437 = math.tanh %436 : vector<8x128xf32>
    %438 = vector.extract_strided_slice %423 {offsets = [0, 384], sizes = [8, 128], strides = [1, 1]} : vector<8x512xf32> to vector<8x128xf32>
    %439 = arith.negf %438 : vector<8x128xf32>
    %440 = math.exp %439 : vector<8x128xf32>
    %cst_82 = arith.constant 1.000000e+00 : f32
    %441 = vector.broadcast %cst_82 : f32 to vector<8x128xf32>
    %442 = arith.addf %441, %440 : vector<8x128xf32>
    %443 = arith.divf %441, %442 : vector<8x128xf32>
    %444 = arith.mulf %435, %389 : vector<8x128xf32>
    %445 = arith.mulf %429, %437 : vector<8x128xf32>
    %446 = arith.addf %444, %445 : vector<8x128xf32>
    %447 = math.tanh %446 : vector<8x128xf32>
    %448 = arith.mulf %443, %447 : vector<8x128xf32>
    %449 = tpu.concatenate %448, %420 in 1 : vector<8x128xf32>, vector<8x128xf32> -> vector<8x256xf32>
    %cst_83 = arith.constant dense<0.000000e+00> : vector<8x512xf32>
    %450 = tpu.matmul %449, %20, %cst_83 {dimension_numbers = #tpu.dot_dimension_numbers<[1], [0], [0], [1], [0, 0, 1, 1], [], []>} : vector<8x256xf32>, vector<256x512xf32>, vector<8x512xf32> -> vector<8x512xf32>
    %451 = vector.broadcast %21 : vector<1x512xf32> to vector<8x512xf32>
    %452 = arith.addf %450, %451 : vector<8x512xf32>
    %453 = vector.extract_strided_slice %452 {offsets = [0, 0], sizes = [8, 128], strides = [1, 1]} : vector<8x512xf32> to vector<8x128xf32>
    %454 = arith.negf %453 : vector<8x128xf32>
    %455 = math.exp %454 : vector<8x128xf32>
    %cst_84 = arith.constant 1.000000e+00 : f32
    %456 = vector.broadcast %cst_84 : f32 to vector<8x128xf32>
    %457 = arith.addf %456, %455 : vector<8x128xf32>
    %458 = arith.divf %456, %457 : vector<8x128xf32>
    %459 = vector.extract_strided_slice %452 {offsets = [0, 128], sizes = [8, 128], strides = [1, 1]} : vector<8x512xf32> to vector<8x128xf32>
    %460 = arith.negf %459 : vector<8x128xf32>
    %461 = math.exp %460 : vector<8x128xf32>
    %cst_85 = arith.constant 1.000000e+00 : f32
    %462 = vector.broadcast %cst_85 : f32 to vector<8x128xf32>
    %463 = arith.addf %462, %461 : vector<8x128xf32>
    %464 = arith.divf %462, %463 : vector<8x128xf32>
    %465 = vector.extract_strided_slice %452 {offsets = [0, 256], sizes = [8, 128], strides = [1, 1]} : vector<8x512xf32> to vector<8x128xf32>
    %466 = math.tanh %465 : vector<8x128xf32>
    %467 = vector.extract_strided_slice %452 {offsets = [0, 384], sizes = [8, 128], strides = [1, 1]} : vector<8x512xf32> to vector<8x128xf32>
    %468 = arith.negf %467 : vector<8x128xf32>
    %469 = math.exp %468 : vector<8x128xf32>
    %cst_86 = arith.constant 1.000000e+00 : f32
    %470 = vector.broadcast %cst_86 : f32 to vector<8x128xf32>
    %471 = arith.addf %470, %469 : vector<8x128xf32>
    %472 = arith.divf %470, %471 : vector<8x128xf32>
    %473 = arith.mulf %464, %418 : vector<8x128xf32>
    %474 = arith.mulf %458, %466 : vector<8x128xf32>
    %475 = arith.addf %473, %474 : vector<8x128xf32>
    %476 = math.tanh %475 : vector<8x128xf32>
    %477 = arith.mulf %472, %476 : vector<8x128xf32>
    %478 = tpu.concatenate %78, %135, %192, %249, %306, %363, %420, %477 in 0 : vector<8x128xf32>, vector<8x128xf32>, vector<8x128xf32>, vector<8x128xf32>, vector<8x128xf32>, vector<8x128xf32>, vector<8x128xf32>, vector<8x128xf32> -> vector<64x128xf32>
    %c0_87 = arith.constant 0 : index
    %c0_88 = arith.constant 0 : index
    %479 = vector.load %arg11[%c0_87, %c0_88] : memref<128x128xf32, #tpu.memory_space<vmem>>, vector<128x128xf32>
    %cst_89 = arith.constant dense<0.000000e+00> : vector<64x128xf32>
    %480 = tpu.matmul %478, %479, %cst_89 {dimension_numbers = #tpu.dot_dimension_numbers<[1], [0], [0], [1], [0, 0, 1, 1], [], []>} : vector<64x128xf32>, vector<128x128xf32>, vector<64x128xf32> -> vector<64x128xf32>
    %c0_90 = arith.constant 0 : index
    %c0_91 = arith.constant 0 : index
    %481 = vector.load %arg12[%c0_90, %c0_91] : memref<1x128xf32, #tpu.memory_space<vmem>>, vector<1x128xf32>
    %482 = vector.broadcast %481 : vector<1x128xf32> to vector<64x128xf32>
    %483 = arith.addf %480, %482 : vector<64x128xf32>
    %c0_92 = arith.constant 0 : index
    %c0_93 = arith.constant 0 : index
    %484 = vector.load %arg13[%c0_92, %c0_93] : memref<64x128xf32, #tpu.memory_space<vmem>>, vector<64x128xf32>
    tpu.vector_store %arg13[%c0_92, %c0_93], %483 {strides = array<i32>} : memref<64x128xf32, #tpu.memory_space<vmem>>, vector<64x128xf32>,
    return
  }
}

</mosaic_0001>

<llo_original>
// kernel: tpu_custom_call.1
$region0: #{tpu_custom_call.1}
  #allocation0 [shape = 'u32[]', space=smem, size = 0x4, offset = 0x4, fixed_abs, tag = 'smem constant byte address 0x4 - core index']
  #allocation1 [shape = 'u32[72,128]{1,0:T(1,128)}', space=vmem, size = 0x9000, scoped, tag = 'internal scratch']
  %s0 = inlined_call_operand.vmem [shape: f32[8,64], index: 0, kind: input, shape index: {}]
  %s1 = inlined_call_operand.vmem [shape: f32[64,128], index: 1, kind: input, shape index: {}]
  %s2 = inlined_call_operand.vmem [shape: f32[1,128], index: 2, kind: input, shape index: {}]
  %s3 = inlined_call_operand.hbm [shape: f32[64,128], index: 3, kind: input, shape index: {}]
  %s4 = inlined_call_operand.vmem [shape: f32[1,128], index: 4, kind: input, shape index: {}]
  %s5 = inlined_call_operand.vmem [shape: f32[64,32], index: 5, kind: input, shape index: {}]
  %s6 = inlined_call_operand.hbm [shape: f32[32,512], index: 6, kind: input, shape index: {}]
  %s7 = inlined_call_operand.vmem [shape: f32[1,512], index: 7, kind: input, shape index: {}]
  %s8 = inlined_call_operand.hbm [shape: f32[128,512], index: 8, kind: input, shape index: {}]
  %s9 = inlined_call_operand.hbm [shape: f32[256,512], index: 9, kind: input, shape index: {}]
  %s10 = inlined_call_operand.vmem [shape: f32[1,512], index: 10, kind: input, shape index: {}]
  %s11 = inlined_call_operand.hbm [shape: f32[128,128], index: 11, kind: input, shape index: {}]
  %s12 = inlined_call_operand.vmem [shape: f32[1,128], index: 12, kind: input, shape index: {}]
  %s13 = inlined_call_operand.hbm [shape: f32[64,128], index: 13, kind: output, shape index: {}]
  %s14 = sld [smem:[#allocation0]]
  $region82: #{tpu_custom_call.1} parent=0
    _
  %s16 = ssub.s32 1, %s14
  %s17 = scalar_select 0, %s16, %s14
  $region1: #{tpu_custom_call.1} parent=0
    #allocation2 [shape = 'u8[32768]{0}', space=vmem, size = 0x8000, scoped, tag = 'input window, operand 3, single buffered']
    #allocation3 [shape = 's32[1]{0}', space=sflag, size = 0x4, scoped, tag = 'scoped memory for tpu_custom_call.1']
    #allocation4 [shape = 's32[1]{0}', space=sflag, size = 0x4, scoped, tag = 'scoped memory for tpu_custom_call.1']
    #allocation5 [shape = 'u8[65536]{0}', space=vmem, size = 0x10000, scoped, tag = 'input window, operand 6, single buffered']
    #allocation6 [shape = 's32[1]{0}', space=sflag, size = 0x4, scoped, tag = 'scoped memory for tpu_custom_call.1']
    #allocation7 [shape = 'u8[262144]{0}', space=vmem, size = 0x40000, scoped, tag = 'input window, operand 8, single buffered']
    #allocation8 [shape = 'u8[524288]{0}', space=vmem, size = 0x80000, scoped, tag = 'input window, operand 9, single buffered']
    #allocation9 [shape = 's32[1]{0}', space=sflag, size = 0x4, scoped, tag = 'scoped memory for tpu_custom_call.1']
    #allocation10 [shape = 'u8[65536]{0}', space=vmem, size = 0x10000, scoped, tag = 'input window, operand 11, single buffered']
    #allocation11 [shape = 'u8[32768]{0}', space=vmem, size = 0x8000, scoped, tag = 'output window, operand 0, single buffered']
    %18 = vsyncpa [#allocation3], 0
    %19 = vsyncpa [#allocation6], 0
    %20 = vsyncpa [#allocation9], 0
    %21 = vsyncpa [#allocation4], 0
    // Predicated region
    $region2: #{tpu_custom_call.1} parent=1 // pred_check
      _
    $region3: #{tpu_custom_call.1} parent=1 // pred_check_branch
      %23 = sbr.rel (0) target = $region5
    $region4: #{tpu_custom_call.1} parent=1 // pred_region
      _
    $region5: #{tpu_custom_call.1} parent=1 // pred_fallthru
      _
    // Predicated region
    $region6: #{tpu_custom_call.1} parent=1 // pred_check
      _
    $region7: #{tpu_custom_call.1} parent=1 // pred_check_branch
      %25 = sbr.rel (0) target = $region9
    $region8: #{tpu_custom_call.1} parent=1 // pred_region
      _
    $region9: #{tpu_custom_call.1} parent=1 // pred_fallthru
      _
    // Predicated region
    $region10: #{tpu_custom_call.1} parent=1 // pred_check
      _
    $region11: #{tpu_custom_call.1} parent=1 // pred_check_branch
      %27 = sbr.rel (0) target = $region13
    $region12: #{tpu_custom_call.1} parent=1 // pred_region
      _
    $region13: #{tpu_custom_call.1} parent=1 // pred_fallthru
      _
    // Predicated region
    $region14: #{tpu_custom_call.1} parent=1 // pred_check
      _
    $region15: #{tpu_custom_call.1} parent=1 // pred_check_branch
      %29 = sbr.rel (0) target = $region17
    $region16: #{tpu_custom_call.1} parent=1 // pred_region
      %31 = vsyncadd [#allocation3], 0
      %s32 = sshll.u32 %s3, 4
      %s33 = int_to_ptr.hbm [resolvable:$true] %s32
      %s34 = sshll.u32 [#allocation2], 4
      %s35 = int_to_ptr.vmem [resolvable:$true] %s34
      %40 = dma.hbm_to_vmem [thread:$0]  %s33, 1024, %s35, [#allocation3], 128, 128, 8
    $region17: #{tpu_custom_call.1} parent=1 // pred_fallthru
      _
    // Predicated region
    $region18: #{tpu_custom_call.1} parent=1 // pred_check
      _
    $region19: #{tpu_custom_call.1} parent=1 // pred_check_branch
      %42 = sbr.rel (0) target = $region21
    $region20: #{tpu_custom_call.1} parent=1 // pred_region
      _
    $region21: #{tpu_custom_call.1} parent=1 // pred_fallthru
      _
    // Predicated region
    $region22: #{tpu_custom_call.1} parent=1 // pred_check
      _
    $region23: #{tpu_custom_call.1} parent=1 // pred_check_branch
      %44 = sbr.rel (0) target = $region25
    $region24: #{tpu_custom_call.1} parent=1 // pred_region
      _
    $region25: #{tpu_custom_call.1} parent=1 // pred_fallthru
      _
    // Predicated region
    $region26: #{tpu_custom_call.1} parent=1 // pred_check
      _
    $region27: #{tpu_custom_call.1} parent=1 // pred_check_branch
      %46 = sbr.rel (0) target = $region29
    $region28: #{tpu_custom_call.1} parent=1 // pred_region
      %48 = vsyncadd [#allocation6], 0
      %s49 = sshll.u32 %s6, 4
      %s50 = int_to_ptr.hbm [resolvable:$true] %s49
      %s51 = sshll.u32 [#allocation5], 4
      %s52 = int_to_ptr.vmem [resolvable:$true] %s51
      %57 = dma.hbm_to_vmem [thread:$0]  %s50, 2048, %s52, [#allocation6], 512, 512, 32
    $region29: #{tpu_custom_call.1} parent=1 // pred_fallthru
      _
    // Predicated region
    $region30: #{tpu_custom_call.1} parent=1 // pred_check
      _
    $region31: #{tpu_custom_call.1} parent=1 // pred_check_branch
      %59 = sbr.rel (0) target = $region33
    $region32: #{tpu_custom_call.1} parent=1 // pred_region
      _
    $region33: #{tpu_custom_call.1} parent=1 // pred_fallthru
      _
    // Predicated region
    $region34: #{tpu_custom_call.1} parent=1 // pred_check
      _
    $region35: #{tpu_custom_call.1} parent=1 // pred_check_branch
      %61 = sbr.rel (0) target = $region37
    $region36: #{tpu_custom_call.1} parent=1 // pred_region
      %63 = vsyncadd [#allocation6], 0
      %s64 = sshll.u32 %s8, 4
      %s65 = int_to_ptr.hbm [resolvable:$true] %s64
      %s66 = sshll.u32 [#allocation7], 4
      %s67 = int_to_ptr.vmem [resolvable:$true] %s66
      %72 = dma.hbm_to_vmem [thread:$0]  %s65, 8192, %s67, [#allocation6], 512, 512, 32
    $region37: #{tpu_custom_call.1} parent=1 // pred_fallthru
      _
    // Predicated region
    $region38: #{tpu_custom_call.1} parent=1 // pred_check
      _
    $region39: #{tpu_custom_call.1} parent=1 // pred_check_branch
      %74 = sbr.rel (0) target = $region41
    $region40: #{tpu_custom_call.1} parent=1 // pred_region
      %76 = vsyncadd [#allocation9], 0
      %s77 = sshll.u32 %s9, 4
      %s78 = int_to_ptr.hbm [resolvable:$true] %s77
      %s79 = sshll.u32 [#allocation8], 4
      %s80 = int_to_ptr.vmem [resolvable:$true] %s79
      %85 = dma.hbm_to_vmem [thread:$0]  %s78, 16384, %s80, [#allocation9], 512, 512, 32
    $region41: #{tpu_custom_call.1} parent=1 // pred_fallthru
      _
    // Predicated region
    $region42: #{tpu_custom_call.1} parent=1 // pred_check
      _
    $region43: #{tpu_custom_call.1} parent=1 // pred_check_branch
      %87 = sbr.rel (0) target = $region45
    $region44: #{tpu_custom_call.1} parent=1 // pred_region
      _
    $region45: #{tpu_custom_call.1} parent=1 // pred_fallthru
      _
    // Predicated region
    $region46: #{tpu_custom_call.1} parent=1 // pred_check
      _
    $region47: #{tpu_custom_call.1} parent=1 // pred_check_branch
      %89 = sbr.rel (0) target = $region49
    $region48: #{tpu_custom_call.1} parent=1 // pred_region
      %91 = vsyncadd [#allocation9], 0
      %s92 = sshll.u32 %s11, 4
      %s93 = int_to_ptr.hbm [resolvable:$true] %s92
      %s94 = sshll.u32 [#allocation10], 4
      %s95 = int_to_ptr.vmem [resolvable:$true] %s94
      %100 = dma.hbm_to_vmem [thread:$0]  %s93, 2048, %s95, [#allocation9], 128, 128, 8
    $region49: #{tpu_custom_call.1} parent=1 // pred_fallthru
      _
    // Predicated region
    $region50: #{tpu_custom_call.1} parent=1 // pred_check
      _
    $region51: #{tpu_custom_call.1} parent=1 // pred_check_branch
      %102 = sbr.rel (0) target = $region53
    $region52: #{tpu_custom_call.1} parent=1 // pred_region
      _
    $region53: #{tpu_custom_call.1} parent=1 // pred_fallthru
      _
    // Predicated region
    $region54: #{tpu_custom_call.1} parent=1 // pred_check
      _
    $region55: #{tpu_custom_call.1} parent=1 // pred_check_branch
      %104 = sbr.rel (0) target = $region57
    $region56: #{tpu_custom_call.1} parent=1 // pred_region
      %106 = dma.done [#allocation3], 1024
    $region57: #{tpu_custom_call.1} parent=1 // pred_fallthru
      _
    // Predicated region
    $region58: #{tpu_custom_call.1} parent=1 // pred_check
      _
    $region59: #{tpu_custom_call.1} parent=1 // pred_check_branch
      %108 = sbr.rel (0) target = $region61
    $region60: #{tpu_custom_call.1} parent=1 // pred_region
      %110 = dma.done [#allocation6], 2048
    $region61: #{tpu_custom_call.1} parent=1 // pred_fallthru
      _
    // Predicated region
    $region62: #{tpu_custom_call.1} parent=1 // pred_check
      _
    $region63: #{tpu_custom_call.1} parent=1 // pred_check_branch
      %112 = sbr.rel (0) target = $region65
    $region64: #{tpu_custom_call.1} parent=1 // pred_region
      %114 = dma.done [#allocation6], 8192
    $region65: #{tpu_custom_call.1} parent=1 // pred_fallthru
      _
    // Predicated region
    $region66: #{tpu_custom_call.1} parent=1 // pred_check
      _
    $region67: #{tpu_custom_call.1} parent=1 // pred_check_branch
      %116 = sbr.rel (0) target = $region69
    $region68: #{tpu_custom_call.1} parent=1 // pred_region
      %118 = dma.done [#allocation9], 16384
    $region69: #{tpu_custom_call.1} parent=1 // pred_fallthru
      _
    // Predicated region
    $region70: #{tpu_custom_call.1} parent=1 // pred_check
      _
    $region71: #{tpu_custom_call.1} parent=1 // pred_check_branch
      %120 = sbr.rel (0) target = $region73
    $region72: #{tpu_custom_call.1} parent=1 // pred_region
      %122 = dma.done [#allocation9], 2048
    $region73: #{tpu_custom_call.1} parent=1 // pred_fallthru
      _
    %v123 = vld [vmem:[%s0] sm:$0xff]
    %v124 = vld [vmem:[%s1] sm:$0xff]
    %v125 = vld [vmem:[%s1 + $0x8] sm:$0xff]
    %v126 = vld [vmem:[%s1 + $0x10] sm:$0xff]
    %v127 = vld [vmem:[%s1 + $0x18] sm:$0xff]
    %v128 = vld [vmem:[%s1 + $0x20] sm:$0xff]
    %v129 = vld [vmem:[%s1 + $0x28] sm:$0xff]
    %v130 = vld [vmem:[%s1 + $0x30] sm:$0xff]
    %v131 = vld [vmem:[%s1 + $0x38] sm:$0xff]
    %v132 = vld [vmem:[%s2] sm:$0x1]
    %v134 = vperm.slane %v132, 0
    %vm136 = vcmask 523264
    %v138 = vsel %vm136, %v123, 0
    %140 = vmatpush.msra.mxu0 0.0
    %141 = vmatpush.msra.mxu0 0.0
    %142 = vmatpush.msra.mxu0 0.0
    %143 = vmatpush.msra.mxu0 0.0
    %144 = vmatpush.msra.mxu0 0.0
    %145 = vmatpush.msra.mxu0 0.0
    %146 = vmatpush.msra.mxu0 0.0
    %147 = vmatpush.msra.mxu0 0.0
    %148 = vmatpush.msra.mxu0 %v131
    %149 = vmatpush.msra.mxu0 %v130
    %150 = vmatpush.msra.mxu0 %v129
    %151 = vmatpush.msra.mxu0 %v128
    %152 = vmatpush.msra.mxu0 %v127
    %153 = vmatpush.msra.mxu0 %v126
    %154 = vmatpush.msra.mxu0 %v125
    %155 = vmatpush.msra.mxu0 %v124
    %156 = vmatmul.f32.gmra.mxu0 %v138
    %v157 = vpop.f32.mrf.mxu0
    %v158 = vadd.f32 %v134, %v157
    %159 = vdwg.mxu0
    %v160 = vtanh.pop %v158
    %v161 = vld [vmem:[#allocation2] sm:$0xff]
    %v162 = vld [vmem:[#allocation2 + $0x8] sm:$0xff]
    %v163 = vld [vmem:[#allocation2 + $0x10] sm:$0xff]
    %v164 = vld [vmem:[#allocation2 + $0x18] sm:$0xff]
    %v165 = vld [vmem:[#allocation2 + $0x20] sm:$0xff]
    %v166 = vld [vmem:[#allocation2 + $0x28] sm:$0xff]
    %v167 = vld [vmem:[#allocation2 + $0x30] sm:$0xff]
    %v168 = vld [vmem:[#allocation2 + $0x38] sm:$0xff]
    %v169 = vld [vmem:[%s4] sm:$0x1]
    %v171 = vperm.slane %v169, 0
    %173 = vmatpush.msra.mxu0 0.0
    %174 = vmatpush.msra.mxu0 0.0
    %175 = vmatpush.msra.mxu0 0.0
    %176 = vmatpush.msra.mxu0 0.0
    %177 = vmatpush.msra.mxu0 0.0
    %178 = vmatpush.msra.mxu0 0.0
    %179 = vmatpush.msra.mxu0 0.0
    %180 = vmatpush.msra.mxu0 0.0
    %181 = vmatpush.msra.mxu0 %v168
    %182 = vmatpush.msra.mxu0 %v167
    %183 = vmatpush.msra.mxu0 %v166
    %184 = vmatpush.msra.mxu0 %v165
    %185 = vmatpush.msra.mxu0 %v164
    %186 = vmatpush.msra.mxu0 %v163
    %187 = vmatpush.msra.mxu0 %v162
    %188 = vmatpush.msra.mxu0 %v161
    %189 = vmatmul.f32.gmra.mxu0 %v138
    %v190 = vpop.f32.mrf.mxu0
    %v191 = vadd.f32 %v171, %v190
    %192 = vdwg.mxu0
    %v193 = vtanh.pop %v191
    %v194 = vld [vmem:[%s5] sm:$0xff]
    %v195 = vld [vmem:[%s5 + $0x8] sm:$0xff]
    %v196 = vld [vmem:[%s5 + $0x10] sm:$0xff]
    %v197 = vld [vmem:[%s5 + $0x18] sm:$0xff]
    %v198 = vld [vmem:[%s5 + $0x20] sm:$0xff]
    %v199 = vld [vmem:[%s5 + $0x28] sm:$0xff]
    %v200 = vld [vmem:[%s5 + $0x30] sm:$0xff]
    %v201 = vld [vmem:[%s5 + $0x38] sm:$0xff]
    %v202 = vld [vmem:[#allocation5] sm:$0xff]
    %v203 = vld [vmem:[#allocation5 + $0x8] sm:$0xff]
    %v204 = vld [vmem:[#allocation5 + $0x10] sm:$0xff]
    %v205 = vld [vmem:[#allocation5 + $0x18] sm:$0xff]
    %v206 = vld [vmem:[#allocation5 + $0x20] sm:$0xff]
    %v207 = vld [vmem:[#allocation5 + $0x28] sm:$0xff]
    %v208 = vld [vmem:[#allocation5 + $0x30] sm:$0xff]
    %v209 = vld [vmem:[#allocation5 + $0x38] sm:$0xff]
    %v210 = vld [vmem:[#allocation5 + $0x40] sm:$0xff]
    %v211 = vld [vmem:[#allocation5 + $0x48] sm:$0xff]
    %v212 = vld [vmem:[#allocation5 + $0x50] sm:$0xff]
    %v213 = vld [vmem:[#allocation5 + $0x58] sm:$0xff]
    %v214 = vld [vmem:[#allocation5 + $0x60] sm:$0xff]
    %v215 = vld [vmem:[#allocation5 + $0x68] sm:$0xff]
    %v216 = vld [vmem:[#allocation5 + $0x70] sm:$0xff]
    %v217 = vld [vmem:[#allocation5 + $0x78] sm:$0xff]
    %v218 = vld [vmem:[%s7] sm:$0xf]
    %v220 = vperm.slane %v218, 0
    %v221 = vperm.slane %v218, 1
    %v222 = vperm.slane %v218, 2
    %v223 = vperm.slane %v218, 3
    %vm228 = vcmask 261120
    %v230 = vsel %vm228, %v194, 0
    %v233 = vsel %vm228, %v195, 0
    %v236 = vsel %vm228, %v196, 0
    %v239 = vsel %vm228, %v197, 0
    %v242 = vsel %vm228, %v198, 0
    %v245 = vsel %vm228, %v199, 0
    %v248 = vsel %vm228, %v200, 0
    %v251 = vsel %vm228, %v201, 0
    %253 = vmatpush.msra.mxu0 0.0
    %254 = vmatpush.msra.mxu0 0.0
    %255 = vmatpush.msra.mxu0 0.0
    %256 = vmatpush.msra.mxu0 0.0
    %257 = vmatpush.msra.mxu0 0.0
    %258 = vmatpush.msra.mxu0 0.0
    %259 = vmatpush.msra.mxu0 0.0
    %260 = vmatpush.msra.mxu0 0.0
    %261 = vmatpush.msra.mxu0 0.0
    %262 = vmatpush.msra.mxu0 0.0
    %263 = vmatpush.msra.mxu0 0.0
    %264 = vmatpush.msra.mxu0 0.0
    %265 = vmatpush.msra.mxu0 %v214
    %266 = vmatpush.msra.mxu0 %v210
    %267 = vmatpush.msra.mxu0 %v206
    %268 = vmatpush.msra.mxu0 %v202
    %269 = vmatmul.f32.gmra.mxu0 %v230
    %v270 = vpop.f32.mrf.mxu0
    %v271 = vadd.f32 %v220, %v270
    %272 = vmatmul.f32.gmra.mxu0 %v233
    %v273 = vpop.f32.mrf.mxu0
    %v274 = vadd.f32 %v220, %v273
    %275 = vmatmul.f32.gmra.mxu0 %v236
    %v276 = vpop.f32.mrf.mxu0
    %v277 = vadd.f32 %v220, %v276
    %278 = vmatmul.f32.gmra.mxu0 %v239
    %v279 = vpop.f32.mrf.mxu0
    %v280 = vadd.f32 %v220, %v279
    %281 = vmatmul.f32.gmra.mxu0 %v242
    %v282 = vpop.f32.mrf.mxu0
    %v283 = vadd.f32 %v220, %v282
    %284 = vmatmul.f32.gmra.mxu0 %v245
    %v285 = vpop.f32.mrf.mxu0
    %v286 = vadd.f32 %v220, %v285
    %287 = vmatmul.f32.gmra.mxu0 %v248
    %v288 = vpop.f32.mrf.mxu0
    %v289 = vadd.f32 %v220, %v288
    %290 = vmatmul.f32.gmra.mxu0 %v251
    %v291 = vpop.f32.mrf.mxu0
    %v292 = vadd.f32 %v220, %v291
    %293 = vdwg.mxu0
    %294 = vmatpush.msra.mxu0 0.0
    %295 = vmatpush.msra.mxu0 0.0
    %296 = vmatpush.msra.mxu0 0.0
    %297 = vmatpush.msra.mxu0 0.0
    %298 = vmatpush.msra.mxu0 0.0
    %299 = vmatpush.msra.mxu0 0.0
    %300 = vmatpush.msra.mxu0 0.0
    %301 = vmatpush.msra.mxu0 0.0
    %302 = vmatpush.msra.mxu0 0.0
    %303 = vmatpush.msra.mxu0 0.0
    %304 = vmatpush.msra.mxu0 0.0
    %305 = vmatpush.msra.mxu0 0.0
    %306 = vmatpush.msra.mxu0 %v215
    %307 = vmatpush.msra.mxu0 %v211
    %308 = vmatpush.msra.mxu0 %v207
    %309 = vmatpush.msra.mxu0 %v203
    %310 = vmatmul.f32.gmra.mxu0 %v230
    %v311 = vpop.f32.mrf.mxu0
    %v312 = vadd.f32 %v221, %v311
    %313 = vmatmul.f32.gmra.mxu0 %v233
    %v314 = vpop.f32.mrf.mxu0
    %v315 = vadd.f32 %v221, %v314
    %316 = vmatmul.f32.gmra.mxu0 %v236
    %v317 = vpop.f32.mrf.mxu0
    %v318 = vadd.f32 %v221, %v317
    %319 = vmatmul.f32.gmra.mxu0 %v239
    %v320 = vpop.f32.mrf.mxu0
    %v321 = vadd.f32 %v221, %v320
    %322 = vmatmul.f32.gmra.mxu0 %v242
    %v323 = vpop.f32.mrf.mxu0
    %v324 = vadd.f32 %v221, %v323
    %325 = vmatmul.f32.gmra.mxu0 %v245
    %v326 = vpop.f32.mrf.mxu0
    %v327 = vadd.f32 %v221, %v326
    %328 = vmatmul.f32.gmra.mxu0 %v248
    %v329 = vpop.f32.mrf.mxu0
    %v330 = vadd.f32 %v221, %v329
    %331 = vmatmul.f32.gmra.mxu0 %v251
    %v332 = vpop.f32.mrf.mxu0
    %v333 = vadd.f32 %v221, %v332
    %334 = vdwg.mxu0
    %335 = vmatpush.msra.mxu0 0.0
    %336 = vmatpush.msra.mxu0 0.0
    %337 = vmatpush.msra.mxu0 0.0
    %338 = vmatpush.msra.mxu0 0.0
    %339 = vmatpush.msra.mxu0 0.0
    %340 = vmatpush.msra.mxu0 0.0
    %341 = vmatpush.msra.mxu0 0.0
    %342 = vmatpush.msra.mxu0 0.0
    %343 = vmatpush.msra.mxu0 0.0
    %344 = vmatpush.msra.mxu0 0.0
    %345 = vmatpush.msra.mxu0 0.0
    %346 = vmatpush.msra.mxu0 0.0
    %347 = vmatpush.msra.mxu0 %v216
    %348 = vmatpush.msra.mxu0 %v212
    %349 = vmatpush.msra.mxu0 %v208
    %350 = vmatpush.msra.mxu0 %v204
    %351 = vmatmul.f32.gmra.mxu0 %v230
    %v352 = vpop.f32.mrf.mxu0
    %v353 = vadd.f32 %v222, %v352
    %354 = vmatmul.f32.gmra.mxu0 %v233
    %v355 = vpop.f32.mrf.mxu0
    %v356 = vadd.f32 %v222, %v355
    %357 = vmatmul.f32.gmra.mxu0 %v236
    %v358 = vpop.f32.mrf.mxu0
    %v359 = vadd.f32 %v222, %v358
    %360 = vmatmul.f32.gmra.mxu0 %v239
    %v361 = vpop.f32.mrf.mxu0
    %v362 = vadd.f32 %v222, %v361
    %363 = vmatmul.f32.gmra.mxu0 %v242
    %v364 = vpop.f32.mrf.mxu0
    %v365 = vadd.f32 %v222, %v364
    %366 = vmatmul.f32.gmra.mxu0 %v245
    %v367 = vpop.f32.mrf.mxu0
    %v368 = vadd.f32 %v222, %v367
    %369 = vmatmul.f32.gmra.mxu0 %v248
    %v370 = vpop.f32.mrf.mxu0
    %v371 = vadd.f32 %v222, %v370
    %372 = vmatmul.f32.gmra.mxu0 %v251
    %v373 = vpop.f32.mrf.mxu0
    %v374 = vadd.f32 %v222, %v373
    %375 = vdwg.mxu0
    %376 = vmatpush.msra.mxu0 0.0
    %377 = vmatpush.msra.mxu0 0.0
    %378 = vmatpush.msra.mxu0 0.0
    %379 = vmatpush.msra.mxu0 0.0
    %380 = vmatpush.msra.mxu0 0.0
    %381 = vmatpush.msra.mxu0 0.0
    %382 = vmatpush.msra.mxu0 0.0
    %383 = vmatpush.msra.mxu0 0.0
    %384 = vmatpush.msra.mxu0 0.0
    %385 = vmatpush.msra.mxu0 0.0
    %386 = vmatpush.msra.mxu0 0.0
    %387 = vmatpush.msra.mxu0 0.0
    %388 = vmatpush.msra.mxu0 %v217
    %389 = vmatpush.msra.mxu0 %v213
    %390 = vmatpush.msra.mxu0 %v209
    %391 = vmatpush.msra.mxu0 %v205
    %392 = vmatmul.f32.gmra.mxu0 %v230
    %v393 = vpop.f32.mrf.mxu0
    %v394 = vadd.f32 %v223, %v393
    %395 = vmatmul.f32.gmra.mxu0 %v233
    %v396 = vpop.f32.mrf.mxu0
    %v397 = vadd.f32 %v223, %v396
    %398 = vmatmul.f32.gmra.mxu0 %v236
    %v399 = vpop.f32.mrf.mxu0
    %v400 = vadd.f32 %v223, %v399
    %401 = vmatmul.f32.gmra.mxu0 %v239
    %v402 = vpop.f32.mrf.mxu0
    %v403 = vadd.f32 %v223, %v402
    %404 = vmatmul.f32.gmra.mxu0 %v242
    %v405 = vpop.f32.mrf.mxu0
    %v406 = vadd.f32 %v223, %v405
    %407 = vmatmul.f32.gmra.mxu0 %v245
    %v408 = vpop.f32.mrf.mxu0
    %v409 = vadd.f32 %v223, %v408
    %410 = vmatmul.f32.gmra.mxu0 %v248
    %v411 = vpop.f32.mrf.mxu0
    %v412 = vadd.f32 %v223, %v411
    %413 = vmatmul.f32.gmra.mxu0 %v251
    %v414 = vpop.f32.mrf.mxu0
    %v415 = vadd.f32 %v223, %v414
    %416 = vdwg.mxu0
    %v417 = vld [vmem:[#allocation7] sm:$0xff]
    %v418 = vld [vmem:[#allocation7 + $0x8] sm:$0xff]
    %v419 = vld [vmem:[#allocation7 + $0x10] sm:$0xff]
    %v420 = vld [vmem:[#allocation7 + $0x18] sm:$0xff]
    %v421 = vld [vmem:[#allocation7 + $0x20] sm:$0xff]
    %v422 = vld [vmem:[#allocation7 + $0x28] sm:$0xff]
    %v423 = vld [vmem:[#allocation7 + $0x30] sm:$0xff]
    %v424 = vld [vmem:[#allocation7 + $0x38] sm:$0xff]
    %v425 = vld [vmem:[#allocation7 + $0x40] sm:$0xff]
    %v426 = vld [vmem:[#allocation7 + $0x48] sm:$0xff]
    %v427 = vld [vmem:[#allocation7 + $0x50] sm:$0xff]
    %v428 = vld [vmem:[#allocation7 + $0x58] sm:$0xff]
    %v429 = vld [vmem:[#allocation7 + $0x60] sm:$0xff]
    %v430 = vld [vmem:[#allocation7 + $0x68] sm:$0xff]
    %v431 = vld [vmem:[#allocation7 + $0x70] sm:$0xff]
    %v432 = vld [vmem:[#allocation7 + $0x78] sm:$0xff]
    %v433 = vld [vmem:[#allocation7 + $0x80] sm:$0xff]
    %v434 = vld [vmem:[#allocation7 + $0x88] sm:$0xff]
    %v435 = vld [vmem:[#allocation7 + $0x90] sm:$0xff]
    %v436 = vld [vmem:[#allocation7 + $0x98] sm:$0xff]
    %v437 = vld [vmem:[#allocation7 + $0xa0] sm:$0xff]
    %v438 = vld [vmem:[#allocation7 + $0xa8] sm:$0xff]
    %v439 = vld [vmem:[#allocation7 + $0xb0] sm:$0xff]
    %v440 = vld [vmem:[#allocation7 + $0xb8] sm:$0xff]
    %v441 = vld [vmem:[#allocation7 + $0xc0] sm:$0xff]
    %v442 = vld [vmem:[#allocation7 + $0xc8] sm:$0xff]
    %v443 = vld [vmem:[#allocation7 + $0xd0] sm:$0xff]
    %v444 = vld [vmem:[#allocation7 + $0xd8] sm:$0xff]
    %v445 = vld [vmem:[#allocation7 + $0xe0] sm:$0xff]
    %v446 = vld [vmem:[#allocation7 + $0xe8] sm:$0xff]
    %v447 = vld [vmem:[#allocation7 + $0xf0] sm:$0xff]
    %v448 = vld [vmem:[#allocation7 + $0xf8] sm:$0xff]
    %v449 = vld [vmem:[#allocation7 + $0x100] sm:$0xff]
    %v450 = vld [vmem:[#allocation7 + $0x108] sm:$0xff]
    %v451 = vld [vmem:[#allocation7 + $0x110] sm:$0xff]
    %v452 = vld [vmem:[#allocation7 + $0x118] sm:$0xff]
    %v453 = vld [vmem:[#allocation7 + $0x120] sm:$0xff]
    %v454 = vld [vmem:[#allocation7 + $0x128] sm:$0xff]
    %v455 = vld [vmem:[#allocation7 + $0x130] sm:$0xff]
    %v456 = vld [vmem:[#allocation7 + $0x138] sm:$0xff]
    %v457 = vld [vmem:[#allocation7 + $0x140] sm:$0xff]
    %v458 = vld [vmem:[#allocation7 + $0x148] sm:$0xff]
    %v459 = vld [vmem:[#allocation7 + $0x150] sm:$0xff]
    %v460 = vld [vmem:[#allocation7 + $0x158] sm:$0xff]
    %v461 = vld [vmem:[#allocation7 + $0x160] sm:$0xff]
    %v462 = vld [vmem:[#allocation7 + $0x168] sm:$0xff]
    %v463 = vld [vmem:[#allocation7 + $0x170] sm:$0xff]
    %v464 = vld [vmem:[#allocation7 + $0x178] sm:$0xff]
    %v465 = vld [vmem:[#allocation7 + $0x180] sm:$0xff]
    %v466 = vld [vmem:[#allocation7 + $0x188] sm:$0xff]
    %v467 = vld [vmem:[#allocation7 + $0x190] sm:$0xff]
    %v468 = vld [vmem:[#allocation7 + $0x198] sm:$0xff]
    %v469 = vld [vmem:[#allocation7 + $0x1a0] sm:$0xff]
    %v470 = vld [vmem:[#allocation7 + $0x1a8] sm:$0xff]
    %v471 = vld [vmem:[#allocation7 + $0x1b0] sm:$0xff]
    %v472 = vld [vmem:[#allocation7 + $0x1b8] sm:$0xff]
    %v473 = vld [vmem:[#allocation7 + $0x1c0] sm:$0xff]
    %v474 = vld [vmem:[#allocation7 + $0x1c8] sm:$0xff]
    %v475 = vld [vmem:[#allocation7 + $0x1d0] sm:$0xff]
    %v476 = vld [vmem:[#allocation7 + $0x1d8] sm:$0xff]
    %v477 = vld [vmem:[#allocation7 + $0x1e0] sm:$0xff]
    %v478 = vld [vmem:[#allocation7 + $0x1e8] sm:$0xff]
    %v479 = vld [vmem:[#allocation7 + $0x1f0] sm:$0xff]
    %v480 = vld [vmem:[#allocation7 + $0x1f8] sm:$0xff]
    %v481 = vld [vmem:[#allocation8] sm:$0xff]
    %v482 = vld [vmem:[#allocation8 + $0x8] sm:$0xff]
    %v483 = vld [vmem:[#allocation8 + $0x10] sm:$0xff]
    %v484 = vld [vmem:[#allocation8 + $0x18] sm:$0xff]
    %v485 = vld [vmem:[#allocation8 + $0x20] sm:$0xff]
    %v486 = vld [vmem:[#allocation8 + $0x28] sm:$0xff]
    %v487 = vld [vmem:[#allocation8 + $0x30] sm:$0xff]
    %v488 = vld [vmem:[#allocation8 + $0x38] sm:$0xff]
    %v489 = vld [vmem:[#allocation8 + $0x40] sm:$0xff]
    %v490 = vld [vmem:[#allocation8 + $0x48] sm:$0xff]
    %v491 = vld [vmem:[#allocation8 + $0x50] sm:$0xff]
    %v492 = vld [vmem:[#allocation8 + $0x58] sm:$0xff]
    %v493 = vld [vmem:[#allocation8 + $0x60] sm:$0xff]
    %v494 = vld [vmem:[#allocation8 + $0x68] sm:$0xff]
    %v495 = vld [vmem:[#allocation8 + $0x70] sm:$0xff]
    %v496 = vld [vmem:[#allocation8 + $0x78] sm:$0xff]
    %v497 = vld [vmem:[#allocation8 + $0x80] sm:$0xff]
    %v498 = vld [vmem:[#allocation8 + $0x88] sm:$0xff]
    %v499 = vld [vmem:[#allocation8 + $0x90] sm:$0xff]
    %v500 = vld [vmem:[#allocation8 + $0x98] sm:$0xff]
    %v501 = vld [vmem:[#allocation8 + $0xa0] sm:$0xff]
    %v502 = vld [vmem:[#allocation8 + $0xa8] sm:$0xff]
    %v503 = vld [vmem:[#allocation8 + $0xb0] sm:$0xff]
    %v504 = vld [vmem:[#allocation8 + $0xb8] sm:$0xff]
    %v505 = vld [vmem:[#allocation8 + $0xc0] sm:$0xff]
    %v506 = vld [vmem:[#allocation8 + $0xc8] sm:$0xff]
    %v507 = vld [vmem:[#allocation8 + $0xd0] sm:$0xff]
    %v508 = vld [vmem:[#allocation8 + $0xd8] sm:$0xff]
    %v509 = vld [vmem:[#allocation8 + $0xe0] sm:$0xff]
    %v510 = vld [vmem:[#allocation8 + $0xe8] sm:$0xff]
    %v511 = vld [vmem:[#allocation8 + $0xf0] sm:$0xff]
    %v512 = vld [vmem:[#allocation8 + $0xf8] sm:$0xff]
    %v513 = vld [vmem:[#allocation8 + $0x100] sm:$0xff]
    %v514 = vld [vmem:[#allocation8 + $0x108] sm:$0xff]
    %v515 = vld [vmem:[#allocation8 + $0x110] sm:$0xff]
    %v516 = vld [vmem:[#allocation8 + $0x118] sm:$0xff]
    %v517 = vld [vmem:[#allocation8 + $0x120] sm:$0xff]
    %v518 = vld [vmem:[#allocation8 + $0x128] sm:$0xff]
    %v519 = vld [vmem:[#allocation8 + $0x130] sm:$0xff]
    %v520 = vld [vmem:[#allocation8 + $0x138] sm:$0xff]
    %v521 = vld [vmem:[#allocation8 + $0x140] sm:$0xff]
    %v522 = vld [vmem:[#allocation8 + $0x148] sm:$0xff]
    %v523 = vld [vmem:[#allocation8 + $0x150] sm:$0xff]
    %v524 = vld [vmem:[#allocation8 + $0x158] sm:$0xff]
    %v525 = vld [vmem:[#allocation8 + $0x160] sm:$0xff]
    %v526 = vld [vmem:[#allocation8 + $0x168] sm:$0xff]
    %v527 = vld [vmem:[#allocation8 + $0x170] sm:$0xff]
    %v528 = vld [vmem:[#allocation8 + $0x178] sm:$0xff]
    %v529 = vld [vmem:[#allocation8 + $0x180] sm:$0xff]
    %v530 = vld [vmem:[#allocation8 + $0x188] sm:$0xff]
    %v531 = vld [vmem:[#allocation8 + $0x190] sm:$0xff]
    %v532 = vld [vmem:[#allocation8 + $0x198] sm:$0xff]
    %v533 = vld [vmem:[#allocation8 + $0x1a0] sm:$0xff]
    %v534 = vld [vmem:[#allocation8 + $0x1a8] sm:$0xff]
    %v535 = vld [vmem:[#allocation8 + $0x1b0] sm:$0xff]
    %v536 = vld [vmem:[#allocation8 + $0x1b8] sm:$0xff]
    %v537 = vld [vmem:[#allocation8 + $0x1c0] sm:$0xff]
    %v538 = vld [vmem:[#allocation8 + $0x1c8] sm:$0xff]
    %v539 = vld [vmem:[#allocation8 + $0x1d0] sm:$0xff]
    %v540 = vld [vmem:[#allocation8 + $0x1d8] sm:$0xff]
    %v541 = vld [vmem:[#allocation8 + $0x1e0] sm:$0xff]
    %v542 = vld [vmem:[#allocation8 + $0x1e8] sm:$0xff]
    %v543 = vld [vmem:[#allocation8 + $0x1f0] sm:$0xff]
    %v544 = vld [vmem:[#allocation8 + $0x1f8] sm:$0xff]
    %v545 = vld [vmem:[#allocation8 + $0x200] sm:$0xff]
    %v546 = vld [vmem:[#allocation8 + $0x208] sm:$0xff]
    %v547 = vld [vmem:[#allocation8 + $0x210] sm:$0xff]
    %v548 = vld [vmem:[#allocation8 + $0x218] sm:$0xff]
    %v549 = vld [vmem:[#allocation8 + $0x220] sm:$0xff]
    %v550 = vld [vmem:[#allocation8 + $0x228] sm:$0xff]
    %v551 = vld [vmem:[#allocation8 + $0x230] sm:$0xff]
    %v552 = vld [vmem:[#allocation8 + $0x238] sm:$0xff]
    %v553 = vld [vmem:[#allocation8 + $0x240] sm:$0xff]
    %v554 = vld [vmem:[#allocation8 + $0x248] sm:$0xff]
    %v555 = vld [vmem:[#allocation8 + $0x250] sm:$0xff]
    %v556 = vld [vmem:[#allocation8 + $0x258] sm:$0xff]
    %v557 = vld [vmem:[#allocation8 + $0x260] sm:$0xff]
    %v558 = vld [vmem:[#allocation8 + $0x268] sm:$0xff]
    %v559 = vld [vmem:[#allocation8 + $0x270] sm:$0xff]
    %v560 = vld [vmem:[#allocation8 + $0x278] sm:$0xff]
    %v561 = vld [vmem:[#allocation8 + $0x280] sm:$0xff]
    %v562 = vld [vmem:[#allocation8 + $0x288] sm:$0xff]
    %v563 = vld [vmem:[#allocation8 + $0x290] sm:$0xff]
    %v564 = vld [vmem:[#allocation8 + $0x298] sm:$0xff]
    %v565 = vld [vmem:[#allocation8 + $0x2a0] sm:$0xff]
    %v566 = vld [vmem:[#allocation8 + $0x2a8] sm:$0xff]
    %v567 = vld [vmem:[#allocation8 + $0x2b0] sm:$0xff]
    %v568 = vld [vmem:[#allocation8 + $0x2b8] sm:$0xff]
    %v569 = vld [vmem:[#allocation8 + $0x2c0] sm:$0xff]
    %v570 = vld [vmem:[#allocation8 + $0x2c8] sm:$0xff]
    %v571 = vld [vmem:[#allocation8 + $0x2d0] sm:$0xff]
    %v572 = vld [vmem:[#allocation8 + $0x2d8] sm:$0xff]
    %v573 = vld [vmem:[#allocation8 + $0x2e0] sm:$0xff]
    %v574 = vld [vmem:[#allocation8 + $0x2e8] sm:$0xff]
    %v575 = vld [vmem:[#allocation8 + $0x2f0] sm:$0xff]
    %v576 = vld [vmem:[#allocation8 + $0x2f8] sm:$0xff]
    %v577 = vld [vmem:[#allocation8 + $0x300] sm:$0xff]
    %v578 = vld [vmem:[#allocation8 + $0x308] sm:$0xff]
    %v579 = vld [vmem:[#allocation8 + $0x310] sm:$0xff]
    %v580 = vld [vmem:[#allocation8 + $0x318] sm:$0xff]
    %v581 = vld [vmem:[#allocation8 + $0x320] sm:$0xff]
    %v582 = vld [vmem:[#allocation8 + $0x328] sm:$0xff]
    %v583 = vld [vmem:[#allocation8 + $0x330] sm:$0xff]
    %v584 = vld [vmem:[#allocation8 + $0x338] sm:$0xff]
    %v585 = vld [vmem:[#allocation8 + $0x340] sm:$0xff]
    %v586 = vld [vmem:[#allocation8 + $0x348] sm:$0xff]
    %v587 = vld [vmem:[#allocation8 + $0x350] sm:$0xff]
    %v588 = vld [vmem:[#allocation8 + $0x358] sm:$0xff]
    %v589 = vld [vmem:[#allocation8 + $0x360] sm:$0xff]
    %v590 = vld [vmem:[#allocation8 + $0x368] sm:$0xff]
    %v591 = vld [vmem:[#allocation8 + $0x370] sm:$0xff]
    %v592 = vld [vmem:[#allocation8 + $0x378] sm:$0xff]
    %v593 = vld [vmem:[#allocation8 + $0x380] sm:$0xff]
    %v594 = vld [vmem:[#allocation8 + $0x388] sm:$0xff]
    %v595 = vld [vmem:[#allocation8 + $0x390] sm:$0xff]
    %v596 = vld [vmem:[#allocation8 + $0x398] sm:$0xff]
    %v597 = vld [vmem:[#allocation8 + $0x3a0] sm:$0xff]
    %v598 = vld [vmem:[#allocation8 + $0x3a8] sm:$0xff]
    %v599 = vld [vmem:[#allocation8 + $0x3b0] sm:$0xff]
    %v600 = vld [vmem:[#allocation8 + $0x3b8] sm:$0xff]
    %v601 = vld [vmem:[#allocation8 + $0x3c0] sm:$0xff]
    %v602 = vld [vmem:[#allocation8 + $0x3c8] sm:$0xff]
    %v603 = vld [vmem:[#allocation8 + $0x3d0] sm:$0xff]
    %v604 = vld [vmem:[#allocation8 + $0x3d8] sm:$0xff]
    %v605 = vld [vmem:[#allocation8 + $0x3e0] sm:$0xff]
    %v606 = vld [vmem:[#allocation8 + $0x3e8] sm:$0xff]
    %v607 = vld [vmem:[#allocation8 + $0x3f0] sm:$0xff]
    %v608 = vld [vmem:[#allocation8 + $0x3f8] sm:$0xff]
    %v609 = vld [vmem:[%s10] sm:$0xf]
    %610 = vmatpush.msra.mxu0 %v477
    %611 = vmatpush.msra.mxu0 %v473
    %612 = vmatpush.msra.mxu0 %v469
    %613 = vmatpush.msra.mxu0 %v465
    %614 = vmatpush.msra.mxu0 %v461
    %615 = vmatpush.msra.mxu0 %v457
    %616 = vmatpush.msra.mxu0 %v453
    %617 = vmatpush.msra.mxu0 %v449
    %618 = vmatpush.msra.mxu0 %v445
    %619 = vmatpush.msra.mxu0 %v441
    %620 = vmatpush.msra.mxu0 %v437
    %621 = vmatpush.msra.mxu0 %v433
    %622 = vmatpush.msra.mxu0 %v429
    %623 = vmatpush.msra.mxu0 %v425
    %624 = vmatpush.msra.mxu0 %v421
    %625 = vmatpush.msra.mxu0 %v417
    %626 = vmatmul.f32.gmra.mxu0 %v160
    %v627 = vpop.f32.mrf.mxu0
    %v628 = vadd.f32 0.0, %v627
    %629 = vdwg.mxu0
    %630 = vmatpush.msra.mxu0 %v478
    %631 = vmatpush.msra.mxu0 %v474
    %632 = vmatpush.msra.mxu0 %v470
    %633 = vmatpush.msra.mxu0 %v466
    %634 = vmatpush.msra.mxu0 %v462
    %635 = vmatpush.msra.mxu0 %v458
    %636 = vmatpush.msra.mxu0 %v454
    %637 = vmatpush.msra.mxu0 %v450
    %638 = vmatpush.msra.mxu0 %v446
    %639 = vmatpush.msra.mxu0 %v442
    %640 = vmatpush.msra.mxu0 %v438
    %641 = vmatpush.msra.mxu0 %v434
    %642 = vmatpush.msra.mxu0 %v430
    %643 = vmatpush.msra.mxu0 %v426
    %644 = vmatpush.msra.mxu0 %v422
    %645 = vmatpush.msra.mxu0 %v418
    %646 = vmatmul.f32.gmra.mxu0 %v160
    %v647 = vpop.f32.mrf.mxu0
    %v648 = vadd.f32 0.0, %v647
    %649 = vdwg.mxu0
    %650 = vmatpush.msra.mxu0 %v479
    %651 = vmatpush.msra.mxu0 %v475
    %652 = vmatpush.msra.mxu0 %v471
    %653 = vmatpush.msra.mxu0 %v467
    %654 = vmatpush.msra.mxu0 %v463
    %655 = vmatpush.msra.mxu0 %v459
    %656 = vmatpush.msra.mxu0 %v455
    %657 = vmatpush.msra.mxu0 %v451
    %658 = vmatpush.msra.mxu0 %v447
    %659 = vmatpush.msra.mxu0 %v443
    %660 = vmatpush.msra.mxu0 %v439
    %661 = vmatpush.msra.mxu0 %v435
    %662 = vmatpush.msra.mxu0 %v431
    %663 = vmatpush.msra.mxu0 %v427
    %664 = vmatpush.msra.mxu0 %v423
    %665 = vmatpush.msra.mxu0 %v419
    %666 = vmatmul.f32.gmra.mxu0 %v160
    %v667 = vpop.f32.mrf.mxu0
    %v668 = vadd.f32 0.0, %v667
    %669 = vdwg.mxu0
    %670 = vmatpush.msra.mxu0 %v480
    %671 = vmatpush.msra.mxu0 %v476
    %672 = vmatpush.msra.mxu0 %v472
    %673 = vmatpush.msra.mxu0 %v468
    %674 = vmatpush.msra.mxu0 %v464
    %675 = vmatpush.msra.mxu0 %v460
    %676 = vmatpush.msra.mxu0 %v456
    %677 = vmatpush.msra.mxu0 %v452
    %678 = vmatpush.msra.mxu0 %v448
    %679 = vmatpush.msra.mxu0 %v444
    %680 = vmatpush.msra.mxu0 %v440
    %681 = vmatpush.msra.mxu0 %v436
    %682 = vmatpush.msra.mxu0 %v432
    %683 = vmatpush.msra.mxu0 %v428
    %684 = vmatpush.msra.mxu0 %v424
    %685 = vmatpush.msra.mxu0 %v420
    %686 = vmatmul.f32.gmra.mxu0 %v160
    %v687 = vpop.f32.mrf.mxu0
    %v688 = vadd.f32 0.0, %v687
    %689 = vdwg.mxu0
    %v690 = vadd.f32 %v271, %v628
    %v691 = vadd.f32 %v312, %v648
    %v692 = vadd.f32 %v353, %v668
    %v693 = vadd.f32 %v394, %v688
    %v694 = vxor.u32 %v690, 2147483648
    %v695 = vmul.f32 %v694, 1.442695
    %v696 = vpow.pop %v695
    %v697 = vadd.f32 %v696, 1.0
    %v698 = vrcp.pop %v697
    %v699 = vmul.f32 %v697, %v698
    %v700 = vsub.f32 1.0, %v699
    %v701 = vmul.f32 %v698, %v700
    %v702 = vadd.f32 %v698, %v701
    %vm703 = vweird.f32 %v697
    %vm704 = vweird.f32 %v698
    %vm705 = vmor %vm703, %vm704
    %v706 = vsel %vm705, %v698, %v702
    %v707 = vand.u32 2147483647, %v697
    %vm708 = vcmp.eq.f32.partialorder %v707, 8.507059e+37
    %v709 = vand.u32 %v697, 2147483648
    %v710 = vor.u32 1.1754944e-38, %v709
    %v711 = vsel %vm708, %v710, %v706
    %v712 = vmul.f32 1.0, %v711
    %v713 = vxor.u32 %v691, 2147483648
    %v714 = vmul.f32 %v713, 1.442695
    %v715 = vpow.pop %v714
    %v716 = vadd.f32 %v715, 1.0
    %v717 = vrcp.pop %v716
    %v718 = vmul.f32 %v716, %v717
    %v719 = vsub.f32 1.0, %v718
    %v720 = vmul.f32 %v717, %v719
    %v721 = vadd.f32 %v717, %v720
    %vm722 = vweird.f32 %v716
    %vm723 = vweird.f32 %v717
    %vm724 = vmor %vm722, %vm723
    %v725 = vsel %vm724, %v717, %v721
    %v726 = vand.u32 2147483647, %v716
    %vm727 = vcmp.eq.f32.partialorder %v726, 8.507059e+37
    %v728 = vand.u32 %v716, 2147483648
    %v729 = vor.u32 1.1754944e-38, %v728
    %v730 = vsel %vm727, %v729, %v725
    %v731 = vmul.f32 1.0, %v730
    %v732 = vtanh.pop %v692
    %v733 = vxor.u32 %v693, 2147483648
    %v734 = vmul.f32 %v733, 1.442695
    %v735 = vpow.pop %v734
    %v736 = vadd.f32 %v735, 1.0
    %v737 = vrcp.pop %v736
    %v738 = vmul.f32 %v736, %v737
    %v739 = vsub.f32 1.0, %v738
    %v740 = vmul.f32 %v737, %v739
    %v741 = vadd.f32 %v737, %v740
    %vm742 = vweird.f32 %v736
    %vm743 = vweird.f32 %v737
    %vm744 = vmor %vm742, %vm743
    %v745 = vsel %vm744, %v737, %v741
    %v746 = vand.u32 2147483647, %v736
    %vm747 = vcmp.eq.f32.partialorder %v746, 8.507059e+37
    %v748 = vand.u32 %v736, 2147483648
    %v749 = vor.u32 1.1754944e-38, %v748
    %v750 = vsel %vm747, %v749, %v745
    %v751 = vmul.f32 1.0, %v750
    %v752 = vmul.f32 %v731, %v193
    %v753 = vmul.f32 %v712, %v732
    %v754 = vadd.f32 %v752, %v753
    %v755 = vtanh.pop %v754
    %v756 = vmul.f32 %v751, %v755
    %v758 = vperm.slane %v609, 0
    %v759 = vperm.slane %v609, 1
    %v760 = vperm.slane %v609, 2
    %v761 = vperm.slane %v609, 3
    %766 = vmatpush.msra.mxu0 %v541
    %767 = vmatpush.msra.mxu0 %v537
    %768 = vmatpush.msra.mxu0 %v533
    %769 = vmatpush.msra.mxu0 %v529
    %770 = vmatpush.msra.mxu0 %v525
    %771 = vmatpush.msra.mxu0 %v521
    %772 = vmatpush.msra.mxu0 %v517
    %773 = vmatpush.msra.mxu0 %v513
    %774 = vmatpush.msra.mxu0 %v509
    %775 = vmatpush.msra.mxu0 %v505
    %776 = vmatpush.msra.mxu0 %v501
    %777 = vmatpush.msra.mxu0 %v497
    %778 = vmatpush.msra.mxu0 %v493
    %779 = vmatpush.msra.mxu0 %v489
    %780 = vmatpush.msra.mxu0 %v485
    %781 = vmatpush.msra.mxu0 %v481
    %782 = vmatmul.f32.gmra.mxu0 %v756
    %v783 = vpop.f32.mrf.mxu0
    %v784 = vadd.f32 %v758, %v783
    %785 = vdwg.mxu0
    %786 = vmatpush.msra.mxu0 %v605
    %787 = vmatpush.msra.mxu0 %v601
    %788 = vmatpush.msra.mxu0 %v597
    %789 = vmatpush.msra.mxu0 %v593
    %790 = vmatpush.msra.mxu0 %v589
    %791 = vmatpush.msra.mxu0 %v585
    %792 = vmatpush.msra.mxu0 %v581
    %793 = vmatpush.msra.mxu0 %v577
    %794 = vmatpush.msra.mxu0 %v573
    %795 = vmatpush.msra.mxu0 %v569
    %796 = vmatpush.msra.mxu0 %v565
    %797 = vmatpush.msra.mxu0 %v561
    %798 = vmatpush.msra.mxu0 %v557
    %799 = vmatpush.msra.mxu0 %v553
    %800 = vmatpush.msra.mxu0 %v549
    %801 = vmatpush.msra.mxu0 %v545
    %802 = vmatmul.f32.gmra.mxu0 %v160
    %v803 = vpop.f32.mrf.mxu0
    %v804 = vadd.f32 %v784, %v803
    %805 = vdwg.mxu0
    %806 = vmatpush.msra.mxu0 %v542
    %807 = vmatpush.msra.mxu0 %v538
    %808 = vmatpush.msra.mxu0 %v534
    %809 = vmatpush.msra.mxu0 %v530
    %810 = vmatpush.msra.mxu0 %v526
    %811 = vmatpush.msra.mxu0 %v522
    %812 = vmatpush.msra.mxu0 %v518
    %813 = vmatpush.msra.mxu0 %v514
    %814 = vmatpush.msra.mxu0 %v510
    %815 = vmatpush.msra.mxu0 %v506
    %816 = vmatpush.msra.mxu0 %v502
    %817 = vmatpush.msra.mxu0 %v498
    %818 = vmatpush.msra.mxu0 %v494
    %819 = vmatpush.msra.mxu0 %v490
    %820 = vmatpush.msra.mxu0 %v486
    %821 = vmatpush.msra.mxu0 %v482
    %822 = vmatmul.f32.gmra.mxu0 %v756
    %v823 = vpop.f32.mrf.mxu0
    %v824 = vadd.f32 %v759, %v823
    %825 = vdwg.mxu0
    %826 = vmatpush.msra.mxu0 %v606
    %827 = vmatpush.msra.mxu0 %v602
    %828 = vmatpush.msra.mxu0 %v598
    %829 = vmatpush.msra.mxu0 %v594
    %830 = vmatpush.msra.mxu0 %v590
    %831 = vmatpush.msra.mxu0 %v586
    %832 = vmatpush.msra.mxu0 %v582
    %833 = vmatpush.msra.mxu0 %v578
    %834 = vmatpush.msra.mxu0 %v574
    %835 = vmatpush.msra.mxu0 %v570
    %836 = vmatpush.msra.mxu0 %v566
    %837 = vmatpush.msra.mxu0 %v562
    %838 = vmatpush.msra.mxu0 %v558
    %839 = vmatpush.msra.mxu0 %v554
    %840 = vmatpush.msra.mxu0 %v550
    %841 = vmatpush.msra.mxu0 %v546
    %842 = vmatmul.f32.gmra.mxu0 %v160
    %v843 = vpop.f32.mrf.mxu0
    %v844 = vadd.f32 %v824, %v843
    %845 = vdwg.mxu0
    %846 = vmatpush.msra.mxu0 %v543
    %847 = vmatpush.msra.mxu0 %v539
    %848 = vmatpush.msra.mxu0 %v535
    %849 = vmatpush.msra.mxu0 %v531
    %850 = vmatpush.msra.mxu0 %v527
    %851 = vmatpush.msra.mxu0 %v523
    %852 = vmatpush.msra.mxu0 %v519
    %853 = vmatpush.msra.mxu0 %v515
    %854 = vmatpush.msra.mxu0 %v511
    %855 = vmatpush.msra.mxu0 %v507
    %856 = vmatpush.msra.mxu0 %v503
    %857 = vmatpush.msra.mxu0 %v499
    %858 = vmatpush.msra.mxu0 %v495
    %859 = vmatpush.msra.mxu0 %v491
    %860 = vmatpush.msra.mxu0 %v487
    %861 = vmatpush.msra.mxu0 %v483
    %862 = vmatmul.f32.gmra.mxu0 %v756
    %v863 = vpop.f32.mrf.mxu0
    %v864 = vadd.f32 %v760, %v863
    %865 = vdwg.mxu0
    %866 = vmatpush.msra.mxu0 %v607
    %867 = vmatpush.msra.mxu0 %v603
    %868 = vmatpush.msra.mxu0 %v599
    %869 = vmatpush.msra.mxu0 %v595
    %870 = vmatpush.msra.mxu0 %v591
    %871 = vmatpush.msra.mxu0 %v587
    %872 = vmatpush.msra.mxu0 %v583
    %873 = vmatpush.msra.mxu0 %v579
    %874 = vmatpush.msra.mxu0 %v575
    %875 = vmatpush.msra.mxu0 %v571
    %876 = vmatpush.msra.mxu0 %v567
    %877 = vmatpush.msra.mxu0 %v563
    %878 = vmatpush.msra.mxu0 %v559
    %879 = vmatpush.msra.mxu0 %v555
    %880 = vmatpush.msra.mxu0 %v551
    %881 = vmatpush.msra.mxu0 %v547
    %882 = vmatmul.f32.gmra.mxu0 %v160
    %v883 = vpop.f32.mrf.mxu0
    %v884 = vadd.f32 %v864, %v883
    %885 = vdwg.mxu0
    %886 = vmatpush.msra.mxu0 %v544
    %887 = vmatpush.msra.mxu0 %v540
    %888 = vmatpush.msra.mxu0 %v536
    %889 = vmatpush.msra.mxu0 %v532
    %890 = vmatpush.msra.mxu0 %v528
    %891 = vmatpush.msra.mxu0 %v524
    %892 = vmatpush.msra.mxu0 %v520
    %893 = vmatpush.msra.mxu0 %v516
    %894 = vmatpush.msra.mxu0 %v512
    %895 = vmatpush.msra.mxu0 %v508
    %896 = vmatpush.msra.mxu0 %v504
    %897 = vmatpush.msra.mxu0 %v500
    %898 = vmatpush.msra.mxu0 %v496
    %899 = vmatpush.msra.mxu0 %v492
    %900 = vmatpush.msra.mxu0 %v488
    %901 = vmatpush.msra.mxu0 %v484
    %902 = vmatmul.f32.gmra.mxu0 %v756
    %v903 = vpop.f32.mrf.mxu0
    %v904 = vadd.f32 %v761, %v903
    %905 = vdwg.mxu0
    %906 = vmatpush.msra.mxu0 %v608
    %907 = vmatpush.msra.mxu0 %v604
    %908 = vmatpush.msra.mxu0 %v600
    %909 = vmatpush.msra.mxu0 %v596
    %910 = vmatpush.msra.mxu0 %v592
    %911 = vmatpush.msra.mxu0 %v588
    %912 = vmatpush.msra.mxu0 %v584
    %913 = vmatpush.msra.mxu0 %v580
    %914 = vmatpush.msra.mxu0 %v576
    %915 = vmatpush.msra.mxu0 %v572
    %916 = vmatpush.msra.mxu0 %v568
    %917 = vmatpush.msra.mxu0 %v564
    %918 = vmatpush.msra.mxu0 %v560
    %919 = vmatpush.msra.mxu0 %v556
    %920 = vmatpush.msra.mxu0 %v552
    %921 = vmatpush.msra.mxu0 %v548
    %922 = vmatmul.f32.gmra.mxu0 %v160
    %v923 = vpop.f32.mrf.mxu0
    %v924 = vadd.f32 %v904, %v923
    %925 = vdwg.mxu0
    %v926 = vxor.u32 %v804, 2147483648
    %v927 = vmul.f32 %v926, 1.442695
    %v928 = vpow.pop %v927
    %v929 = vadd.f32 %v928, 1.0
    %v930 = vrcp.pop %v929
    %v931 = vmul.f32 %v929, %v930
    %v932 = vsub.f32 1.0, %v931
    %v933 = vmul.f32 %v930, %v932
    %v934 = vadd.f32 %v930, %v933
    %vm935 = vweird.f32 %v929
    %vm936 = vweird.f32 %v930
    %vm937 = vmor %vm935, %vm936
    %v938 = vsel %vm937, %v930, %v934
    %v939 = vand.u32 2147483647, %v929
    %vm940 = vcmp.eq.f32.partialorder %v939, 8.507059e+37
    %v941 = vand.u32 %v929, 2147483648
    %v942 = vor.u32 1.1754944e-38, %v941
    %v943 = vsel %vm940, %v942, %v938
    %v944 = vmul.f32 1.0, %v943
    %v945 = vxor.u32 %v844, 2147483648
    %v946 = vmul.f32 %v945, 1.442695
    %v947 = vpow.pop %v946
    %v948 = vadd.f32 %v947, 1.0
    %v949 = vrcp.pop %v948
    %v950 = vmul.f32 %v948, %v949
    %v951 = vsub.f32 1.0, %v950
    %v952 = vmul.f32 %v949, %v951
    %v953 = vadd.f32 %v949, %v952
    %vm954 = vweird.f32 %v948
    %vm955 = vweird.f32 %v949
    %vm956 = vmor %vm954, %vm955
    %v957 = vsel %vm956, %v949, %v953
    %v958 = vand.u32 2147483647, %v948
    %vm959 = vcmp.eq.f32.partialorder %v958, 8.507059e+37
    %v960 = vand.u32 %v948, 2147483648
    %v961 = vor.u32 1.1754944e-38, %v960
    %v962 = vsel %vm959, %v961, %v957
    %v963 = vmul.f32 1.0, %v962
    %v964 = vtanh.pop %v884
    %v965 = vxor.u32 %v924, 2147483648
    %v966 = vmul.f32 %v965, 1.442695
    %v967 = vpow.pop %v966
    %v968 = vadd.f32 %v967, 1.0
    %v969 = vrcp.pop %v968
    %v970 = vmul.f32 %v968, %v969
    %v971 = vsub.f32 1.0, %v970
    %v972 = vmul.f32 %v969, %v971
    %v973 = vadd.f32 %v969, %v972
    %vm974 = vweird.f32 %v968
    %vm975 = vweird.f32 %v969
    %vm976 = vmor %vm974, %vm975
    %v977 = vsel %vm976, %v969, %v973
    %v978 = vand.u32 2147483647, %v968
    %vm979 = vcmp.eq.f32.partialorder %v978, 8.507059e+37
    %v980 = vand.u32 %v968, 2147483648
    %v981 = vor.u32 1.1754944e-38, %v980
    %v982 = vsel %vm979, %v981, %v977
    %v983 = vmul.f32 1.0, %v982
    %v984 = vmul.f32 %v963, %v193
    %v985 = vmul.f32 %v944, %v964
    %v986 = vadd.f32 %v984, %v985
    %v987 = vtanh.pop %v986
    %v988 = vmul.f32 %v983, %v987
    %989 = vmatpush.msra.mxu0 %v477
    %990 = vmatpush.msra.mxu0 %v473
    %991 = vmatpush.msra.mxu0 %v469
    %992 = vmatpush.msra.mxu0 %v465
    %993 = vmatpush.msra.mxu0 %v461
    %994 = vmatpush.msra.mxu0 %v457
    %995 = vmatpush.msra.mxu0 %v453
    %996 = vmatpush.msra.mxu0 %v449
    %997 = vmatpush.msra.mxu0 %v445
    %998 = vmatpush.msra.mxu0 %v441
    %999 = vmatpush.msra.mxu0 %v437
    %1000 = vmatpush.msra.mxu0 %v433
    %1001 = vmatpush.msra.mxu0 %v429
    %1002 = vmatpush.msra.mxu0 %v425
    %1003 = vmatpush.msra.mxu0 %v421
    %1004 = vmatpush.msra.mxu0 %v417
    %1005 = vmatmul.f32.gmra.mxu0 %v756
    %v1006 = vpop.f32.mrf.mxu0
    %v1007 = vadd.f32 0.0, %v1006
    %1008 = vdwg.mxu0
    %1009 = vmatpush.msra.mxu0 %v478
    %1010 = vmatpush.msra.mxu0 %v474
    %1011 = vmatpush.msra.mxu0 %v470
    %1012 = vmatpush.msra.mxu0 %v466
    %1013 = vmatpush.msra.mxu0 %v462
    %1014 = vmatpush.msra.mxu0 %v458
    %1015 = vmatpush.msra.mxu0 %v454
    %1016 = vmatpush.msra.mxu0 %v450
    %1017 = vmatpush.msra.mxu0 %v446
    %1018 = vmatpush.msra.mxu0 %v442
    %1019 = vmatpush.msra.mxu0 %v438
    %1020 = vmatpush.msra.mxu0 %v434
    %1021 = vmatpush.msra.mxu0 %v430
    %1022 = vmatpush.msra.mxu0 %v426
    %1023 = vmatpush.msra.mxu0 %v422
    %1024 = vmatpush.msra.mxu0 %v418
    %1025 = vmatmul.f32.gmra.mxu0 %v756
    %v1026 = vpop.f32.mrf.mxu0
    %v1027 = vadd.f32 0.0, %v1026
    %1028 = vdwg.mxu0
    %1029 = vmatpush.msra.mxu0 %v479
    %1030 = vmatpush.msra.mxu0 %v475
    %1031 = vmatpush.msra.mxu0 %v471
    %1032 = vmatpush.msra.mxu0 %v467
    %1033 = vmatpush.msra.mxu0 %v463
    %1034 = vmatpush.msra.mxu0 %v459
    %1035 = vmatpush.msra.mxu0 %v455
    %1036 = vmatpush.msra.mxu0 %v451
    %1037 = vmatpush.msra.mxu0 %v447
    %1038 = vmatpush.msra.mxu0 %v443
    %1039 = vmatpush.msra.mxu0 %v439
    %1040 = vmatpush.msra.mxu0 %v435
    %1041 = vmatpush.msra.mxu0 %v431
    %1042 = vmatpush.msra.mxu0 %v427
    %1043 = vmatpush.msra.mxu0 %v423
    %1044 = vmatpush.msra.mxu0 %v419
    %1045 = vmatmul.f32.gmra.mxu0 %v756
    %v1046 = vpop.f32.mrf.mxu0
    %v1047 = vadd.f32 0.0, %v1046
    %1048 = vdwg.mxu0
    %1049 = vmatpush.msra.mxu0 %v480
    %1050 = vmatpush.msra.mxu0 %v476
    %1051 = vmatpush.msra.mxu0 %v472
    %1052 = vmatpush.msra.mxu0 %v468
    %1053 = vmatpush.msra.mxu0 %v464
    %1054 = vmatpush.msra.mxu0 %v460
    %1055 = vmatpush.msra.mxu0 %v456
    %1056 = vmatpush.msra.mxu0 %v452
    %1057 = vmatpush.msra.mxu0 %v448
    %1058 = vmatpush.msra.mxu0 %v444
    %1059 = vmatpush.msra.mxu0 %v440
    %1060 = vmatpush.msra.mxu0 %v436
    %1061 = vmatpush.msra.mxu0 %v432
    %1062 = vmatpush.msra.mxu0 %v428
    %1063 = vmatpush.msra.mxu0 %v424
    %1064 = vmatpush.msra.mxu0 %v420
    %1065 = vmatmul.f32.gmra.mxu0 %v756
    %v1066 = vpop.f32.mrf.mxu0
    %v1067 = vadd.f32 0.0, %v1066
    %1068 = vdwg.mxu0
    %v1069 = vadd.f32 %v274, %v1007
    %v1070 = vadd.f32 %v315, %v1027
    %v1071 = vadd.f32 %v356, %v1047
    %v1072 = vadd.f32 %v397, %v1067
    %v1073 = vxor.u32 %v1069, 2147483648
    %v1074 = vmul.f32 %v1073, 1.442695
    %v1075 = vpow.pop %v1074
    %v1076 = vadd.f32 %v1075, 1.0
    %v1077 = vrcp.pop %v1076
    %v1078 = vmul.f32 %v1076, %v1077
    %v1079 = vsub.f32 1.0, %v1078
    %v1080 = vmul.f32 %v1077, %v1079
    %v1081 = vadd.f32 %v1077, %v1080
    %vm1082 = vweird.f32 %v1076
    %vm1083 = vweird.f32 %v1077
    %vm1084 = vmor %vm1082, %vm1083
    %v1085 = vsel %vm1084, %v1077, %v1081
    %v1086 = vand.u32 2147483647, %v1076
    %vm1087 = vcmp.eq.f32.partialorder %v1086, 8.507059e+37
    %v1088 = vand.u32 %v1076, 2147483648
    %v1089 = vor.u32 1.1754944e-38, %v1088
    %v1090 = vsel %vm1087, %v1089, %v1085
    %v1091 = vmul.f32 1.0, %v1090
    %v1092 = vxor.u32 %v1070, 2147483648
    %v1093 = vmul.f32 %v1092, 1.442695
    %v1094 = vpow.pop %v1093
    %v1095 = vadd.f32 %v1094, 1.0
    %v1096 = vrcp.pop %v1095
    %v1097 = vmul.f32 %v1095, %v1096
    %v1098 = vsub.f32 1.0, %v1097
    %v1099 = vmul.f32 %v1096, %v1098
    %v1100 = vadd.f32 %v1096, %v1099
    %vm1101 = vweird.f32 %v1095
    %vm1102 = vweird.f32 %v1096
    %vm1103 = vmor %vm1101, %vm1102
    %v1104 = vsel %vm1103, %v1096, %v1100
    %v1105 = vand.u32 2147483647, %v1095
    %vm1106 = vcmp.eq.f32.partialorder %v1105, 8.507059e+37
    %v1107 = vand.u32 %v1095, 2147483648
    %v1108 = vor.u32 1.1754944e-38, %v1107
    %v1109 = vsel %vm1106, %v1108, %v1104
    %v1110 = vmul.f32 1.0, %v1109
    %v1111 = vtanh.pop %v1071
    %v1112 = vxor.u32 %v1072, 2147483648
    %v1113 = vmul.f32 %v1112, 1.442695
    %v1114 = vpow.pop %v1113
    %v1115 = vadd.f32 %v1114, 1.0
    %v1116 = vrcp.pop %v1115
    %v1117 = vmul.f32 %v1115, %v1116
    %v1118 = vsub.f32 1.0, %v1117
    %v1119 = vmul.f32 %v1116, %v1118
    %v1120 = vadd.f32 %v1116, %v1119
    %vm1121 = vweird.f32 %v1115
    %vm1122 = vweird.f32 %v1116
    %vm1123 = vmor %vm1121, %vm1122
    %v1124 = vsel %vm1123, %v1116, %v1120
    %v1125 = vand.u32 2147483647, %v1115
    %vm1126 = vcmp.eq.f32.partialorder %v1125, 8.507059e+37
    %v1127 = vand.u32 %v1115, 2147483648
    %v1128 = vor.u32 1.1754944e-38, %v1127
    %v1129 = vsel %vm1126, %v1128, %v1124
    %v1130 = vmul.f32 1.0, %v1129
    %v1131 = vmul.f32 %v1110, %v754
    %v1132 = vmul.f32 %v1091, %v1111
    %v1133 = vadd.f32 %v1131, %v1132
    %v1134 = vtanh.pop %v1133
    %v1135 = vmul.f32 %v1130, %v1134
    %1136 = vmatpush.msra.mxu0 %v541
    %1137 = vmatpush.msra.mxu0 %v537
    %1138 = vmatpush.msra.mxu0 %v533
    %1139 = vmatpush.msra.mxu0 %v529
    %1140 = vmatpush.msra.mxu0 %v525
    %1141 = vmatpush.msra.mxu0 %v521
    %1142 = vmatpush.msra.mxu0 %v517
    %1143 = vmatpush.msra.mxu0 %v513
    %1144 = vmatpush.msra.mxu0 %v509
    %1145 = vmatpush.msra.mxu0 %v505
    %1146 = vmatpush.msra.mxu0 %v501
    %1147 = vmatpush.msra.mxu0 %v497
    %1148 = vmatpush.msra.mxu0 %v493
    %1149 = vmatpush.msra.mxu0 %v489
    %1150 = vmatpush.msra.mxu0 %v485
    %1151 = vmatpush.msra.mxu0 %v481
    %1152 = vmatmul.f32.gmra.mxu0 %v1135
    %v1153 = vpop.f32.mrf.mxu0
    %v1154 = vadd.f32 %v758, %v1153
    %1155 = vdwg.mxu0
    %1156 = vmatpush.msra.mxu0 %v605
    %1157 = vmatpush.msra.mxu0 %v601
    %1158 = vmatpush.msra.mxu0 %v597
    %1159 = vmatpush.msra.mxu0 %v593
    %1160 = vmatpush.msra.mxu0 %v589
    %1161 = vmatpush.msra.mxu0 %v585
    %1162 = vmatpush.msra.mxu0 %v581
    %1163 = vmatpush.msra.mxu0 %v577
    %1164 = vmatpush.msra.mxu0 %v573
    %1165 = vmatpush.msra.mxu0 %v569
    %1166 = vmatpush.msra.mxu0 %v565
    %1167 = vmatpush.msra.mxu0 %v561
    %1168 = vmatpush.msra.mxu0 %v557
    %1169 = vmatpush.msra.mxu0 %v553
    %1170 = vmatpush.msra.mxu0 %v549
    %1171 = vmatpush.msra.mxu0 %v545
    %1172 = vmatmul.f32.gmra.mxu0 %v988
    %v1173 = vpop.f32.mrf.mxu0
    %v1174 = vadd.f32 %v1154, %v1173
    %1175 = vdwg.mxu0
    %1176 = vmatpush.msra.mxu0 %v542
    %1177 = vmatpush.msra.mxu0 %v538
    %1178 = vmatpush.msra.mxu0 %v534
    %1179 = vmatpush.msra.mxu0 %v530
    %1180 = vmatpush.msra.mxu0 %v526
    %1181 = vmatpush.msra.mxu0 %v522
    %1182 = vmatpush.msra.mxu0 %v518
    %1183 = vmatpush.msra.mxu0 %v514
    %1184 = vmatpush.msra.mxu0 %v510
    %1185 = vmatpush.msra.mxu0 %v506
    %1186 = vmatpush.msra.mxu0 %v502
    %1187 = vmatpush.msra.mxu0 %v498
    %1188 = vmatpush.msra.mxu0 %v494
    %1189 = vmatpush.msra.mxu0 %v490
    %1190 = vmatpush.msra.mxu0 %v486
    %1191 = vmatpush.msra.mxu0 %v482
    %1192 = vmatmul.f32.gmra.mxu0 %v1135
    %v1193 = vpop.f32.mrf.mxu0
    %v1194 = vadd.f32 %v759, %v1193
    %1195 = vdwg.mxu0
    %1196 = vmatpush.msra.mxu0 %v606
    %1197 = vmatpush.msra.mxu0 %v602
    %1198 = vmatpush.msra.mxu0 %v598
    %1199 = vmatpush.msra.mxu0 %v594
    %1200 = vmatpush.msra.mxu0 %v590
    %1201 = vmatpush.msra.mxu0 %v586
    %1202 = vmatpush.msra.mxu0 %v582
    %1203 = vmatpush.msra.mxu0 %v578
    %1204 = vmatpush.msra.mxu0 %v574
    %1205 = vmatpush.msra.mxu0 %v570
    %1206 = vmatpush.msra.mxu0 %v566
    %1207 = vmatpush.msra.mxu0 %v562
    %1208 = vmatpush.msra.mxu0 %v558
    %1209 = vmatpush.msra.mxu0 %v554
    %1210 = vmatpush.msra.mxu0 %v550
    %1211 = vmatpush.msra.mxu0 %v546
    %1212 = vmatmul.f32.gmra.mxu0 %v988
    %v1213 = vpop.f32.mrf.mxu0
    %v1214 = vadd.f32 %v1194, %v1213
    %1215 = vdwg.mxu0
    %1216 = vmatpush.msra.mxu0 %v543
    %1217 = vmatpush.msra.mxu0 %v539
    %1218 = vmatpush.msra.mxu0 %v535
    %1219 = vmatpush.msra.mxu0 %v531
    %1220 = vmatpush.msra.mxu0 %v527
    %1221 = vmatpush.msra.mxu0 %v523
    %1222 = vmatpush.msra.mxu0 %v519
    %1223 = vmatpush.msra.mxu0 %v515
    %1224 = vmatpush.msra.mxu0 %v511
    %1225 = vmatpush.msra.mxu0 %v507
    %1226 = vmatpush.msra.mxu0 %v503
    %1227 = vmatpush.msra.mxu0 %v499
    %1228 = vmatpush.msra.mxu0 %v495
    %1229 = vmatpush.msra.mxu0 %v491
    %1230 = vmatpush.msra.mxu0 %v487
    %1231 = vmatpush.msra.mxu0 %v483
    %1232 = vmatmul.f32.gmra.mxu0 %v1135
    %v1233 = vpop.f32.mrf.mxu0
    %v1234 = vadd.f32 %v760, %v1233
    %1235 = vdwg.mxu0
    %1236 = vmatpush.msra.mxu0 %v607
    %1237 = vmatpush.msra.mxu0 %v603
    %1238 = vmatpush.msra.mxu0 %v599
    %1239 = vmatpush.msra.mxu0 %v595
    %1240 = vmatpush.msra.mxu0 %v591
    %1241 = vmatpush.msra.mxu0 %v587
    %1242 = vmatpush.msra.mxu0 %v583
    %1243 = vmatpush.msra.mxu0 %v579
    %1244 = vmatpush.msra.mxu0 %v575
    %1245 = vmatpush.msra.mxu0 %v571
    %1246 = vmatpush.msra.mxu0 %v567
    %1247 = vmatpush.msra.mxu0 %v563
    %1248 = vmatpush.msra.mxu0 %v559
    %1249 = vmatpush.msra.mxu0 %v555
    %1250 = vmatpush.msra.mxu0 %v551
    %1251 = vmatpush.msra.mxu0 %v547
    %1252 = vmatmul.f32.gmra.mxu0 %v988
    %v1253 = vpop.f32.mrf.mxu0
    %v1254 = vadd.f32 %v1234, %v1253
    %1255 = vdwg.mxu0
    %1256 = vmatpush.msra.mxu0 %v544
    %1257 = vmatpush.msra.mxu0 %v540
    %1258 = vmatpush.msra.mxu0 %v536
    %1259 = vmatpush.msra.mxu0 %v532
    %1260 = vmatpush.msra.mxu0 %v528
    %1261 = vmatpush.msra.mxu0 %v524
    %1262 = vmatpush.msra.mxu0 %v520
    %1263 = vmatpush.msra.mxu0 %v516
    %1264 = vmatpush.msra.mxu0 %v512
    %1265 = vmatpush.msra.mxu0 %v508
    %1266 = vmatpush.msra.mxu0 %v504
    %1267 = vmatpush.msra.mxu0 %v500
    %1268 = vmatpush.msra.mxu0 %v496
    %1269 = vmatpush.msra.mxu0 %v492
    %1270 = vmatpush.msra.mxu0 %v488
    %1271 = vmatpush.msra.mxu0 %v484
    %1272 = vmatmul.f32.gmra.mxu0 %v1135
    %v1273 = vpop.f32.mrf.mxu0
    %v1274 = vadd.f32 %v761, %v1273
    %1275 = vdwg.mxu0
    %1276 = vmatpush.msra.mxu0 %v608
    %1277 = vmatpush.msra.mxu0 %v604
    %1278 = vmatpush.msra.mxu0 %v600
    %1279 = vmatpush.msra.mxu0 %v596
    %1280 = vmatpush.msra.mxu0 %v592
    %1281 = vmatpush.msra.mxu0 %v588
    %1282 = vmatpush.msra.mxu0 %v584
    %1283 = vmatpush.msra.mxu0 %v580
    %1284 = vmatpush.msra.mxu0 %v576
    %1285 = vmatpush.msra.mxu0 %v572
    %1286 = vmatpush.msra.mxu0 %v568
    %1287 = vmatpush.msra.mxu0 %v564
    %1288 = vmatpush.msra.mxu0 %v560
    %1289 = vmatpush.msra.mxu0 %v556
    %1290 = vmatpush.msra.mxu0 %v552
    %1291 = vmatpush.msra.mxu0 %v548
    %1292 = vmatmul.f32.gmra.mxu0 %v988
    %v1293 = vpop.f32.mrf.mxu0
    %v1294 = vadd.f32 %v1274, %v1293
    %1295 = vdwg.mxu0
    %v1296 = vxor.u32 %v1174, 2147483648
    %v1297 = vmul.f32 %v1296, 1.442695
    %v1298 = vpow.pop %v1297
    %v1299 = vadd.f32 %v1298, 1.0
    %v1300 = vrcp.pop %v1299
    %v1301 = vmul.f32 %v1299, %v1300
    %v1302 = vsub.f32 1.0, %v1301
    %v1303 = vmul.f32 %v1300, %v1302
    %v1304 = vadd.f32 %v1300, %v1303
    %vm1305 = vweird.f32 %v1299
    %vm1306 = vweird.f32 %v1300
    %vm1307 = vmor %vm1305, %vm1306
    %v1308 = vsel %vm1307, %v1300, %v1304
    %v1309 = vand.u32 2147483647, %v1299
    %vm1310 = vcmp.eq.f32.partialorder %v1309, 8.507059e+37
    %v1311 = vand.u32 %v1299, 2147483648
    %v1312 = vor.u32 1.1754944e-38, %v1311
    %v1313 = vsel %vm1310, %v1312, %v1308
    %v1314 = vmul.f32 1.0, %v1313
    %v1315 = vxor.u32 %v1214, 2147483648
    %v1316 = vmul.f32 %v1315, 1.442695
    %v1317 = vpow.pop %v1316
    %v1318 = vadd.f32 %v1317, 1.0
    %v1319 = vrcp.pop %v1318
    %v1320 = vmul.f32 %v1318, %v1319
    %v1321 = vsub.f32 1.0, %v1320
    %v1322 = vmul.f32 %v1319, %v1321
    %v1323 = vadd.f32 %v1319, %v1322
    %vm1324 = vweird.f32 %v1318
    %vm1325 = vweird.f32 %v1319
    %vm1326 = vmor %vm1324, %vm1325
    %v1327 = vsel %vm1326, %v1319, %v1323
    %v1328 = vand.u32 2147483647, %v1318
    %vm1329 = vcmp.eq.f32.partialorder %v1328, 8.507059e+37
    %v1330 = vand.u32 %v1318, 2147483648
    %v1331 = vor.u32 1.1754944e-38, %v1330
    %v1332 = vsel %vm1329, %v1331, %v1327
    %v1333 = vmul.f32 1.0, %v1332
    %v1334 = vtanh.pop %v1254
    %v1335 = vxor.u32 %v1294, 2147483648
    %v1336 = vmul.f32 %v1335, 1.442695
    %v1337 = vpow.pop %v1336
    %v1338 = vadd.f32 %v1337, 1.0
    %v1339 = vrcp.pop %v1338
    %v1340 = vmul.f32 %v1338, %v1339
    %v1341 = vsub.f32 1.0, %v1340
    %v1342 = vmul.f32 %v1339, %v1341
    %v1343 = vadd.f32 %v1339, %v1342
    %vm1344 = vweird.f32 %v1338
    %vm1345 = vweird.f32 %v1339
    %vm1346 = vmor %vm1344, %vm1345
    %v1347 = vsel %vm1346, %v1339, %v1343
    %v1348 = vand.u32 2147483647, %v1338
    %vm1349 = vcmp.eq.f32.partialorder %v1348, 8.507059e+37
    %v1350 = vand.u32 %v1338, 2147483648
    %v1351 = vor.u32 1.1754944e-38, %v1350
    %v1352 = vsel %vm1349, %v1351, %v1347
    %v1353 = vmul.f32 1.0, %v1352
    %v1354 = vmul.f32 %v1333, %v986
    %v1355 = vmul.f32 %v1314, %v1334
    %v1356 = vadd.f32 %v1354, %v1355
    %v1357 = vtanh.pop %v1356
    %v1358 = vmul.f32 %v1353, %v1357
    %1359 = vmatpush.msra.mxu0 %v477
    %1360 = vmatpush.msra.mxu0 %v473
    %1361 = vmatpush.msra.mxu0 %v469
    %1362 = vmatpush.msra.mxu0 %v465
    %1363 = vmatpush.msra.mxu0 %v461
    %1364 = vmatpush.msra.mxu0 %v457
    %1365 = vmatpush.msra.mxu0 %v453
    %1366 = vmatpush.msra.mxu0 %v449
    %1367 = vmatpush.msra.mxu0 %v445
    %1368 = vmatpush.msra.mxu0 %v441
    %1369 = vmatpush.msra.mxu0 %v437
    %1370 = vmatpush.msra.mxu0 %v433
    %1371 = vmatpush.msra.mxu0 %v429
    %1372 = vmatpush.msra.mxu0 %v425
    %1373 = vmatpush.msra.mxu0 %v421
    %1374 = vmatpush.msra.mxu0 %v417
    %1375 = vmatmul.f32.gmra.mxu0 %v1135
    %v1376 = vpop.f32.mrf.mxu0
    %v1377 = vadd.f32 0.0, %v1376
    %1378 = vdwg.mxu0
    %1379 = vmatpush.msra.mxu0 %v478
    %1380 = vmatpush.msra.mxu0 %v474
    %1381 = vmatpush.msra.mxu0 %v470
    %1382 = vmatpush.msra.mxu0 %v466
    %1383 = vmatpush.msra.mxu0 %v462
    %1384 = vmatpush.msra.mxu0 %v458
    %1385 = vmatpush.msra.mxu0 %v454
    %1386 = vmatpush.msra.mxu0 %v450
    %1387 = vmatpush.msra.mxu0 %v446
    %1388 = vmatpush.msra.mxu0 %v442
    %1389 = vmatpush.msra.mxu0 %v438
    %1390 = vmatpush.msra.mxu0 %v434
    %1391 = vmatpush.msra.mxu0 %v430
    %1392 = vmatpush.msra.mxu0 %v426
    %1393 = vmatpush.msra.mxu0 %v422
    %1394 = vmatpush.msra.mxu0 %v418
    %1395 = vmatmul.f32.gmra.mxu0 %v1135
    %v1396 = vpop.f32.mrf.mxu0
    %v1397 = vadd.f32 0.0, %v1396
    %1398 = vdwg.mxu0
    %1399 = vmatpush.msra.mxu0 %v479
    %1400 = vmatpush.msra.mxu0 %v475
    %1401 = vmatpush.msra.mxu0 %v471
    %1402 = vmatpush.msra.mxu0 %v467
    %1403 = vmatpush.msra.mxu0 %v463
    %1404 = vmatpush.msra.mxu0 %v459
    %1405 = vmatpush.msra.mxu0 %v455
    %1406 = vmatpush.msra.mxu0 %v451
    %1407 = vmatpush.msra.mxu0 %v447
    %1408 = vmatpush.msra.mxu0 %v443
    %1409 = vmatpush.msra.mxu0 %v439
    %1410 = vmatpush.msra.mxu0 %v435
    %1411 = vmatpush.msra.mxu0 %v431
    %1412 = vmatpush.msra.mxu0 %v427
    %1413 = vmatpush.msra.mxu0 %v423
    %1414 = vmatpush.msra.mxu0 %v419
    %1415 = vmatmul.f32.gmra.mxu0 %v1135
    %v1416 = vpop.f32.mrf.mxu0
    %v1417 = vadd.f32 0.0, %v1416
    %1418 = vdwg.mxu0
    %1419 = vmatpush.msra.mxu0 %v480
    %1420 = vmatpush.msra.mxu0 %v476
    %1421 = vmatpush.msra.mxu0 %v472
    %1422 = vmatpush.msra.mxu0 %v468
    %1423 = vmatpush.msra.mxu0 %v464
    %1424 = vmatpush.msra.mxu0 %v460
    %1425 = vmatpush.msra.mxu0 %v456
    %1426 = vmatpush.msra.mxu0 %v452
    %1427 = vmatpush.msra.mxu0 %v448
    %1428 = vmatpush.msra.mxu0 %v444
    %1429 = vmatpush.msra.mxu0 %v440
    %1430 = vmatpush.msra.mxu0 %v436
    %1431 = vmatpush.msra.mxu0 %v432
    %1432 = vmatpush.msra.mxu0 %v428
    %1433 = vmatpush.msra.mxu0 %v424
    %1434 = vmatpush.msra.mxu0 %v420
    %1435 = vmatmul.f32.gmra.mxu0 %v1135
    %v1436 = vpop.f32.mrf.mxu0
    %v1437 = vadd.f32 0.0, %v1436
    %1438 = vdwg.mxu0
    %v1439 = vadd.f32 %v277, %v1377
    %v1440 = vadd.f32 %v318, %v1397
    %v1441 = vadd.f32 %v359, %v1417
    %v1442 = vadd.f32 %v400, %v1437
    %v1443 = vxor.u32 %v1439, 2147483648
    %v1444 = vmul.f32 %v1443, 1.442695
    %v1445 = vpow.pop %v1444
    %v1446 = vadd.f32 %v1445, 1.0
    %v1447 = vrcp.pop %v1446
    %v1448 = vmul.f32 %v1446, %v1447
    %v1449 = vsub.f32 1.0, %v1448
    %v1450 = vmul.f32 %v1447, %v1449
    %v1451 = vadd.f32 %v1447, %v1450
    %vm1452 = vweird.f32 %v1446
    %vm1453 = vweird.f32 %v1447
    %vm1454 = vmor %vm1452, %vm1453
    %v1455 = vsel %vm1454, %v1447, %v1451
    %v1456 = vand.u32 2147483647, %v1446
    %vm1457 = vcmp.eq.f32.partialorder %v1456, 8.507059e+37
    %v1458 = vand.u32 %v1446, 2147483648
    %v1459 = vor.u32 1.1754944e-38, %v1458
    %v1460 = vsel %vm1457, %v1459, %v1455
    %v1461 = vmul.f32 1.0, %v1460
    %v1462 = vxor.u32 %v1440, 2147483648
    %v1463 = vmul.f32 %v1462, 1.442695
    %v1464 = vpow.pop %v1463
    %v1465 = vadd.f32 %v1464, 1.0
    %v1466 = vrcp.pop %v1465
    %v1467 = vmul.f32 %v1465, %v1466
    %v1468 = vsub.f32 1.0, %v1467
    %v1469 = vmul.f32 %v1466, %v1468
    %v1470 = vadd.f32 %v1466, %v1469
    %vm1471 = vweird.f32 %v1465
    %vm1472 = vweird.f32 %v1466
    %vm1473 = vmor %vm1471, %vm1472
    %v1474 = vsel %vm1473, %v1466, %v1470
    %v1475 = vand.u32 2147483647, %v1465
    %vm1476 = vcmp.eq.f32.partialorder %v1475, 8.507059e+37
    %v1477 = vand.u32 %v1465, 2147483648
    %v1478 = vor.u32 1.1754944e-38, %v1477
    %v1479 = vsel %vm1476, %v1478, %v1474
    %v1480 = vmul.f32 1.0, %v1479
    %v1481 = vtanh.pop %v1441
    %v1482 = vxor.u32 %v1442, 2147483648
    %v1483 = vmul.f32 %v1482, 1.442695
    %v1484 = vpow.pop %v1483
    %v1485 = vadd.f32 %v1484, 1.0
    %v1486 = vrcp.pop %v1485
    %v1487 = vmul.f32 %v1485, %v1486
    %v1488 = vsub.f32 1.0, %v1487
    %v1489 = vmul.f32 %v1486, %v1488
    %v1490 = vadd.f32 %v1486, %v1489
    %vm1491 = vweird.f32 %v1485
    %vm1492 = vweird.f32 %v1486
    %vm1493 = vmor %vm1491, %vm1492
    %v1494 = vsel %vm1493, %v1486, %v1490
    %v1495 = vand.u32 2147483647, %v1485
    %vm1496 = vcmp.eq.f32.partialorder %v1495, 8.507059e+37
    %v1497 = vand.u32 %v1485, 2147483648
    %v1498 = vor.u32 1.1754944e-38, %v1497
    %v1499 = vsel %vm1496, %v1498, %v1494
    %v1500 = vmul.f32 1.0, %v1499
    %v1501 = vmul.f32 %v1480, %v1133
    %v1502 = vmul.f32 %v1461, %v1481
    %v1503 = vadd.f32 %v1501, %v1502
    %v1504 = vtanh.pop %v1503
    %v1505 = vmul.f32 %v1500, %v1504
    %1506 = vmatpush.msra.mxu0 %v541
    %1507 = vmatpush.msra.mxu0 %v537
    %1508 = vmatpush.msra.mxu0 %v533
    %1509 = vmatpush.msra.mxu0 %v529
    %1510 = vmatpush.msra.mxu0 %v525
    %1511 = vmatpush.msra.mxu0 %v521
    %1512 = vmatpush.msra.mxu0 %v517
    %1513 = vmatpush.msra.mxu0 %v513
    %1514 = vmatpush.msra.mxu0 %v509
    %1515 = vmatpush.msra.mxu0 %v505
    %1516 = vmatpush.msra.mxu0 %v501
    %1517 = vmatpush.msra.mxu0 %v497
    %1518 = vmatpush.msra.mxu0 %v493
    %1519 = vmatpush.msra.mxu0 %v489
    %1520 = vmatpush.msra.mxu0 %v485
    %1521 = vmatpush.msra.mxu0 %v481
    %1522 = vmatmul.f32.gmra.mxu0 %v1505
    %v1523 = vpop.f32.mrf.mxu0
    %v1524 = vadd.f32 %v758, %v1523
    %1525 = vdwg.mxu0
    %1526 = vmatpush.msra.mxu0 %v605
    %1527 = vmatpush.msra.mxu0 %v601
    %1528 = vmatpush.msra.mxu0 %v597
    %1529 = vmatpush.msra.mxu0 %v593
    %1530 = vmatpush.msra.mxu0 %v589
    %1531 = vmatpush.msra.mxu0 %v585
    %1532 = vmatpush.msra.mxu0 %v581
    %1533 = vmatpush.msra.mxu0 %v577
    %1534 = vmatpush.msra.mxu0 %v573
    %1535 = vmatpush.msra.mxu0 %v569
    %1536 = vmatpush.msra.mxu0 %v565
    %1537 = vmatpush.msra.mxu0 %v561
    %1538 = vmatpush.msra.mxu0 %v557
    %1539 = vmatpush.msra.mxu0 %v553
    %1540 = vmatpush.msra.mxu0 %v549
    %1541 = vmatpush.msra.mxu0 %v545
    %1542 = vmatmul.f32.gmra.mxu0 %v1358
    %v1543 = vpop.f32.mrf.mxu0
    %v1544 = vadd.f32 %v1524, %v1543
    %1545 = vdwg.mxu0
    %1546 = vmatpush.msra.mxu0 %v542
    %1547 = vmatpush.msra.mxu0 %v538
    %1548 = vmatpush.msra.mxu0 %v534
    %1549 = vmatpush.msra.mxu0 %v530
    %1550 = vmatpush.msra.mxu0 %v526
    %1551 = vmatpush.msra.mxu0 %v522
    %1552 = vmatpush.msra.mxu0 %v518
    %1553 = vmatpush.msra.mxu0 %v514
    %1554 = vmatpush.msra.mxu0 %v510
    %1555 = vmatpush.msra.mxu0 %v506
    %1556 = vmatpush.msra.mxu0 %v502
    %1557 = vmatpush.msra.mxu0 %v498
    %1558 = vmatpush.msra.mxu0 %v494
    %1559 = vmatpush.msra.mxu0 %v490
    %1560 = vmatpush.msra.mxu0 %v486
    %1561 = vmatpush.msra.mxu0 %v482
    %1562 = vmatmul.f32.gmra.mxu0 %v1505
    %v1563 = vpop.f32.mrf.mxu0
    %v1564 = vadd.f32 %v759, %v1563
    %1565 = vdwg.mxu0
    %1566 = vmatpush.msra.mxu0 %v606
    %1567 = vmatpush.msra.mxu0 %v602
    %1568 = vmatpush.msra.mxu0 %v598
    %1569 = vmatpush.msra.mxu0 %v594
    %1570 = vmatpush.msra.mxu0 %v590
    %1571 = vmatpush.msra.mxu0 %v586
    %1572 = vmatpush.msra.mxu0 %v582
    %1573 = vmatpush.msra.mxu0 %v578
    %1574 = vmatpush.msra.mxu0 %v574
    %1575 = vmatpush.msra.mxu0 %v570
    %1576 = vmatpush.msra.mxu0 %v566
    %1577 = vmatpush.msra.mxu0 %v562
    %1578 = vmatpush.msra.mxu0 %v558
    %1579 = vmatpush.msra.mxu0 %v554
    %1580 = vmatpush.msra.mxu0 %v550
    %1581 = vmatpush.msra.mxu0 %v546
    %1582 = vmatmul.f32.gmra.mxu0 %v1358
    %v1583 = vpop.f32.mrf.mxu0
    %v1584 = vadd.f32 %v1564, %v1583
    %1585 = vdwg.mxu0
    %1586 = vmatpush.msra.mxu0 %v543
    %1587 = vmatpush.msra.mxu0 %v539
    %1588 = vmatpush.msra.mxu0 %v535
    %1589 = vmatpush.msra.mxu0 %v531
    %1590 = vmatpush.msra.mxu0 %v527
    %1591 = vmatpush.msra.mxu0 %v523
    %1592 = vmatpush.msra.mxu0 %v519
    %1593 = vmatpush.msra.mxu0 %v515
    %1594 = vmatpush.msra.mxu0 %v511
    %1595 = vmatpush.msra.mxu0 %v507
    %1596 = vmatpush.msra.mxu0 %v503
    %1597 = vmatpush.msra.mxu0 %v499
    %1598 = vmatpush.msra.mxu0 %v495
    %1599 = vmatpush.msra.mxu0 %v491
    %1600 = vmatpush.msra.mxu0 %v487
    %1601 = vmatpush.msra.mxu0 %v483
    %1602 = vmatmul.f32.gmra.mxu0 %v1505
    %v1603 = vpop.f32.mrf.mxu0
    %v1604 = vadd.f32 %v760, %v1603
    %1605 = vdwg.mxu0
    %1606 = vmatpush.msra.mxu0 %v607
    %1607 = vmatpush.msra.mxu0 %v603
    %1608 = vmatpush.msra.mxu0 %v599
    %1609 = vmatpush.msra.mxu0 %v595
    %1610 = vmatpush.msra.mxu0 %v591
    %1611 = vmatpush.msra.mxu0 %v587
    %1612 = vmatpush.msra.mxu0 %v583
    %1613 = vmatpush.msra.mxu0 %v579
    %1614 = vmatpush.msra.mxu0 %v575
    %1615 = vmatpush.msra.mxu0 %v571
    %1616 = vmatpush.msra.mxu0 %v567
    %1617 = vmatpush.msra.mxu0 %v563
    %1618 = vmatpush.msra.mxu0 %v559
    %1619 = vmatpush.msra.mxu0 %v555
    %1620 = vmatpush.msra.mxu0 %v551
    %1621 = vmatpush.msra.mxu0 %v547
    %1622 = vmatmul.f32.gmra.mxu0 %v1358
    %v1623 = vpop.f32.mrf.mxu0
    %v1624 = vadd.f32 %v1604, %v1623
    %1625 = vdwg.mxu0
    %1626 = vmatpush.msra.mxu0 %v544
    %1627 = vmatpush.msra.mxu0 %v540
    %1628 = vmatpush.msra.mxu0 %v536
    %1629 = vmatpush.msra.mxu0 %v532
    %1630 = vmatpush.msra.mxu0 %v528
    %1631 = vmatpush.msra.mxu0 %v524
    %1632 = vmatpush.msra.mxu0 %v520
    %1633 = vmatpush.msra.mxu0 %v516
    %1634 = vmatpush.msra.mxu0 %v512
    %1635 = vmatpush.msra.mxu0 %v508
    %1636 = vmatpush.msra.mxu0 %v504
    %1637 = vmatpush.msra.mxu0 %v500
    %1638 = vmatpush.msra.mxu0 %v496
    %1639 = vmatpush.msra.mxu0 %v492
    %1640 = vmatpush.msra.mxu0 %v488
    %1641 = vmatpush.msra.mxu0 %v484
    %1642 = vmatmul.f32.gmra.mxu0 %v1505
    %v1643 = vpop.f32.mrf.mxu0
    %v1644 = vadd.f32 %v761, %v1643
    %1645 = vdwg.mxu0
    %1646 = vmatpush.msra.mxu0 %v608
    %1647 = vmatpush.msra.mxu0 %v604
    %1648 = vmatpush.msra.mxu0 %v600
    %1649 = vmatpush.msra.mxu0 %v596
    %1650 = vmatpush.msra.mxu0 %v592
    %1651 = vmatpush.msra.mxu0 %v588
    %1652 = vmatpush.msra.mxu0 %v584
    %1653 = vmatpush.msra.mxu0 %v580
    %1654 = vmatpush.msra.mxu0 %v576
    %1655 = vmatpush.msra.mxu0 %v572
    %1656 = vmatpush.msra.mxu0 %v568
    %1657 = vmatpush.msra.mxu0 %v564
    %1658 = vmatpush.msra.mxu0 %v560
    %1659 = vmatpush.msra.mxu0 %v556
    %1660 = vmatpush.msra.mxu0 %v552
    %1661 = vmatpush.msra.mxu0 %v548
    %1662 = vmatmul.f32.gmra.mxu0 %v1358
    %v1663 = vpop.f32.mrf.mxu0
    %v1664 = vadd.f32 %v1644, %v1663
    %1665 = vdwg.mxu0
    %v1666 = vxor.u32 %v1544, 2147483648
    %v1667 = vmul.f32 %v1666, 1.442695
    %v1668 = vpow.pop %v1667
    %v1669 = vadd.f32 %v1668, 1.0
    %v1670 = vrcp.pop %v1669
    %v1671 = vmul.f32 %v1669, %v1670
    %v1672 = vsub.f32 1.0, %v1671
    %v1673 = vmul.f32 %v1670, %v1672
    %v1674 = vadd.f32 %v1670, %v1673
    %vm1675 = vweird.f32 %v1669
    %vm1676 = vweird.f32 %v1670
    %vm1677 = vmor %vm1675, %vm1676
    %v1678 = vsel %vm1677, %v1670, %v1674
    %v1679 = vand.u32 2147483647, %v1669
    %vm1680 = vcmp.eq.f32.partialorder %v1679, 8.507059e+37
    %v1681 = vand.u32 %v1669, 2147483648
    %v1682 = vor.u32 1.1754944e-38, %v1681
    %v1683 = vsel %vm1680, %v1682, %v1678
    %v1684 = vmul.f32 1.0, %v1683
    %v1685 = vxor.u32 %v1584, 2147483648
    %v1686 = vmul.f32 %v1685, 1.442695
    %v1687 = vpow.pop %v1686
    %v1688 = vadd.f32 %v1687, 1.0
    %v1689 = vrcp.pop %v1688
    %v1690 = vmul.f32 %v1688, %v1689
    %v1691 = vsub.f32 1.0, %v1690
    %v1692 = vmul.f32 %v1689, %v1691
    %v1693 = vadd.f32 %v1689, %v1692
    %vm1694 = vweird.f32 %v1688
    %vm1695 = vweird.f32 %v1689
    %vm1696 = vmor %vm1694, %vm1695
    %v1697 = vsel %vm1696, %v1689, %v1693
    %v1698 = vand.u32 2147483647, %v1688
    %vm1699 = vcmp.eq.f32.partialorder %v1698, 8.507059e+37
    %v1700 = vand.u32 %v1688, 2147483648
    %v1701 = vor.u32 1.1754944e-38, %v1700
    %v1702 = vsel %vm1699, %v1701, %v1697
    %v1703 = vmul.f32 1.0, %v1702
    %v1704 = vtanh.pop %v1624
    %v1705 = vxor.u32 %v1664, 2147483648
    %v1706 = vmul.f32 %v1705, 1.442695
    %v1707 = vpow.pop %v1706
    %v1708 = vadd.f32 %v1707, 1.0
    %v1709 = vrcp.pop %v1708
    %v1710 = vmul.f32 %v1708, %v1709
    %v1711 = vsub.f32 1.0, %v1710
    %v1712 = vmul.f32 %v1709, %v1711
    %v1713 = vadd.f32 %v1709, %v1712
    %vm1714 = vweird.f32 %v1708
    %vm1715 = vweird.f32 %v1709
    %vm1716 = vmor %vm1714, %vm1715
    %v1717 = vsel %vm1716, %v1709, %v1713
    %v1718 = vand.u32 2147483647, %v1708
    %vm1719 = vcmp.eq.f32.partialorder %v1718, 8.507059e+37
    %v1720 = vand.u32 %v1708, 2147483648
    %v1721 = vor.u32 1.1754944e-38, %v1720
    %v1722 = vsel %vm1719, %v1721, %v1717
    %v1723 = vmul.f32 1.0, %v1722
    %v1724 = vmul.f32 %v1703, %v1356
    %v1725 = vmul.f32 %v1684, %v1704
    %v1726 = vadd.f32 %v1724, %v1725
    %v1727 = vtanh.pop %v1726
    %v1728 = vmul.f32 %v1723, %v1727
    %1729 = vmatpush.msra.mxu0 %v477
    %1730 = vmatpush.msra.mxu0 %v473
    %1731 = vmatpush.msra.mxu0 %v469
    %1732 = vmatpush.msra.mxu0 %v465
    %1733 = vmatpush.msra.mxu0 %v461
    %1734 = vmatpush.msra.mxu0 %v457
    %1735 = vmatpush.msra.mxu0 %v453
    %1736 = vmatpush.msra.mxu0 %v449
    %1737 = vmatpush.msra.mxu0 %v445
    %1738 = vmatpush.msra.mxu0 %v441
    %1739 = vmatpush.msra.mxu0 %v437
    %1740 = vmatpush.msra.mxu0 %v433
    %1741 = vmatpush.msra.mxu0 %v429
    %1742 = vmatpush.msra.mxu0 %v425
    %1743 = vmatpush.msra.mxu0 %v421
    %1744 = vmatpush.msra.mxu0 %v417
    %1745 = vmatmul.f32.gmra.mxu0 %v1505
    %v1746 = vpop.f32.mrf.mxu0
    %v1747 = vadd.f32 0.0, %v1746
    %1748 = vdwg.mxu0
    %1749 = vmatpush.msra.mxu0 %v478
    %1750 = vmatpush.msra.mxu0 %v474
    %1751 = vmatpush.msra.mxu0 %v470
    %1752 = vmatpush.msra.mxu0 %v466
    %1753 = vmatpush.msra.mxu0 %v462
    %1754 = vmatpush.msra.mxu0 %v458
    %1755 = vmatpush.msra.mxu0 %v454
    %1756 = vmatpush.msra.mxu0 %v450
    %1757 = vmatpush.msra.mxu0 %v446
    %1758 = vmatpush.msra.mxu0 %v442
    %1759 = vmatpush.msra.mxu0 %v438
    %1760 = vmatpush.msra.mxu0 %v434
    %1761 = vmatpush.msra.mxu0 %v430
    %1762 = vmatpush.msra.mxu0 %v426
    %1763 = vmatpush.msra.mxu0 %v422
    %1764 = vmatpush.msra.mxu0 %v418
    %1765 = vmatmul.f32.gmra.mxu0 %v1505
    %v1766 = vpop.f32.mrf.mxu0
    %v1767 = vadd.f32 0.0, %v1766
    %1768 = vdwg.mxu0
    %1769 = vmatpush.msra.mxu0 %v479
    %1770 = vmatpush.msra.mxu0 %v475
    %1771 = vmatpush.msra.mxu0 %v471
    %1772 = vmatpush.msra.mxu0 %v467
    %1773 = vmatpush.msra.mxu0 %v463
    %1774 = vmatpush.msra.mxu0 %v459
    %1775 = vmatpush.msra.mxu0 %v455
    %1776 = vmatpush.msra.mxu0 %v451
    %1777 = vmatpush.msra.mxu0 %v447
    %1778 = vmatpush.msra.mxu0 %v443
    %1779 = vmatpush.msra.mxu0 %v439
    %1780 = vmatpush.msra.mxu0 %v435
    %1781 = vmatpush.msra.mxu0 %v431
    %1782 = vmatpush.msra.mxu0 %v427
    %1783 = vmatpush.msra.mxu0 %v423
    %1784 = vmatpush.msra.mxu0 %v419
    %1785 = vmatmul.f32.gmra.mxu0 %v1505
    %v1786 = vpop.f32.mrf.mxu0
    %v1787 = vadd.f32 0.0, %v1786
    %1788 = vdwg.mxu0
    %1789 = vmatpush.msra.mxu0 %v480
    %1790 = vmatpush.msra.mxu0 %v476
    %1791 = vmatpush.msra.mxu0 %v472
    %1792 = vmatpush.msra.mxu0 %v468
    %1793 = vmatpush.msra.mxu0 %v464
    %1794 = vmatpush.msra.mxu0 %v460
    %1795 = vmatpush.msra.mxu0 %v456
    %1796 = vmatpush.msra.mxu0 %v452
    %1797 = vmatpush.msra.mxu0 %v448
    %1798 = vmatpush.msra.mxu0 %v444
    %1799 = vmatpush.msra.mxu0 %v440
    %1800 = vmatpush.msra.mxu0 %v436
    %1801 = vmatpush.msra.mxu0 %v432
    %1802 = vmatpush.msra.mxu0 %v428
    %1803 = vmatpush.msra.mxu0 %v424
    %1804 = vmatpush.msra.mxu0 %v420
    %1805 = vmatmul.f32.gmra.mxu0 %v1505
    %v1806 = vpop.f32.mrf.mxu0
    %v1807 = vadd.f32 0.0, %v1806
    %1808 = vdwg.mxu0
    %v1809 = vadd.f32 %v280, %v1747
    %v1810 = vadd.f32 %v321, %v1767
    %v1811 = vadd.f32 %v362, %v1787
    %v1812 = vadd.f32 %v403, %v1807
    %v1813 = vxor.u32 %v1809, 2147483648
    %v1814 = vmul.f32 %v1813, 1.442695
    %v1815 = vpow.pop %v1814
    %v1816 = vadd.f32 %v1815, 1.0
    %v1817 = vrcp.pop %v1816
    %v1818 = vmul.f32 %v1816, %v1817
    %v1819 = vsub.f32 1.0, %v1818
    %v1820 = vmul.f32 %v1817, %v1819
    %v1821 = vadd.f32 %v1817, %v1820
    %vm1822 = vweird.f32 %v1816
    %vm1823 = vweird.f32 %v1817
    %vm1824 = vmor %vm1822, %vm1823
    %v1825 = vsel %vm1824, %v1817, %v1821
    %v1826 = vand.u32 2147483647, %v1816
    %vm1827 = vcmp.eq.f32.partialorder %v1826, 8.507059e+37
    %v1828 = vand.u32 %v1816, 2147483648
    %v1829 = vor.u32 1.1754944e-38, %v1828
    %v1830 = vsel %vm1827, %v1829, %v1825
    %v1831 = vmul.f32 1.0, %v1830
    %v1832 = vxor.u32 %v1810, 2147483648
    %v1833 = vmul.f32 %v1832, 1.442695
    %v1834 = vpow.pop %v1833
    %v1835 = vadd.f32 %v1834, 1.0
    %v1836 = vrcp.pop %v1835
    %v1837 = vmul.f32 %v1835, %v1836
    %v1838 = vsub.f32 1.0, %v1837
    %v1839 = vmul.f32 %v1836, %v1838
    %v1840 = vadd.f32 %v1836, %v1839
    %vm1841 = vweird.f32 %v1835
    %vm1842 = vweird.f32 %v1836
    %vm1843 = vmor %vm1841, %vm1842
    %v1844 = vsel %vm1843, %v1836, %v1840
    %v1845 = vand.u32 2147483647, %v1835
    %vm1846 = vcmp.eq.f32.partialorder %v1845, 8.507059e+37
    %v1847 = vand.u32 %v1835, 2147483648
    %v1848 = vor.u32 1.1754944e-38, %v1847
    %v1849 = vsel %vm1846, %v1848, %v1844
    %v1850 = vmul.f32 1.0, %v1849
    %v1851 = vtanh.pop %v1811
    %v1852 = vxor.u32 %v1812, 2147483648
    %v1853 = vmul.f32 %v1852, 1.442695
    %v1854 = vpow.pop %v1853
    %v1855 = vadd.f32 %v1854, 1.0
    %v1856 = vrcp.pop %v1855
    %v1857 = vmul.f32 %v1855, %v1856
    %v1858 = vsub.f32 1.0, %v1857
    %v1859 = vmul.f32 %v1856, %v1858
    %v1860 = vadd.f32 %v1856, %v1859
    %vm1861 = vweird.f32 %v1855
    %vm1862 = vweird.f32 %v1856
    %vm1863 = vmor %vm1861, %vm1862
    %v1864 = vsel %vm1863, %v1856, %v1860
    %v1865 = vand.u32 2147483647, %v1855
    %vm1866 = vcmp.eq.f32.partialorder %v1865, 8.507059e+37
    %v1867 = vand.u32 %v1855, 2147483648
    %v1868 = vor.u32 1.1754944e-38, %v1867
    %v1869 = vsel %vm1866, %v1868, %v1864
    %v1870 = vmul.f32 1.0, %v1869
    %v1871 = vmul.f32 %v1850, %v1503
    %v1872 = vmul.f32 %v1831, %v1851
    %v1873 = vadd.f32 %v1871, %v1872
    %v1874 = vtanh.pop %v1873
    %v1875 = vmul.f32 %v1870, %v1874
    %1876 = vmatpush.msra.mxu0 %v541
    %1877 = vmatpush.msra.mxu0 %v537
    %1878 = vmatpush.msra.mxu0 %v533
    %1879 = vmatpush.msra.mxu0 %v529
    %1880 = vmatpush.msra.mxu0 %v525
    %1881 = vmatpush.msra.mxu0 %v521
    %1882 = vmatpush.msra.mxu0 %v517
    %1883 = vmatpush.msra.mxu0 %v513
    %1884 = vmatpush.msra.mxu0 %v509
    %1885 = vmatpush.msra.mxu0 %v505
    %1886 = vmatpush.msra.mxu0 %v501
    %1887 = vmatpush.msra.mxu0 %v497
    %1888 = vmatpush.msra.mxu0 %v493
    %1889 = vmatpush.msra.mxu0 %v489
    %1890 = vmatpush.msra.mxu0 %v485
    %1891 = vmatpush.msra.mxu0 %v481
    %1892 = vmatmul.f32.gmra.mxu0 %v1875
    %v1893 = vpop.f32.mrf.mxu0
    %v1894 = vadd.f32 %v758, %v1893
    %1895 = vdwg.mxu0
    %1896 = vmatpush.msra.mxu0 %v605
    %1897 = vmatpush.msra.mxu0 %v601
    %1898 = vmatpush.msra.mxu0 %v597
    %1899 = vmatpush.msra.mxu0 %v593
    %1900 = vmatpush.msra.mxu0 %v589
    %1901 = vmatpush.msra.mxu0 %v585
    %1902 = vmatpush.msra.mxu0 %v581
    %1903 = vmatpush.msra.mxu0 %v577
    %1904 = vmatpush.msra.mxu0 %v573
    %1905 = vmatpush.msra.mxu0 %v569
    %1906 = vmatpush.msra.mxu0 %v565
    %1907 = vmatpush.msra.mxu0 %v561
    %1908 = vmatpush.msra.mxu0 %v557
    %1909 = vmatpush.msra.mxu0 %v553
    %1910 = vmatpush.msra.mxu0 %v549
    %1911 = vmatpush.msra.mxu0 %v545
    %1912 = vmatmul.f32.gmra.mxu0 %v1728
    %v1913 = vpop.f32.mrf.mxu0
    %v1914 = vadd.f32 %v1894, %v1913
    %1915 = vdwg.mxu0
    %1916 = vmatpush.msra.mxu0 %v542
    %1917 = vmatpush.msra.mxu0 %v538
    %1918 = vmatpush.msra.mxu0 %v534
    %1919 = vmatpush.msra.mxu0 %v530
    %1920 = vmatpush.msra.mxu0 %v526
    %1921 = vmatpush.msra.mxu0 %v522
    %1922 = vmatpush.msra.mxu0 %v518
    %1923 = vmatpush.msra.mxu0 %v514
    %1924 = vmatpush.msra.mxu0 %v510
    %1925 = vmatpush.msra.mxu0 %v506
    %1926 = vmatpush.msra.mxu0 %v502
    %1927 = vmatpush.msra.mxu0 %v498
    %1928 = vmatpush.msra.mxu0 %v494
    %1929 = vmatpush.msra.mxu0 %v490
    %1930 = vmatpush.msra.mxu0 %v486
    %1931 = vmatpush.msra.mxu0 %v482
    %1932 = vmatmul.f32.gmra.mxu0 %v1875
    %v1933 = vpop.f32.mrf.mxu0
    %v1934 = vadd.f32 %v759, %v1933
    %1935 = vdwg.mxu0
    %1936 = vmatpush.msra.mxu0 %v606
    %1937 = vmatpush.msra.mxu0 %v602
    %1938 = vmatpush.msra.mxu0 %v598
    %1939 = vmatpush.msra.mxu0 %v594
    %1940 = vmatpush.msra.mxu0 %v590
    %1941 = vmatpush.msra.mxu0 %v586
    %1942 = vmatpush.msra.mxu0 %v582
    %1943 = vmatpush.msra.mxu0 %v578
    %1944 = vmatpush.msra.mxu0 %v574
    %1945 = vmatpush.msra.mxu0 %v570
    %1946 = vmatpush.msra.mxu0 %v566
    %1947 = vmatpush.msra.mxu0 %v562
    %1948 = vmatpush.msra.mxu0 %v558
    %1949 = vmatpush.msra.mxu0 %v554
    %1950 = vmatpush.msra.mxu0 %v550
    %1951 = vmatpush.msra.mxu0 %v546
    %1952 = vmatmul.f32.gmra.mxu0 %v1728
    %v1953 = vpop.f32.mrf.mxu0
    %v1954 = vadd.f32 %v1934, %v1953
    %1955 = vdwg.mxu0
    %1956 = vmatpush.msra.mxu0 %v543
    %1957 = vmatpush.msra.mxu0 %v539
    %1958 = vmatpush.msra.mxu0 %v535
    %1959 = vmatpush.msra.mxu0 %v531
    %1960 = vmatpush.msra.mxu0 %v527
    %1961 = vmatpush.msra.mxu0 %v523
    %1962 = vmatpush.msra.mxu0 %v519
    %1963 = vmatpush.msra.mxu0 %v515
    %1964 = vmatpush.msra.mxu0 %v511
    %1965 = vmatpush.msra.mxu0 %v507
    %1966 = vmatpush.msra.mxu0 %v503
    %1967 = vmatpush.msra.mxu0 %v499
    %1968 = vmatpush.msra.mxu0 %v495
    %1969 = vmatpush.msra.mxu0 %v491
    %1970 = vmatpush.msra.mxu0 %v487
    %1971 = vmatpush.msra.mxu0 %v483
    %1972 = vmatmul.f32.gmra.mxu0 %v1875
    %v1973 = vpop.f32.mrf.mxu0
    %v1974 = vadd.f32 %v760, %v1973
    %1975 = vdwg.mxu0
    %1976 = vmatpush.msra.mxu0 %v607
    %1977 = vmatpush.msra.mxu0 %v603
    %1978 = vmatpush.msra.mxu0 %v599
    %1979 = vmatpush.msra.mxu0 %v595
    %1980 = vmatpush.msra.mxu0 %v591
    %1981 = vmatpush.msra.mxu0 %v587
    %1982 = vmatpush.msra.mxu0 %v583
    %1983 = vmatpush.msra.mxu0 %v579
    %1984 = vmatpush.msra.mxu0 %v575
    %1985 = vmatpush.msra.mxu0 %v571
    %1986 = vmatpush.msra.mxu0 %v567
    %1987 = vmatpush.msra.mxu0 %v563
    %1988 = vmatpush.msra.mxu0 %v559
    %1989 = vmatpush.msra.mxu0 %v555
    %1990 = vmatpush.msra.mxu0 %v551
    %1991 = vmatpush.msra.mxu0 %v547
    %1992 = vmatmul.f32.gmra.mxu0 %v1728
    %v1993 = vpop.f32.mrf.mxu0
    %v1994 = vadd.f32 %v1974, %v1993
    %1995 = vdwg.mxu0
    %1996 = vmatpush.msra.mxu0 %v544
    %1997 = vmatpush.msra.mxu0 %v540
    %1998 = vmatpush.msra.mxu0 %v536
    %1999 = vmatpush.msra.mxu0 %v532
    %2000 = vmatpush.msra.mxu0 %v528
    %2001 = vmatpush.msra.mxu0 %v524
    %2002 = vmatpush.msra.mxu0 %v520
    %2003 = vmatpush.msra.mxu0 %v516
    %2004 = vmatpush.msra.mxu0 %v512
    %2005 = vmatpush.msra.mxu0 %v508
    %2006 = vmatpush.msra.mxu0 %v504
    %2007 = vmatpush.msra.mxu0 %v500
    %2008 = vmatpush.msra.mxu0 %v496
    %2009 = vmatpush.msra.mxu0 %v492
    %2010 = vmatpush.msra.mxu0 %v488
    %2011 = vmatpush.msra.mxu0 %v484
    %2012 = vmatmul.f32.gmra.mxu0 %v1875
    %v2013 = vpop.f32.mrf.mxu0
    %v2014 = vadd.f32 %v761, %v2013
    %2015 = vdwg.mxu0
    %2016 = vmatpush.msra.mxu0 %v608
    %2017 = vmatpush.msra.mxu0 %v604
    %2018 = vmatpush.msra.mxu0 %v600
    %2019 = vmatpush.msra.mxu0 %v596
    %2020 = vmatpush.msra.mxu0 %v592
    %2021 = vmatpush.msra.mxu0 %v588
    %2022 = vmatpush.msra.mxu0 %v584
    %2023 = vmatpush.msra.mxu0 %v580
    %2024 = vmatpush.msra.mxu0 %v576
    %2025 = vmatpush.msra.mxu0 %v572
    %2026 = vmatpush.msra.mxu0 %v568
    %2027 = vmatpush.msra.mxu0 %v564
    %2028 = vmatpush.msra.mxu0 %v560
    %2029 = vmatpush.msra.mxu0 %v556
    %2030 = vmatpush.msra.mxu0 %v552
    %2031 = vmatpush.msra.mxu0 %v548
    %2032 = vmatmul.f32.gmra.mxu0 %v1728
    %v2033 = vpop.f32.mrf.mxu0
    %v2034 = vadd.f32 %v2014, %v2033
    %2035 = vdwg.mxu0
    %v2036 = vxor.u32 %v1914, 2147483648
    %v2037 = vmul.f32 %v2036, 1.442695
    %v2038 = vpow.pop %v2037
    %v2039 = vadd.f32 %v2038, 1.0
    %v2040 = vrcp.pop %v2039
    %v2041 = vmul.f32 %v2039, %v2040
    %v2042 = vsub.f32 1.0, %v2041
    %v2043 = vmul.f32 %v2040, %v2042
    %v2044 = vadd.f32 %v2040, %v2043
    %vm2045 = vweird.f32 %v2039
    %vm2046 = vweird.f32 %v2040
    %vm2047 = vmor %vm2045, %vm2046
    %v2048 = vsel %vm2047, %v2040, %v2044
    %v2049 = vand.u32 2147483647, %v2039
    %vm2050 = vcmp.eq.f32.partialorder %v2049, 8.507059e+37
    %v2051 = vand.u32 %v2039, 2147483648
    %v2052 = vor.u32 1.1754944e-38, %v2051
    %v2053 = vsel %vm2050, %v2052, %v2048
    %v2054 = vmul.f32 1.0, %v2053
    %v2055 = vxor.u32 %v1954, 2147483648
    %v2056 = vmul.f32 %v2055, 1.442695
    %v2057 = vpow.pop %v2056
    %v2058 = vadd.f32 %v2057, 1.0
    %v2059 = vrcp.pop %v2058
    %v2060 = vmul.f32 %v2058, %v2059
    %v2061 = vsub.f32 1.0, %v2060
    %v2062 = vmul.f32 %v2059, %v2061
    %v2063 = vadd.f32 %v2059, %v2062
    %vm2064 = vweird.f32 %v2058
    %vm2065 = vweird.f32 %v2059
    %vm2066 = vmor %vm2064, %vm2065
    %v2067 = vsel %vm2066, %v2059, %v2063
    %v2068 = vand.u32 2147483647, %v2058
    %vm2069 = vcmp.eq.f32.partialorder %v2068, 8.507059e+37
    %v2070 = vand.u32 %v2058, 2147483648
    %v2071 = vor.u32 1.1754944e-38, %v2070
    %v2072 = vsel %vm2069, %v2071, %v2067
    %v2073 = vmul.f32 1.0, %v2072
    %v2074 = vtanh.pop %v1994
    %v2075 = vxor.u32 %v2034, 2147483648
    %v2076 = vmul.f32 %v2075, 1.442695
    %v2077 = vpow.pop %v2076
    %v2078 = vadd.f32 %v2077, 1.0
    %v2079 = vrcp.pop %v2078
    %v2080 = vmul.f32 %v2078, %v2079
    %v2081 = vsub.f32 1.0, %v2080
    %v2082 = vmul.f32 %v2079, %v2081
    %v2083 = vadd.f32 %v2079, %v2082
    %vm2084 = vweird.f32 %v2078
    %vm2085 = vweird.f32 %v2079
    %vm2086 = vmor %vm2084, %vm2085
    %v2087 = vsel %vm2086, %v2079, %v2083
    %v2088 = vand.u32 2147483647, %v2078
    %vm2089 = vcmp.eq.f32.partialorder %v2088, 8.507059e+37
    %v2090 = vand.u32 %v2078, 2147483648
    %v2091 = vor.u32 1.1754944e-38, %v2090
    %v2092 = vsel %vm2089, %v2091, %v2087
    %v2093 = vmul.f32 1.0, %v2092
    %v2094 = vmul.f32 %v2073, %v1726
    %v2095 = vmul.f32 %v2054, %v2074
    %v2096 = vadd.f32 %v2094, %v2095
    %v2097 = vtanh.pop %v2096
    %v2098 = vmul.f32 %v2093, %v2097
    %2099 = vmatpush.msra.mxu0 %v477
    %2100 = vmatpush.msra.mxu0 %v473
    %2101 = vmatpush.msra.mxu0 %v469
    %2102 = vmatpush.msra.mxu0 %v465
    %2103 = vmatpush.msra.mxu0 %v461
    %2104 = vmatpush.msra.mxu0 %v457
    %2105 = vmatpush.msra.mxu0 %v453
    %2106 = vmatpush.msra.mxu0 %v449
    %2107 = vmatpush.msra.mxu0 %v445
    %2108 = vmatpush.msra.mxu0 %v441
    %2109 = vmatpush.msra.mxu0 %v437
    %2110 = vmatpush.msra.mxu0 %v433
    %2111 = vmatpush.msra.mxu0 %v429
    %2112 = vmatpush.msra.mxu0 %v425
    %2113 = vmatpush.msra.mxu0 %v421
    %2114 = vmatpush.msra.mxu0 %v417
    %2115 = vmatmul.f32.gmra.mxu0 %v1875
    %v2116 = vpop.f32.mrf.mxu0
    %v2117 = vadd.f32 0.0, %v2116
    %2118 = vdwg.mxu0
    %2119 = vmatpush.msra.mxu0 %v478
    %2120 = vmatpush.msra.mxu0 %v474
    %2121 = vmatpush.msra.mxu0 %v470
    %2122 = vmatpush.msra.mxu0 %v466
    %2123 = vmatpush.msra.mxu0 %v462
    %2124 = vmatpush.msra.mxu0 %v458
    %2125 = vmatpush.msra.mxu0 %v454
    %2126 = vmatpush.msra.mxu0 %v450
    %2127 = vmatpush.msra.mxu0 %v446
    %2128 = vmatpush.msra.mxu0 %v442
    %2129 = vmatpush.msra.mxu0 %v438
    %2130 = vmatpush.msra.mxu0 %v434
    %2131 = vmatpush.msra.mxu0 %v430
    %2132 = vmatpush.msra.mxu0 %v426
    %2133 = vmatpush.msra.mxu0 %v422
    %2134 = vmatpush.msra.mxu0 %v418
    %2135 = vmatmul.f32.gmra.mxu0 %v1875
    %v2136 = vpop.f32.mrf.mxu0
    %v2137 = vadd.f32 0.0, %v2136
    %2138 = vdwg.mxu0
    %2139 = vmatpush.msra.mxu0 %v479
    %2140 = vmatpush.msra.mxu0 %v475
    %2141 = vmatpush.msra.mxu0 %v471
    %2142 = vmatpush.msra.mxu0 %v467
    %2143 = vmatpush.msra.mxu0 %v463
    %2144 = vmatpush.msra.mxu0 %v459
    %2145 = vmatpush.msra.mxu0 %v455
    %2146 = vmatpush.msra.mxu0 %v451
    %2147 = vmatpush.msra.mxu0 %v447
    %2148 = vmatpush.msra.mxu0 %v443
    %2149 = vmatpush.msra.mxu0 %v439
    %2150 = vmatpush.msra.mxu0 %v435
    %2151 = vmatpush.msra.mxu0 %v431
    %2152 = vmatpush.msra.mxu0 %v427
    %2153 = vmatpush.msra.mxu0 %v423
    %2154 = vmatpush.msra.mxu0 %v419
    %2155 = vmatmul.f32.gmra.mxu0 %v1875
    %v2156 = vpop.f32.mrf.mxu0
    %v2157 = vadd.f32 0.0, %v2156
    %2158 = vdwg.mxu0
    %2159 = vmatpush.msra.mxu0 %v480
    %2160 = vmatpush.msra.mxu0 %v476
    %2161 = vmatpush.msra.mxu0 %v472
    %2162 = vmatpush.msra.mxu0 %v468
    %2163 = vmatpush.msra.mxu0 %v464
    %2164 = vmatpush.msra.mxu0 %v460
    %2165 = vmatpush.msra.mxu0 %v456
    %2166 = vmatpush.msra.mxu0 %v452
    %2167 = vmatpush.msra.mxu0 %v448
    %2168 = vmatpush.msra.mxu0 %v444
    %2169 = vmatpush.msra.mxu0 %v440
    %2170 = vmatpush.msra.mxu0 %v436
    %2171 = vmatpush.msra.mxu0 %v432
    %2172 = vmatpush.msra.mxu0 %v428
    %2173 = vmatpush.msra.mxu0 %v424
    %2174 = vmatpush.msra.mxu0 %v420
    %2175 = vmatmul.f32.gmra.mxu0 %v1875
    %v2176 = vpop.f32.mrf.mxu0
    %v2177 = vadd.f32 0.0, %v2176
    %2178 = vdwg.mxu0
    %v2179 = vadd.f32 %v283, %v2117
    %v2180 = vadd.f32 %v324, %v2137
    %v2181 = vadd.f32 %v365, %v2157
    %v2182 = vadd.f32 %v406, %v2177
    %v2183 = vxor.u32 %v2179, 2147483648
    %v2184 = vmul.f32 %v2183, 1.442695
    %v2185 = vpow.pop %v2184
    %v2186 = vadd.f32 %v2185, 1.0
    %v2187 = vrcp.pop %v2186
    %v2188 = vmul.f32 %v2186, %v2187
    %v2189 = vsub.f32 1.0, %v2188
    %v2190 = vmul.f32 %v2187, %v2189
    %v2191 = vadd.f32 %v2187, %v2190
    %vm2192 = vweird.f32 %v2186
    %vm2193 = vweird.f32 %v2187
    %vm2194 = vmor %vm2192, %vm2193
    %v2195 = vsel %vm2194, %v2187, %v2191
    %v2196 = vand.u32 2147483647, %v2186
    %vm2197 = vcmp.eq.f32.partialorder %v2196, 8.507059e+37
    %v2198 = vand.u32 %v2186, 2147483648
    %v2199 = vor.u32 1.1754944e-38, %v2198
    %v2200 = vsel %vm2197, %v2199, %v2195
    %v2201 = vmul.f32 1.0, %v2200
    %v2202 = vxor.u32 %v2180, 2147483648
    %v2203 = vmul.f32 %v2202, 1.442695
    %v2204 = vpow.pop %v2203
    %v2205 = vadd.f32 %v2204, 1.0
    %v2206 = vrcp.pop %v2205
    %v2207 = vmul.f32 %v2205, %v2206
    %v2208 = vsub.f32 1.0, %v2207
    %v2209 = vmul.f32 %v2206, %v2208
    %v2210 = vadd.f32 %v2206, %v2209
    %vm2211 = vweird.f32 %v2205
    %vm2212 = vweird.f32 %v2206
    %vm2213 = vmor %vm2211, %vm2212
    %v2214 = vsel %vm2213, %v2206, %v2210
    %v2215 = vand.u32 2147483647, %v2205
    %vm2216 = vcmp.eq.f32.partialorder %v2215, 8.507059e+37
    %v2217 = vand.u32 %v2205, 2147483648
    %v2218 = vor.u32 1.1754944e-38, %v2217
    %v2219 = vsel %vm2216, %v2218, %v2214
    %v2220 = vmul.f32 1.0, %v2219
    %v2221 = vtanh.pop %v2181
    %v2222 = vxor.u32 %v2182, 2147483648
    %v2223 = vmul.f32 %v2222, 1.442695
    %v2224 = vpow.pop %v2223
    %v2225 = vadd.f32 %v2224, 1.0
    %v2226 = vrcp.pop %v2225
    %v2227 = vmul.f32 %v2225, %v2226
    %v2228 = vsub.f32 1.0, %v2227
    %v2229 = vmul.f32 %v2226, %v2228
    %v2230 = vadd.f32 %v2226, %v2229
    %vm2231 = vweird.f32 %v2225
    %vm2232 = vweird.f32 %v2226
    %vm2233 = vmor %vm2231, %vm2232
    %v2234 = vsel %vm2233, %v2226, %v2230
    %v2235 = vand.u32 2147483647, %v2225
    %vm2236 = vcmp.eq.f32.partialorder %v2235, 8.507059e+37
    %v2237 = vand.u32 %v2225, 2147483648
    %v2238 = vor.u32 1.1754944e-38, %v2237
    %v2239 = vsel %vm2236, %v2238, %v2234
    %v2240 = vmul.f32 1.0, %v2239
    %v2241 = vmul.f32 %v2220, %v1873
    %v2242 = vmul.f32 %v2201, %v2221
    %v2243 = vadd.f32 %v2241, %v2242
    %v2244 = vtanh.pop %v2243
    %v2245 = vmul.f32 %v2240, %v2244
    %2246 = vmatpush.msra.mxu0 %v541
    %2247 = vmatpush.msra.mxu0 %v537
    %2248 = vmatpush.msra.mxu0 %v533
    %2249 = vmatpush.msra.mxu0 %v529
    %2250 = vmatpush.msra.mxu0 %v525
    %2251 = vmatpush.msra.mxu0 %v521
    %2252 = vmatpush.msra.mxu0 %v517
    %2253 = vmatpush.msra.mxu0 %v513
    %2254 = vmatpush.msra.mxu0 %v509
    %2255 = vmatpush.msra.mxu0 %v505
    %2256 = vmatpush.msra.mxu0 %v501
    %2257 = vmatpush.msra.mxu0 %v497
    %2258 = vmatpush.msra.mxu0 %v493
    %2259 = vmatpush.msra.mxu0 %v489
    %2260 = vmatpush.msra.mxu0 %v485
    %2261 = vmatpush.msra.mxu0 %v481
    %2262 = vmatmul.f32.gmra.mxu0 %v2245
    %v2263 = vpop.f32.mrf.mxu0
    %v2264 = vadd.f32 %v758, %v2263
    %2265 = vdwg.mxu0
    %2266 = vmatpush.msra.mxu0 %v605
    %2267 = vmatpush.msra.mxu0 %v601
    %2268 = vmatpush.msra.mxu0 %v597
    %2269 = vmatpush.msra.mxu0 %v593
    %2270 = vmatpush.msra.mxu0 %v589
    %2271 = vmatpush.msra.mxu0 %v585
    %2272 = vmatpush.msra.mxu0 %v581
    %2273 = vmatpush.msra.mxu0 %v577
    %2274 = vmatpush.msra.mxu0 %v573
    %2275 = vmatpush.msra.mxu0 %v569
    %2276 = vmatpush.msra.mxu0 %v565
    %2277 = vmatpush.msra.mxu0 %v561
    %2278 = vmatpush.msra.mxu0 %v557
    %2279 = vmatpush.msra.mxu0 %v553
    %2280 = vmatpush.msra.mxu0 %v549
    %2281 = vmatpush.msra.mxu0 %v545
    %2282 = vmatmul.f32.gmra.mxu0 %v2098
    %v2283 = vpop.f32.mrf.mxu0
    %v2284 = vadd.f32 %v2264, %v2283
    %2285 = vdwg.mxu0
    %2286 = vmatpush.msra.mxu0 %v542
    %2287 = vmatpush.msra.mxu0 %v538
    %2288 = vmatpush.msra.mxu0 %v534
    %2289 = vmatpush.msra.mxu0 %v530
    %2290 = vmatpush.msra.mxu0 %v526
    %2291 = vmatpush.msra.mxu0 %v522
    %2292 = vmatpush.msra.mxu0 %v518
    %2293 = vmatpush.msra.mxu0 %v514
    %2294 = vmatpush.msra.mxu0 %v510
    %2295 = vmatpush.msra.mxu0 %v506
    %2296 = vmatpush.msra.mxu0 %v502
    %2297 = vmatpush.msra.mxu0 %v498
    %2298 = vmatpush.msra.mxu0 %v494
    %2299 = vmatpush.msra.mxu0 %v490
    %2300 = vmatpush.msra.mxu0 %v486
    %2301 = vmatpush.msra.mxu0 %v482
    %2302 = vmatmul.f32.gmra.mxu0 %v2245
    %v2303 = vpop.f32.mrf.mxu0
    %v2304 = vadd.f32 %v759, %v2303
    %2305 = vdwg.mxu0
    %2306 = vmatpush.msra.mxu0 %v606
    %2307 = vmatpush.msra.mxu0 %v602
    %2308 = vmatpush.msra.mxu0 %v598
    %2309 = vmatpush.msra.mxu0 %v594
    %2310 = vmatpush.msra.mxu0 %v590
    %2311 = vmatpush.msra.mxu0 %v586
    %2312 = vmatpush.msra.mxu0 %v582
    %2313 = vmatpush.msra.mxu0 %v578
    %2314 = vmatpush.msra.mxu0 %v574
    %2315 = vmatpush.msra.mxu0 %v570
    %2316 = vmatpush.msra.mxu0 %v566
    %2317 = vmatpush.msra.mxu0 %v562
    %2318 = vmatpush.msra.mxu0 %v558
    %2319 = vmatpush.msra.mxu0 %v554
    %2320 = vmatpush.msra.mxu0 %v550
    %2321 = vmatpush.msra.mxu0 %v546
    %2322 = vmatmul.f32.gmra.mxu0 %v2098
    %v2323 = vpop.f32.mrf.mxu0
    %v2324 = vadd.f32 %v2304, %v2323
    %2325 = vdwg.mxu0
    %2326 = vmatpush.msra.mxu0 %v543
    %2327 = vmatpush.msra.mxu0 %v539
    %2328 = vmatpush.msra.mxu0 %v535
    %2329 = vmatpush.msra.mxu0 %v531
    %2330 = vmatpush.msra.mxu0 %v527
    %2331 = vmatpush.msra.mxu0 %v523
    %2332 = vmatpush.msra.mxu0 %v519
    %2333 = vmatpush.msra.mxu0 %v515
    %2334 = vmatpush.msra.mxu0 %v511
    %2335 = vmatpush.msra.mxu0 %v507
    %2336 = vmatpush.msra.mxu0 %v503
    %2337 = vmatpush.msra.mxu0 %v499
    %2338 = vmatpush.msra.mxu0 %v495
    %2339 = vmatpush.msra.mxu0 %v491
    %2340 = vmatpush.msra.mxu0 %v487
    %2341 = vmatpush.msra.mxu0 %v483
    %2342 = vmatmul.f32.gmra.mxu0 %v2245
    %v2343 = vpop.f32.mrf.mxu0
    %v2344 = vadd.f32 %v760, %v2343
    %2345 = vdwg.mxu0
    %2346 = vmatpush.msra.mxu0 %v607
    %2347 = vmatpush.msra.mxu0 %v603
    %2348 = vmatpush.msra.mxu0 %v599
    %2349 = vmatpush.msra.mxu0 %v595
    %2350 = vmatpush.msra.mxu0 %v591
    %2351 = vmatpush.msra.mxu0 %v587
    %2352 = vmatpush.msra.mxu0 %v583
    %2353 = vmatpush.msra.mxu0 %v579
    %2354 = vmatpush.msra.mxu0 %v575
    %2355 = vmatpush.msra.mxu0 %v571
    %2356 = vmatpush.msra.mxu0 %v567
    %2357 = vmatpush.msra.mxu0 %v563
    %2358 = vmatpush.msra.mxu0 %v559
    %2359 = vmatpush.msra.mxu0 %v555
    %2360 = vmatpush.msra.mxu0 %v551
    %2361 = vmatpush.msra.mxu0 %v547
    %2362 = vmatmul.f32.gmra.mxu0 %v2098
    %v2363 = vpop.f32.mrf.mxu0
    %v2364 = vadd.f32 %v2344, %v2363
    %2365 = vdwg.mxu0
    %2366 = vmatpush.msra.mxu0 %v544
    %2367 = vmatpush.msra.mxu0 %v540
    %2368 = vmatpush.msra.mxu0 %v536
    %2369 = vmatpush.msra.mxu0 %v532
    %2370 = vmatpush.msra.mxu0 %v528
    %2371 = vmatpush.msra.mxu0 %v524
    %2372 = vmatpush.msra.mxu0 %v520
    %2373 = vmatpush.msra.mxu0 %v516
    %2374 = vmatpush.msra.mxu0 %v512
    %2375 = vmatpush.msra.mxu0 %v508
    %2376 = vmatpush.msra.mxu0 %v504
    %2377 = vmatpush.msra.mxu0 %v500
    %2378 = vmatpush.msra.mxu0 %v496
    %2379 = vmatpush.msra.mxu0 %v492
    %2380 = vmatpush.msra.mxu0 %v488
    %2381 = vmatpush.msra.mxu0 %v484
    %2382 = vmatmul.f32.gmra.mxu0 %v2245
    %v2383 = vpop.f32.mrf.mxu0
    %v2384 = vadd.f32 %v761, %v2383
    %2385 = vdwg.mxu0
    %2386 = vmatpush.msra.mxu0 %v608
    %2387 = vmatpush.msra.mxu0 %v604
    %2388 = vmatpush.msra.mxu0 %v600
    %2389 = vmatpush.msra.mxu0 %v596
    %2390 = vmatpush.msra.mxu0 %v592
    %2391 = vmatpush.msra.mxu0 %v588
    %2392 = vmatpush.msra.mxu0 %v584
    %2393 = vmatpush.msra.mxu0 %v580
    %2394 = vmatpush.msra.mxu0 %v576
    %2395 = vmatpush.msra.mxu0 %v572
    %2396 = vmatpush.msra.mxu0 %v568
    %2397 = vmatpush.msra.mxu0 %v564
    %2398 = vmatpush.msra.mxu0 %v560
    %2399 = vmatpush.msra.mxu0 %v556
    %2400 = vmatpush.msra.mxu0 %v552
    %2401 = vmatpush.msra.mxu0 %v548
    %2402 = vmatmul.f32.gmra.mxu0 %v2098
    %v2403 = vpop.f32.mrf.mxu0
    %v2404 = vadd.f32 %v2384, %v2403
    %2405 = vdwg.mxu0
    %v2406 = vxor.u32 %v2284, 2147483648
    %v2407 = vmul.f32 %v2406, 1.442695
    %v2408 = vpow.pop %v2407
    %v2409 = vadd.f32 %v2408, 1.0
    %v2410 = vrcp.pop %v2409
    %v2411 = vmul.f32 %v2409, %v2410
    %v2412 = vsub.f32 1.0, %v2411
    %v2413 = vmul.f32 %v2410, %v2412
    %v2414 = vadd.f32 %v2410, %v2413
    %vm2415 = vweird.f32 %v2409
    %vm2416 = vweird.f32 %v2410
    %vm2417 = vmor %vm2415, %vm2416
    %v2418 = vsel %vm2417, %v2410, %v2414
    %v2419 = vand.u32 2147483647, %v2409
    %vm2420 = vcmp.eq.f32.partialorder %v2419, 8.507059e+37
    %v2421 = vand.u32 %v2409, 2147483648
    %v2422 = vor.u32 1.1754944e-38, %v2421
    %v2423 = vsel %vm2420, %v2422, %v2418
    %v2424 = vmul.f32 1.0, %v2423
    %v2425 = vxor.u32 %v2324, 2147483648
    %v2426 = vmul.f32 %v2425, 1.442695
    %v2427 = vpow.pop %v2426
    %v2428 = vadd.f32 %v2427, 1.0
    %v2429 = vrcp.pop %v2428
    %v2430 = vmul.f32 %v2428, %v2429
    %v2431 = vsub.f32 1.0, %v2430
    %v2432 = vmul.f32 %v2429, %v2431
    %v2433 = vadd.f32 %v2429, %v2432
    %vm2434 = vweird.f32 %v2428
    %vm2435 = vweird.f32 %v2429
    %vm2436 = vmor %vm2434, %vm2435
    %v2437 = vsel %vm2436, %v2429, %v2433
    %v2438 = vand.u32 2147483647, %v2428
    %vm2439 = vcmp.eq.f32.partialorder %v2438, 8.507059e+37
    %v2440 = vand.u32 %v2428, 2147483648
    %v2441 = vor.u32 1.1754944e-38, %v2440
    %v2442 = vsel %vm2439, %v2441, %v2437
    %v2443 = vmul.f32 1.0, %v2442
    %v2444 = vtanh.pop %v2364
    %v2445 = vxor.u32 %v2404, 2147483648
    %v2446 = vmul.f32 %v2445, 1.442695
    %v2447 = vpow.pop %v2446
    %v2448 = vadd.f32 %v2447, 1.0
    %v2449 = vrcp.pop %v2448
    %v2450 = vmul.f32 %v2448, %v2449
    %v2451 = vsub.f32 1.0, %v2450
    %v2452 = vmul.f32 %v2449, %v2451
    %v2453 = vadd.f32 %v2449, %v2452
    %vm2454 = vweird.f32 %v2448
    %vm2455 = vweird.f32 %v2449
    %vm2456 = vmor %vm2454, %vm2455
    %v2457 = vsel %vm2456, %v2449, %v2453
    %v2458 = vand.u32 2147483647, %v2448
    %vm2459 = vcmp.eq.f32.partialorder %v2458, 8.507059e+37
    %v2460 = vand.u32 %v2448, 2147483648
    %v2461 = vor.u32 1.1754944e-38, %v2460
    %v2462 = vsel %vm2459, %v2461, %v2457
    %v2463 = vmul.f32 1.0, %v2462
    %v2464 = vmul.f32 %v2443, %v2096
    %v2465 = vmul.f32 %v2424, %v2444
    %v2466 = vadd.f32 %v2464, %v2465
    %v2467 = vtanh.pop %v2466
    %v2468 = vmul.f32 %v2463, %v2467
    %2469 = vmatpush.msra.mxu0 %v477
    %2470 = vmatpush.msra.mxu0 %v473
    %2471 = vmatpush.msra.mxu0 %v469
    %2472 = vmatpush.msra.mxu0 %v465
    %2473 = vmatpush.msra.mxu0 %v461
    %2474 = vmatpush.msra.mxu0 %v457
    %2475 = vmatpush.msra.mxu0 %v453
    %2476 = vmatpush.msra.mxu0 %v449
    %2477 = vmatpush.msra.mxu0 %v445
    %2478 = vmatpush.msra.mxu0 %v441
    %2479 = vmatpush.msra.mxu0 %v437
    %2480 = vmatpush.msra.mxu0 %v433
    %2481 = vmatpush.msra.mxu0 %v429
    %2482 = vmatpush.msra.mxu0 %v425
    %2483 = vmatpush.msra.mxu0 %v421
    %2484 = vmatpush.msra.mxu0 %v417
    %2485 = vmatmul.f32.gmra.mxu0 %v2245
    %v2486 = vpop.f32.mrf.mxu0
    %v2487 = vadd.f32 0.0, %v2486
    %2488 = vdwg.mxu0
    %2489 = vmatpush.msra.mxu0 %v478
    %2490 = vmatpush.msra.mxu0 %v474
    %2491 = vmatpush.msra.mxu0 %v470
    %2492 = vmatpush.msra.mxu0 %v466
    %2493 = vmatpush.msra.mxu0 %v462
    %2494 = vmatpush.msra.mxu0 %v458
    %2495 = vmatpush.msra.mxu0 %v454
    %2496 = vmatpush.msra.mxu0 %v450
    %2497 = vmatpush.msra.mxu0 %v446
    %2498 = vmatpush.msra.mxu0 %v442
    %2499 = vmatpush.msra.mxu0 %v438
    %2500 = vmatpush.msra.mxu0 %v434
    %2501 = vmatpush.msra.mxu0 %v430
    %2502 = vmatpush.msra.mxu0 %v426
    %2503 = vmatpush.msra.mxu0 %v422
    %2504 = vmatpush.msra.mxu0 %v418
    %2505 = vmatmul.f32.gmra.mxu0 %v2245
    %v2506 = vpop.f32.mrf.mxu0
    %v2507 = vadd.f32 0.0, %v2506
    %2508 = vdwg.mxu0
    %2509 = vmatpush.msra.mxu0 %v479
    %2510 = vmatpush.msra.mxu0 %v475
    %2511 = vmatpush.msra.mxu0 %v471
    %2512 = vmatpush.msra.mxu0 %v467
    %2513 = vmatpush.msra.mxu0 %v463
    %2514 = vmatpush.msra.mxu0 %v459
    %2515 = vmatpush.msra.mxu0 %v455
    %2516 = vmatpush.msra.mxu0 %v451
    %2517 = vmatpush.msra.mxu0 %v447
    %2518 = vmatpush.msra.mxu0 %v443
    %2519 = vmatpush.msra.mxu0 %v439
    %2520 = vmatpush.msra.mxu0 %v435
    %2521 = vmatpush.msra.mxu0 %v431
    %2522 = vmatpush.msra.mxu0 %v427
    %2523 = vmatpush.msra.mxu0 %v423
    %2524 = vmatpush.msra.mxu0 %v419
    %2525 = vmatmul.f32.gmra.mxu0 %v2245
    %v2526 = vpop.f32.mrf.mxu0
    %v2527 = vadd.f32 0.0, %v2526
    %2528 = vdwg.mxu0
    %2529 = vmatpush.msra.mxu0 %v480
    %2530 = vmatpush.msra.mxu0 %v476
    %2531 = vmatpush.msra.mxu0 %v472
    %2532 = vmatpush.msra.mxu0 %v468
    %2533 = vmatpush.msra.mxu0 %v464
    %2534 = vmatpush.msra.mxu0 %v460
    %2535 = vmatpush.msra.mxu0 %v456
    %2536 = vmatpush.msra.mxu0 %v452
    %2537 = vmatpush.msra.mxu0 %v448
    %2538 = vmatpush.msra.mxu0 %v444
    %2539 = vmatpush.msra.mxu0 %v440
    %2540 = vmatpush.msra.mxu0 %v436
    %2541 = vmatpush.msra.mxu0 %v432
    %2542 = vmatpush.msra.mxu0 %v428
    %2543 = vmatpush.msra.mxu0 %v424
    %2544 = vmatpush.msra.mxu0 %v420
    %2545 = vmatmul.f32.gmra.mxu0 %v2245
    %v2546 = vpop.f32.mrf.mxu0
    %v2547 = vadd.f32 0.0, %v2546
    %2548 = vdwg.mxu0
    %v2549 = vadd.f32 %v286, %v2487
    %v2550 = vadd.f32 %v327, %v2507
    %v2551 = vadd.f32 %v368, %v2527
    %v2552 = vadd.f32 %v409, %v2547
    %v2553 = vxor.u32 %v2549, 2147483648
    %v2554 = vmul.f32 %v2553, 1.442695
    %v2555 = vpow.pop %v2554
    %v2556 = vadd.f32 %v2555, 1.0
    %v2557 = vrcp.pop %v2556
    %v2558 = vmul.f32 %v2556, %v2557
    %v2559 = vsub.f32 1.0, %v2558
    %v2560 = vmul.f32 %v2557, %v2559
    %v2561 = vadd.f32 %v2557, %v2560
    %vm2562 = vweird.f32 %v2556
    %vm2563 = vweird.f32 %v2557
    %vm2564 = vmor %vm2562, %vm2563
    %v2565 = vsel %vm2564, %v2557, %v2561
    %v2566 = vand.u32 2147483647, %v2556
    %vm2567 = vcmp.eq.f32.partialorder %v2566, 8.507059e+37
    %v2568 = vand.u32 %v2556, 2147483648
    %v2569 = vor.u32 1.1754944e-38, %v2568
    %v2570 = vsel %vm2567, %v2569, %v2565
    %v2571 = vmul.f32 1.0, %v2570
    %v2572 = vxor.u32 %v2550, 2147483648
    %v2573 = vmul.f32 %v2572, 1.442695
    %v2574 = vpow.pop %v2573
    %v2575 = vadd.f32 %v2574, 1.0
    %v2576 = vrcp.pop %v2575
    %v2577 = vmul.f32 %v2575, %v2576
    %v2578 = vsub.f32 1.0, %v2577
    %v2579 = vmul.f32 %v2576, %v2578
    %v2580 = vadd.f32 %v2576, %v2579
    %vm2581 = vweird.f32 %v2575
    %vm2582 = vweird.f32 %v2576
    %vm2583 = vmor %vm2581, %vm2582
    %v2584 = vsel %vm2583, %v2576, %v2580
    %v2585 = vand.u32 2147483647, %v2575
    %vm2586 = vcmp.eq.f32.partialorder %v2585, 8.507059e+37
    %v2587 = vand.u32 %v2575, 2147483648
    %v2588 = vor.u32 1.1754944e-38, %v2587
    %v2589 = vsel %vm2586, %v2588, %v2584
    %v2590 = vmul.f32 1.0, %v2589
    %v2591 = vtanh.pop %v2551
    %v2592 = vxor.u32 %v2552, 2147483648
    %v2593 = vmul.f32 %v2592, 1.442695
    %v2594 = vpow.pop %v2593
    %v2595 = vadd.f32 %v2594, 1.0
    %v2596 = vrcp.pop %v2595
    %v2597 = vmul.f32 %v2595, %v2596
    %v2598 = vsub.f32 1.0, %v2597
    %v2599 = vmul.f32 %v2596, %v2598
    %v2600 = vadd.f32 %v2596, %v2599
    %vm2601 = vweird.f32 %v2595
    %vm2602 = vweird.f32 %v2596
    %vm2603 = vmor %vm2601, %vm2602
    %v2604 = vsel %vm2603, %v2596, %v2600
    %v2605 = vand.u32 2147483647, %v2595
    %vm2606 = vcmp.eq.f32.partialorder %v2605, 8.507059e+37
    %v2607 = vand.u32 %v2595, 2147483648
    %v2608 = vor.u32 1.1754944e-38, %v2607
    %v2609 = vsel %vm2606, %v2608, %v2604
    %v2610 = vmul.f32 1.0, %v2609
    %v2611 = vmul.f32 %v2590, %v2243
    %v2612 = vmul.f32 %v2571, %v2591
    %v2613 = vadd.f32 %v2611, %v2612
    %v2614 = vtanh.pop %v2613
    %v2615 = vmul.f32 %v2610, %v2614
    %2616 = vmatpush.msra.mxu0 %v541
    %2617 = vmatpush.msra.mxu0 %v537
    %2618 = vmatpush.msra.mxu0 %v533
    %2619 = vmatpush.msra.mxu0 %v529
    %2620 = vmatpush.msra.mxu0 %v525
    %2621 = vmatpush.msra.mxu0 %v521
    %2622 = vmatpush.msra.mxu0 %v517
    %2623 = vmatpush.msra.mxu0 %v513
    %2624 = vmatpush.msra.mxu0 %v509
    %2625 = vmatpush.msra.mxu0 %v505
    %2626 = vmatpush.msra.mxu0 %v501
    %2627 = vmatpush.msra.mxu0 %v497
    %2628 = vmatpush.msra.mxu0 %v493
    %2629 = vmatpush.msra.mxu0 %v489
    %2630 = vmatpush.msra.mxu0 %v485
    %2631 = vmatpush.msra.mxu0 %v481
    %2632 = vmatmul.f32.gmra.mxu0 %v2615
    %v2633 = vpop.f32.mrf.mxu0
    %v2634 = vadd.f32 %v758, %v2633
    %2635 = vdwg.mxu0
    %2636 = vmatpush.msra.mxu0 %v605
    %2637 = vmatpush.msra.mxu0 %v601
    %2638 = vmatpush.msra.mxu0 %v597
    %2639 = vmatpush.msra.mxu0 %v593
    %2640 = vmatpush.msra.mxu0 %v589
    %2641 = vmatpush.msra.mxu0 %v585
    %2642 = vmatpush.msra.mxu0 %v581
    %2643 = vmatpush.msra.mxu0 %v577
    %2644 = vmatpush.msra.mxu0 %v573
    %2645 = vmatpush.msra.mxu0 %v569
    %2646 = vmatpush.msra.mxu0 %v565
    %2647 = vmatpush.msra.mxu0 %v561
    %2648 = vmatpush.msra.mxu0 %v557
    %2649 = vmatpush.msra.mxu0 %v553
    %2650 = vmatpush.msra.mxu0 %v549
    %2651 = vmatpush.msra.mxu0 %v545
    %2652 = vmatmul.f32.gmra.mxu0 %v2468
    %v2653 = vpop.f32.mrf.mxu0
    %v2654 = vadd.f32 %v2634, %v2653
    %2655 = vdwg.mxu0
    %2656 = vmatpush.msra.mxu0 %v542
    %2657 = vmatpush.msra.mxu0 %v538
    %2658 = vmatpush.msra.mxu0 %v534
    %2659 = vmatpush.msra.mxu0 %v530
    %2660 = vmatpush.msra.mxu0 %v526
    %2661 = vmatpush.msra.mxu0 %v522
    %2662 = vmatpush.msra.mxu0 %v518
    %2663 = vmatpush.msra.mxu0 %v514
    %2664 = vmatpush.msra.mxu0 %v510
    %2665 = vmatpush.msra.mxu0 %v506
    %2666 = vmatpush.msra.mxu0 %v502
    %2667 = vmatpush.msra.mxu0 %v498
    %2668 = vmatpush.msra.mxu0 %v494
    %2669 = vmatpush.msra.mxu0 %v490
    %2670 = vmatpush.msra.mxu0 %v486
    %2671 = vmatpush.msra.mxu0 %v482
    %2672 = vmatmul.f32.gmra.mxu0 %v2615
    %v2673 = vpop.f32.mrf.mxu0
    %v2674 = vadd.f32 %v759, %v2673
    %2675 = vdwg.mxu0
    %2676 = vmatpush.msra.mxu0 %v606
    %2677 = vmatpush.msra.mxu0 %v602
    %2678 = vmatpush.msra.mxu0 %v598
    %2679 = vmatpush.msra.mxu0 %v594
    %2680 = vmatpush.msra.mxu0 %v590
    %2681 = vmatpush.msra.mxu0 %v586
    %2682 = vmatpush.msra.mxu0 %v582
    %2683 = vmatpush.msra.mxu0 %v578
    %2684 = vmatpush.msra.mxu0 %v574
    %2685 = vmatpush.msra.mxu0 %v570
    %2686 = vmatpush.msra.mxu0 %v566
    %2687 = vmatpush.msra.mxu0 %v562
    %2688 = vmatpush.msra.mxu0 %v558
    %2689 = vmatpush.msra.mxu0 %v554
    %2690 = vmatpush.msra.mxu0 %v550
    %2691 = vmatpush.msra.mxu0 %v546
    %2692 = vmatmul.f32.gmra.mxu0 %v2468
    %v2693 = vpop.f32.mrf.mxu0
    %v2694 = vadd.f32 %v2674, %v2693
    %2695 = vdwg.mxu0
    %2696 = vmatpush.msra.mxu0 %v543
    %2697 = vmatpush.msra.mxu0 %v539
    %2698 = vmatpush.msra.mxu0 %v535
    %2699 = vmatpush.msra.mxu0 %v531
    %2700 = vmatpush.msra.mxu0 %v527
    %2701 = vmatpush.msra.mxu0 %v523
    %2702 = vmatpush.msra.mxu0 %v519
    %2703 = vmatpush.msra.mxu0 %v515
    %2704 = vmatpush.msra.mxu0 %v511
    %2705 = vmatpush.msra.mxu0 %v507
    %2706 = vmatpush.msra.mxu0 %v503
    %2707 = vmatpush.msra.mxu0 %v499
    %2708 = vmatpush.msra.mxu0 %v495
    %2709 = vmatpush.msra.mxu0 %v491
    %2710 = vmatpush.msra.mxu0 %v487
    %2711 = vmatpush.msra.mxu0 %v483
    %2712 = vmatmul.f32.gmra.mxu0 %v2615
    %v2713 = vpop.f32.mrf.mxu0
    %v2714 = vadd.f32 %v760, %v2713
    %2715 = vdwg.mxu0
    %2716 = vmatpush.msra.mxu0 %v607
    %2717 = vmatpush.msra.mxu0 %v603
    %2718 = vmatpush.msra.mxu0 %v599
    %2719 = vmatpush.msra.mxu0 %v595
    %2720 = vmatpush.msra.mxu0 %v591
    %2721 = vmatpush.msra.mxu0 %v587
    %2722 = vmatpush.msra.mxu0 %v583
    %2723 = vmatpush.msra.mxu0 %v579
    %2724 = vmatpush.msra.mxu0 %v575
    %2725 = vmatpush.msra.mxu0 %v571
    %2726 = vmatpush.msra.mxu0 %v567
    %2727 = vmatpush.msra.mxu0 %v563
    %2728 = vmatpush.msra.mxu0 %v559
    %2729 = vmatpush.msra.mxu0 %v555
    %2730 = vmatpush.msra.mxu0 %v551
    %2731 = vmatpush.msra.mxu0 %v547
    %2732 = vmatmul.f32.gmra.mxu0 %v2468
    %v2733 = vpop.f32.mrf.mxu0
    %v2734 = vadd.f32 %v2714, %v2733
    %2735 = vdwg.mxu0
    %2736 = vmatpush.msra.mxu0 %v544
    %2737 = vmatpush.msra.mxu0 %v540
    %2738 = vmatpush.msra.mxu0 %v536
    %2739 = vmatpush.msra.mxu0 %v532
    %2740 = vmatpush.msra.mxu0 %v528
    %2741 = vmatpush.msra.mxu0 %v524
    %2742 = vmatpush.msra.mxu0 %v520
    %2743 = vmatpush.msra.mxu0 %v516
    %2744 = vmatpush.msra.mxu0 %v512
    %2745 = vmatpush.msra.mxu0 %v508
    %2746 = vmatpush.msra.mxu0 %v504
    %2747 = vmatpush.msra.mxu0 %v500
    %2748 = vmatpush.msra.mxu0 %v496
    %2749 = vmatpush.msra.mxu0 %v492
    %2750 = vmatpush.msra.mxu0 %v488
    %2751 = vmatpush.msra.mxu0 %v484
    %2752 = vmatmul.f32.gmra.mxu0 %v2615
    %v2753 = vpop.f32.mrf.mxu0
    %v2754 = vadd.f32 %v761, %v2753
    %2755 = vdwg.mxu0
    %2756 = vmatpush.msra.mxu0 %v608
    %2757 = vmatpush.msra.mxu0 %v604
    %2758 = vmatpush.msra.mxu0 %v600
    %2759 = vmatpush.msra.mxu0 %v596
    %2760 = vmatpush.msra.mxu0 %v592
    %2761 = vmatpush.msra.mxu0 %v588
    %2762 = vmatpush.msra.mxu0 %v584
    %2763 = vmatpush.msra.mxu0 %v580
    %2764 = vmatpush.msra.mxu0 %v576
    %2765 = vmatpush.msra.mxu0 %v572
    %2766 = vmatpush.msra.mxu0 %v568
    %2767 = vmatpush.msra.mxu0 %v564
    %2768 = vmatpush.msra.mxu0 %v560
    %2769 = vmatpush.msra.mxu0 %v556
    %2770 = vmatpush.msra.mxu0 %v552
    %2771 = vmatpush.msra.mxu0 %v548
    %2772 = vmatmul.f32.gmra.mxu0 %v2468
    %v2773 = vpop.f32.mrf.mxu0
    %v2774 = vadd.f32 %v2754, %v2773
    %2775 = vdwg.mxu0
    %v2776 = vxor.u32 %v2654, 2147483648
    %v2777 = vmul.f32 %v2776, 1.442695
    %v2778 = vpow.pop %v2777
    %v2779 = vadd.f32 %v2778, 1.0
    %v2780 = vrcp.pop %v2779
    %v2781 = vmul.f32 %v2779, %v2780
    %v2782 = vsub.f32 1.0, %v2781
    %v2783 = vmul.f32 %v2780, %v2782
    %v2784 = vadd.f32 %v2780, %v2783
    %vm2785 = vweird.f32 %v2779
    %vm2786 = vweird.f32 %v2780
    %vm2787 = vmor %vm2785, %vm2786
    %v2788 = vsel %vm2787, %v2780, %v2784
    %v2789 = vand.u32 2147483647, %v2779
    %vm2790 = vcmp.eq.f32.partialorder %v2789, 8.507059e+37
    %v2791 = vand.u32 %v2779, 2147483648
    %v2792 = vor.u32 1.1754944e-38, %v2791
    %v2793 = vsel %vm2790, %v2792, %v2788
    %v2794 = vmul.f32 1.0, %v2793
    %v2795 = vxor.u32 %v2694, 2147483648
    %v2796 = vmul.f32 %v2795, 1.442695
    %v2797 = vpow.pop %v2796
    %v2798 = vadd.f32 %v2797, 1.0
    %v2799 = vrcp.pop %v2798
    %v2800 = vmul.f32 %v2798, %v2799
    %v2801 = vsub.f32 1.0, %v2800
    %v2802 = vmul.f32 %v2799, %v2801
    %v2803 = vadd.f32 %v2799, %v2802
    %vm2804 = vweird.f32 %v2798
    %vm2805 = vweird.f32 %v2799
    %vm2806 = vmor %vm2804, %vm2805
    %v2807 = vsel %vm2806, %v2799, %v2803
    %v2808 = vand.u32 2147483647, %v2798
    %vm2809 = vcmp.eq.f32.partialorder %v2808, 8.507059e+37
    %v2810 = vand.u32 %v2798, 2147483648
    %v2811 = vor.u32 1.1754944e-38, %v2810
    %v2812 = vsel %vm2809, %v2811, %v2807
    %v2813 = vmul.f32 1.0, %v2812
    %v2814 = vtanh.pop %v2734
    %v2815 = vxor.u32 %v2774, 2147483648
    %v2816 = vmul.f32 %v2815, 1.442695
    %v2817 = vpow.pop %v2816
    %v2818 = vadd.f32 %v2817, 1.0
    %v2819 = vrcp.pop %v2818
    %v2820 = vmul.f32 %v2818, %v2819
    %v2821 = vsub.f32 1.0, %v2820
    %v2822 = vmul.f32 %v2819, %v2821
    %v2823 = vadd.f32 %v2819, %v2822
    %vm2824 = vweird.f32 %v2818
    %vm2825 = vweird.f32 %v2819
    %vm2826 = vmor %vm2824, %vm2825
    %v2827 = vsel %vm2826, %v2819, %v2823
    %v2828 = vand.u32 2147483647, %v2818
    %vm2829 = vcmp.eq.f32.partialorder %v2828, 8.507059e+37
    %v2830 = vand.u32 %v2818, 2147483648
    %v2831 = vor.u32 1.1754944e-38, %v2830
    %v2832 = vsel %vm2829, %v2831, %v2827
    %v2833 = vmul.f32 1.0, %v2832
    %v2834 = vmul.f32 %v2813, %v2466
    %v2835 = vmul.f32 %v2794, %v2814
    %v2836 = vadd.f32 %v2834, %v2835
    %v2837 = vtanh.pop %v2836
    %v2838 = vmul.f32 %v2833, %v2837
    %2839 = vmatpush.msra.mxu0 %v477
    %2840 = vmatpush.msra.mxu0 %v473
    %2841 = vmatpush.msra.mxu0 %v469
    %2842 = vmatpush.msra.mxu0 %v465
    %2843 = vmatpush.msra.mxu0 %v461
    %2844 = vmatpush.msra.mxu0 %v457
    %2845 = vmatpush.msra.mxu0 %v453
    %2846 = vmatpush.msra.mxu0 %v449
    %2847 = vmatpush.msra.mxu0 %v445
    %2848 = vmatpush.msra.mxu0 %v441
    %2849 = vmatpush.msra.mxu0 %v437
    %2850 = vmatpush.msra.mxu0 %v433
    %2851 = vmatpush.msra.mxu0 %v429
    %2852 = vmatpush.msra.mxu0 %v425
    %2853 = vmatpush.msra.mxu0 %v421
    %2854 = vmatpush.msra.mxu0 %v417
    %2855 = vmatmul.f32.gmra.mxu0 %v2615
    %v2856 = vpop.f32.mrf.mxu0
    %v2857 = vadd.f32 0.0, %v2856
    %2858 = vdwg.mxu0
    %2859 = vmatpush.msra.mxu0 %v478
    %2860 = vmatpush.msra.mxu0 %v474
    %2861 = vmatpush.msra.mxu0 %v470
    %2862 = vmatpush.msra.mxu0 %v466
    %2863 = vmatpush.msra.mxu0 %v462
    %2864 = vmatpush.msra.mxu0 %v458
    %2865 = vmatpush.msra.mxu0 %v454
    %2866 = vmatpush.msra.mxu0 %v450
    %2867 = vmatpush.msra.mxu0 %v446
    %2868 = vmatpush.msra.mxu0 %v442
    %2869 = vmatpush.msra.mxu0 %v438
    %2870 = vmatpush.msra.mxu0 %v434
    %2871 = vmatpush.msra.mxu0 %v430
    %2872 = vmatpush.msra.mxu0 %v426
    %2873 = vmatpush.msra.mxu0 %v422
    %2874 = vmatpush.msra.mxu0 %v418
    %2875 = vmatmul.f32.gmra.mxu0 %v2615
    %v2876 = vpop.f32.mrf.mxu0
    %v2877 = vadd.f32 0.0, %v2876
    %2878 = vdwg.mxu0
    %2879 = vmatpush.msra.mxu0 %v479
    %2880 = vmatpush.msra.mxu0 %v475
    %2881 = vmatpush.msra.mxu0 %v471
    %2882 = vmatpush.msra.mxu0 %v467
    %2883 = vmatpush.msra.mxu0 %v463
    %2884 = vmatpush.msra.mxu0 %v459
    %2885 = vmatpush.msra.mxu0 %v455
    %2886 = vmatpush.msra.mxu0 %v451
    %2887 = vmatpush.msra.mxu0 %v447
    %2888 = vmatpush.msra.mxu0 %v443
    %2889 = vmatpush.msra.mxu0 %v439
    %2890 = vmatpush.msra.mxu0 %v435
    %2891 = vmatpush.msra.mxu0 %v431
    %2892 = vmatpush.msra.mxu0 %v427
    %2893 = vmatpush.msra.mxu0 %v423
    %2894 = vmatpush.msra.mxu0 %v419
    %2895 = vmatmul.f32.gmra.mxu0 %v2615
    %v2896 = vpop.f32.mrf.mxu0
    %v2897 = vadd.f32 0.0, %v2896
    %2898 = vdwg.mxu0
    %2899 = vmatpush.msra.mxu0 %v480
    %2900 = vmatpush.msra.mxu0 %v476
    %2901 = vmatpush.msra.mxu0 %v472
    %2902 = vmatpush.msra.mxu0 %v468
    %2903 = vmatpush.msra.mxu0 %v464
    %2904 = vmatpush.msra.mxu0 %v460
    %2905 = vmatpush.msra.mxu0 %v456
    %2906 = vmatpush.msra.mxu0 %v452
    %2907 = vmatpush.msra.mxu0 %v448
    %2908 = vmatpush.msra.mxu0 %v444
    %2909 = vmatpush.msra.mxu0 %v440
    %2910 = vmatpush.msra.mxu0 %v436
    %2911 = vmatpush.msra.mxu0 %v432
    %2912 = vmatpush.msra.mxu0 %v428
    %2913 = vmatpush.msra.mxu0 %v424
    %2914 = vmatpush.msra.mxu0 %v420
    %2915 = vmatmul.f32.gmra.mxu0 %v2615
    %v2916 = vpop.f32.mrf.mxu0
    %v2917 = vadd.f32 0.0, %v2916
    %2918 = vdwg.mxu0
    %v2919 = vadd.f32 %v289, %v2857
    %v2920 = vadd.f32 %v330, %v2877
    %v2921 = vadd.f32 %v371, %v2897
    %v2922 = vadd.f32 %v412, %v2917
    %v2923 = vxor.u32 %v2919, 2147483648
    %v2924 = vmul.f32 %v2923, 1.442695
    %v2925 = vpow.pop %v2924
    %v2926 = vadd.f32 %v2925, 1.0
    %v2927 = vrcp.pop %v2926
    %v2928 = vmul.f32 %v2926, %v2927
    %v2929 = vsub.f32 1.0, %v2928
    %v2930 = vmul.f32 %v2927, %v2929
    %v2931 = vadd.f32 %v2927, %v2930
    %vm2932 = vweird.f32 %v2926
    %vm2933 = vweird.f32 %v2927
    %vm2934 = vmor %vm2932, %vm2933
    %v2935 = vsel %vm2934, %v2927, %v2931
    %v2936 = vand.u32 2147483647, %v2926
    %vm2937 = vcmp.eq.f32.partialorder %v2936, 8.507059e+37
    %v2938 = vand.u32 %v2926, 2147483648
    %v2939 = vor.u32 1.1754944e-38, %v2938
    %v2940 = vsel %vm2937, %v2939, %v2935
    %v2941 = vmul.f32 1.0, %v2940
    %v2942 = vxor.u32 %v2920, 2147483648
    %v2943 = vmul.f32 %v2942, 1.442695
    %v2944 = vpow.pop %v2943
    %v2945 = vadd.f32 %v2944, 1.0
    %v2946 = vrcp.pop %v2945
    %v2947 = vmul.f32 %v2945, %v2946
    %v2948 = vsub.f32 1.0, %v2947
    %v2949 = vmul.f32 %v2946, %v2948
    %v2950 = vadd.f32 %v2946, %v2949
    %vm2951 = vweird.f32 %v2945
    %vm2952 = vweird.f32 %v2946
    %vm2953 = vmor %vm2951, %vm2952
    %v2954 = vsel %vm2953, %v2946, %v2950
    %v2955 = vand.u32 2147483647, %v2945
    %vm2956 = vcmp.eq.f32.partialorder %v2955, 8.507059e+37
    %v2957 = vand.u32 %v2945, 2147483648
    %v2958 = vor.u32 1.1754944e-38, %v2957
    %v2959 = vsel %vm2956, %v2958, %v2954
    %v2960 = vmul.f32 1.0, %v2959
    %v2961 = vtanh.pop %v2921
    %v2962 = vxor.u32 %v2922, 2147483648
    %v2963 = vmul.f32 %v2962, 1.442695
    %v2964 = vpow.pop %v2963
    %v2965 = vadd.f32 %v2964, 1.0
    %v2966 = vrcp.pop %v2965
    %v2967 = vmul.f32 %v2965, %v2966
    %v2968 = vsub.f32 1.0, %v2967
    %v2969 = vmul.f32 %v2966, %v2968
    %v2970 = vadd.f32 %v2966, %v2969
    %vm2971 = vweird.f32 %v2965
    %vm2972 = vweird.f32 %v2966
    %vm2973 = vmor %vm2971, %vm2972
    %v2974 = vsel %vm2973, %v2966, %v2970
    %v2975 = vand.u32 2147483647, %v2965
    %vm2976 = vcmp.eq.f32.partialorder %v2975, 8.507059e+37
    %v2977 = vand.u32 %v2965, 2147483648
    %v2978 = vor.u32 1.1754944e-38, %v2977
    %v2979 = vsel %vm2976, %v2978, %v2974
    %v2980 = vmul.f32 1.0, %v2979
    %v2981 = vmul.f32 %v2960, %v2613
    %v2982 = vmul.f32 %v2941, %v2961
    %v2983 = vadd.f32 %v2981, %v2982
    %v2984 = vtanh.pop %v2983
    %v2985 = vmul.f32 %v2980, %v2984
    %2986 = vmatpush.msra.mxu0 %v541
    %2987 = vmatpush.msra.mxu0 %v537
    %2988 = vmatpush.msra.mxu0 %v533
    %2989 = vmatpush.msra.mxu0 %v529
    %2990 = vmatpush.msra.mxu0 %v525
    %2991 = vmatpush.msra.mxu0 %v521
    %2992 = vmatpush.msra.mxu0 %v517
    %2993 = vmatpush.msra.mxu0 %v513
    %2994 = vmatpush.msra.mxu0 %v509
    %2995 = vmatpush.msra.mxu0 %v505
    %2996 = vmatpush.msra.mxu0 %v501
    %2997 = vmatpush.msra.mxu0 %v497
    %2998 = vmatpush.msra.mxu0 %v493
    %2999 = vmatpush.msra.mxu0 %v489
    %3000 = vmatpush.msra.mxu0 %v485
    %3001 = vmatpush.msra.mxu0 %v481
    %3002 = vmatmul.f32.gmra.mxu0 %v2985
    %v3003 = vpop.f32.mrf.mxu0
    %v3004 = vadd.f32 %v758, %v3003
    %3005 = vdwg.mxu0
    %3006 = vmatpush.msra.mxu0 %v605
    %3007 = vmatpush.msra.mxu0 %v601
    %3008 = vmatpush.msra.mxu0 %v597
    %3009 = vmatpush.msra.mxu0 %v593
    %3010 = vmatpush.msra.mxu0 %v589
    %3011 = vmatpush.msra.mxu0 %v585
    %3012 = vmatpush.msra.mxu0 %v581
    %3013 = vmatpush.msra.mxu0 %v577
    %3014 = vmatpush.msra.mxu0 %v573
    %3015 = vmatpush.msra.mxu0 %v569
    %3016 = vmatpush.msra.mxu0 %v565
    %3017 = vmatpush.msra.mxu0 %v561
    %3018 = vmatpush.msra.mxu0 %v557
    %3019 = vmatpush.msra.mxu0 %v553
    %3020 = vmatpush.msra.mxu0 %v549
    %3021 = vmatpush.msra.mxu0 %v545
    %3022 = vmatmul.f32.gmra.mxu0 %v2838
    %v3023 = vpop.f32.mrf.mxu0
    %v3024 = vadd.f32 %v3004, %v3023
    %3025 = vdwg.mxu0
    %3026 = vmatpush.msra.mxu0 %v542
    %3027 = vmatpush.msra.mxu0 %v538
    %3028 = vmatpush.msra.mxu0 %v534
    %3029 = vmatpush.msra.mxu0 %v530
    %3030 = vmatpush.msra.mxu0 %v526
    %3031 = vmatpush.msra.mxu0 %v522
    %3032 = vmatpush.msra.mxu0 %v518
    %3033 = vmatpush.msra.mxu0 %v514
    %3034 = vmatpush.msra.mxu0 %v510
    %3035 = vmatpush.msra.mxu0 %v506
    %3036 = vmatpush.msra.mxu0 %v502
    %3037 = vmatpush.msra.mxu0 %v498
    %3038 = vmatpush.msra.mxu0 %v494
    %3039 = vmatpush.msra.mxu0 %v490
    %3040 = vmatpush.msra.mxu0 %v486
    %3041 = vmatpush.msra.mxu0 %v482
    %3042 = vmatmul.f32.gmra.mxu0 %v2985
    %v3043 = vpop.f32.mrf.mxu0
    %v3044 = vadd.f32 %v759, %v3043
    %3045 = vdwg.mxu0
    %3046 = vmatpush.msra.mxu0 %v606
    %3047 = vmatpush.msra.mxu0 %v602
    %3048 = vmatpush.msra.mxu0 %v598
    %3049 = vmatpush.msra.mxu0 %v594
    %3050 = vmatpush.msra.mxu0 %v590
    %3051 = vmatpush.msra.mxu0 %v586
    %3052 = vmatpush.msra.mxu0 %v582
    %3053 = vmatpush.msra.mxu0 %v578
    %3054 = vmatpush.msra.mxu0 %v574
    %3055 = vmatpush.msra.mxu0 %v570
    %3056 = vmatpush.msra.mxu0 %v566
    %3057 = vmatpush.msra.mxu0 %v562
    %3058 = vmatpush.msra.mxu0 %v558
    %3059 = vmatpush.msra.mxu0 %v554
    %3060 = vmatpush.msra.mxu0 %v550
    %3061 = vmatpush.msra.mxu0 %v546
    %3062 = vmatmul.f32.gmra.mxu0 %v2838
    %v3063 = vpop.f32.mrf.mxu0
    %v3064 = vadd.f32 %v3044, %v3063
    %3065 = vdwg.mxu0
    %3066 = vmatpush.msra.mxu0 %v543
    %3067 = vmatpush.msra.mxu0 %v539
    %3068 = vmatpush.msra.mxu0 %v535
    %3069 = vmatpush.msra.mxu0 %v531
    %3070 = vmatpush.msra.mxu0 %v527
    %3071 = vmatpush.msra.mxu0 %v523
    %3072 = vmatpush.msra.mxu0 %v519
    %3073 = vmatpush.msra.mxu0 %v515
    %3074 = vmatpush.msra.mxu0 %v511
    %3075 = vmatpush.msra.mxu0 %v507
    %3076 = vmatpush.msra.mxu0 %v503
    %3077 = vmatpush.msra.mxu0 %v499
    %3078 = vmatpush.msra.mxu0 %v495
    %3079 = vmatpush.msra.mxu0 %v491
    %3080 = vmatpush.msra.mxu0 %v487
    %3081 = vmatpush.msra.mxu0 %v483
    %3082 = vmatmul.f32.gmra.mxu0 %v2985
    %v3083 = vpop.f32.mrf.mxu0
    %v3084 = vadd.f32 %v760, %v3083
    %3085 = vdwg.mxu0
    %3086 = vmatpush.msra.mxu0 %v607
    %3087 = vmatpush.msra.mxu0 %v603
    %3088 = vmatpush.msra.mxu0 %v599
    %3089 = vmatpush.msra.mxu0 %v595
    %3090 = vmatpush.msra.mxu0 %v591
    %3091 = vmatpush.msra.mxu0 %v587
    %3092 = vmatpush.msra.mxu0 %v583
    %3093 = vmatpush.msra.mxu0 %v579
    %3094 = vmatpush.msra.mxu0 %v575
    %3095 = vmatpush.msra.mxu0 %v571
    %3096 = vmatpush.msra.mxu0 %v567
    %3097 = vmatpush.msra.mxu0 %v563
    %3098 = vmatpush.msra.mxu0 %v559
    %3099 = vmatpush.msra.mxu0 %v555
    %3100 = vmatpush.msra.mxu0 %v551
    %3101 = vmatpush.msra.mxu0 %v547
    %3102 = vmatmul.f32.gmra.mxu0 %v2838
    %v3103 = vpop.f32.mrf.mxu0
    %v3104 = vadd.f32 %v3084, %v3103
    %3105 = vdwg.mxu0
    %3106 = vmatpush.msra.mxu0 %v544
    %3107 = vmatpush.msra.mxu0 %v540
    %3108 = vmatpush.msra.mxu0 %v536
    %3109 = vmatpush.msra.mxu0 %v532
    %3110 = vmatpush.msra.mxu0 %v528
    %3111 = vmatpush.msra.mxu0 %v524
    %3112 = vmatpush.msra.mxu0 %v520
    %3113 = vmatpush.msra.mxu0 %v516
    %3114 = vmatpush.msra.mxu0 %v512
    %3115 = vmatpush.msra.mxu0 %v508
    %3116 = vmatpush.msra.mxu0 %v504
    %3117 = vmatpush.msra.mxu0 %v500
    %3118 = vmatpush.msra.mxu0 %v496
    %3119 = vmatpush.msra.mxu0 %v492
    %3120 = vmatpush.msra.mxu0 %v488
    %3121 = vmatpush.msra.mxu0 %v484
    %3122 = vmatmul.f32.gmra.mxu0 %v2985
    %v3123 = vpop.f32.mrf.mxu0
    %v3124 = vadd.f32 %v761, %v3123
    %3125 = vdwg.mxu0
    %3126 = vmatpush.msra.mxu0 %v608
    %3127 = vmatpush.msra.mxu0 %v604
    %3128 = vmatpush.msra.mxu0 %v600
    %3129 = vmatpush.msra.mxu0 %v596
    %3130 = vmatpush.msra.mxu0 %v592
    %3131 = vmatpush.msra.mxu0 %v588
    %3132 = vmatpush.msra.mxu0 %v584
    %3133 = vmatpush.msra.mxu0 %v580
    %3134 = vmatpush.msra.mxu0 %v576
    %3135 = vmatpush.msra.mxu0 %v572
    %3136 = vmatpush.msra.mxu0 %v568
    %3137 = vmatpush.msra.mxu0 %v564
    %3138 = vmatpush.msra.mxu0 %v560
    %3139 = vmatpush.msra.mxu0 %v556
    %3140 = vmatpush.msra.mxu0 %v552
    %3141 = vmatpush.msra.mxu0 %v548
    %3142 = vmatmul.f32.gmra.mxu0 %v2838
    %v3143 = vpop.f32.mrf.mxu0
    %v3144 = vadd.f32 %v3124, %v3143
    %3145 = vdwg.mxu0
    %v3146 = vxor.u32 %v3024, 2147483648
    %v3147 = vmul.f32 %v3146, 1.442695
    %v3148 = vpow.pop %v3147
    %v3149 = vadd.f32 %v3148, 1.0
    %v3150 = vrcp.pop %v3149
    %v3151 = vmul.f32 %v3149, %v3150
    %v3152 = vsub.f32 1.0, %v3151
    %v3153 = vmul.f32 %v3150, %v3152
    %v3154 = vadd.f32 %v3150, %v3153
    %vm3155 = vweird.f32 %v3149
    %vm3156 = vweird.f32 %v3150
    %vm3157 = vmor %vm3155, %vm3156
    %v3158 = vsel %vm3157, %v3150, %v3154
    %v3159 = vand.u32 2147483647, %v3149
    %vm3160 = vcmp.eq.f32.partialorder %v3159, 8.507059e+37
    %v3161 = vand.u32 %v3149, 2147483648
    %v3162 = vor.u32 1.1754944e-38, %v3161
    %v3163 = vsel %vm3160, %v3162, %v3158
    %v3164 = vmul.f32 1.0, %v3163
    %v3165 = vxor.u32 %v3064, 2147483648
    %v3166 = vmul.f32 %v3165, 1.442695
    %v3167 = vpow.pop %v3166
    %v3168 = vadd.f32 %v3167, 1.0
    %v3169 = vrcp.pop %v3168
    %v3170 = vmul.f32 %v3168, %v3169
    %v3171 = vsub.f32 1.0, %v3170
    %v3172 = vmul.f32 %v3169, %v3171
    %v3173 = vadd.f32 %v3169, %v3172
    %vm3174 = vweird.f32 %v3168
    %vm3175 = vweird.f32 %v3169
    %vm3176 = vmor %vm3174, %vm3175
    %v3177 = vsel %vm3176, %v3169, %v3173
    %v3178 = vand.u32 2147483647, %v3168
    %vm3179 = vcmp.eq.f32.partialorder %v3178, 8.507059e+37
    %v3180 = vand.u32 %v3168, 2147483648
    %v3181 = vor.u32 1.1754944e-38, %v3180
    %v3182 = vsel %vm3179, %v3181, %v3177
    %v3183 = vmul.f32 1.0, %v3182
    %v3184 = vtanh.pop %v3104
    %v3185 = vxor.u32 %v3144, 2147483648
    %v3186 = vmul.f32 %v3185, 1.442695
    %v3187 = vpow.pop %v3186
    %v3188 = vadd.f32 %v3187, 1.0
    %v3189 = vrcp.pop %v3188
    %v3190 = vmul.f32 %v3188, %v3189
    %v3191 = vsub.f32 1.0, %v3190
    %v3192 = vmul.f32 %v3189, %v3191
    %v3193 = vadd.f32 %v3189, %v3192
    %vm3194 = vweird.f32 %v3188
    %vm3195 = vweird.f32 %v3189
    %vm3196 = vmor %vm3194, %vm3195
    %v3197 = vsel %vm3196, %v3189, %v3193
    %v3198 = vand.u32 2147483647, %v3188
    %vm3199 = vcmp.eq.f32.partialorder %v3198, 8.507059e+37
    %v3200 = vand.u32 %v3188, 2147483648
    %v3201 = vor.u32 1.1754944e-38, %v3200
    %v3202 = vsel %vm3199, %v3201, %v3197
    %v3203 = vmul.f32 1.0, %v3202
    %v3204 = vmul.f32 %v3183, %v2836
    %v3205 = vmul.f32 %v3164, %v3184
    %v3206 = vadd.f32 %v3204, %v3205
    %v3207 = vtanh.pop %v3206
    %v3208 = vmul.f32 %v3203, %v3207
    %3209 = vmatpush.msra.mxu0 %v477
    %3210 = vmatpush.msra.mxu0 %v473
    %3211 = vmatpush.msra.mxu0 %v469
    %3212 = vmatpush.msra.mxu0 %v465
    %3213 = vmatpush.msra.mxu0 %v461
    %3214 = vmatpush.msra.mxu0 %v457
    %3215 = vmatpush.msra.mxu0 %v453
    %3216 = vmatpush.msra.mxu0 %v449
    %3217 = vmatpush.msra.mxu0 %v445
    %3218 = vmatpush.msra.mxu0 %v441
    %3219 = vmatpush.msra.mxu0 %v437
    %3220 = vmatpush.msra.mxu0 %v433
    %3221 = vmatpush.msra.mxu0 %v429
    %3222 = vmatpush.msra.mxu0 %v425
    %3223 = vmatpush.msra.mxu0 %v421
    %3224 = vmatpush.msra.mxu0 %v417
    %3225 = vmatmul.f32.gmra.mxu0 %v2985
    %v3226 = vpop.f32.mrf.mxu0
    %v3227 = vadd.f32 0.0, %v3226
    %3228 = vdwg.mxu0
    %3229 = vmatpush.msra.mxu0 %v478
    %3230 = vmatpush.msra.mxu0 %v474
    %3231 = vmatpush.msra.mxu0 %v470
    %3232 = vmatpush.msra.mxu0 %v466
    %3233 = vmatpush.msra.mxu0 %v462
    %3234 = vmatpush.msra.mxu0 %v458
    %3235 = vmatpush.msra.mxu0 %v454
    %3236 = vmatpush.msra.mxu0 %v450
    %3237 = vmatpush.msra.mxu0 %v446
    %3238 = vmatpush.msra.mxu0 %v442
    %3239 = vmatpush.msra.mxu0 %v438
    %3240 = vmatpush.msra.mxu0 %v434
    %3241 = vmatpush.msra.mxu0 %v430
    %3242 = vmatpush.msra.mxu0 %v426
    %3243 = vmatpush.msra.mxu0 %v422
    %3244 = vmatpush.msra.mxu0 %v418
    %3245 = vmatmul.f32.gmra.mxu0 %v2985
    %v3246 = vpop.f32.mrf.mxu0
    %v3247 = vadd.f32 0.0, %v3246
    %3248 = vdwg.mxu0
    %3249 = vmatpush.msra.mxu0 %v479
    %3250 = vmatpush.msra.mxu0 %v475
    %3251 = vmatpush.msra.mxu0 %v471
    %3252 = vmatpush.msra.mxu0 %v467
    %3253 = vmatpush.msra.mxu0 %v463
    %3254 = vmatpush.msra.mxu0 %v459
    %3255 = vmatpush.msra.mxu0 %v455
    %3256 = vmatpush.msra.mxu0 %v451
    %3257 = vmatpush.msra.mxu0 %v447
    %3258 = vmatpush.msra.mxu0 %v443
    %3259 = vmatpush.msra.mxu0 %v439
    %3260 = vmatpush.msra.mxu0 %v435
    %3261 = vmatpush.msra.mxu0 %v431
    %3262 = vmatpush.msra.mxu0 %v427
    %3263 = vmatpush.msra.mxu0 %v423
    %3264 = vmatpush.msra.mxu0 %v419
    %3265 = vmatmul.f32.gmra.mxu0 %v2985
    %v3266 = vpop.f32.mrf.mxu0
    %v3267 = vadd.f32 0.0, %v3266
    %3268 = vdwg.mxu0
    %3269 = vmatpush.msra.mxu0 %v480
    %3270 = vmatpush.msra.mxu0 %v476
    %3271 = vmatpush.msra.mxu0 %v472
    %3272 = vmatpush.msra.mxu0 %v468
    %3273 = vmatpush.msra.mxu0 %v464
    %3274 = vmatpush.msra.mxu0 %v460
    %3275 = vmatpush.msra.mxu0 %v456
    %3276 = vmatpush.msra.mxu0 %v452
    %3277 = vmatpush.msra.mxu0 %v448
    %3278 = vmatpush.msra.mxu0 %v444
    %3279 = vmatpush.msra.mxu0 %v440
    %3280 = vmatpush.msra.mxu0 %v436
    %3281 = vmatpush.msra.mxu0 %v432
    %3282 = vmatpush.msra.mxu0 %v428
    %3283 = vmatpush.msra.mxu0 %v424
    %3284 = vmatpush.msra.mxu0 %v420
    %3285 = vmatmul.f32.gmra.mxu0 %v2985
    %v3286 = vpop.f32.mrf.mxu0
    %v3287 = vadd.f32 0.0, %v3286
    %3288 = vdwg.mxu0
    %v3289 = vadd.f32 %v292, %v3227
    %v3290 = vadd.f32 %v333, %v3247
    %v3291 = vadd.f32 %v374, %v3267
    %v3292 = vadd.f32 %v415, %v3287
    %v3293 = vxor.u32 %v3289, 2147483648
    %v3294 = vmul.f32 %v3293, 1.442695
    %v3295 = vpow.pop %v3294
    %v3296 = vadd.f32 %v3295, 1.0
    %v3297 = vrcp.pop %v3296
    %v3298 = vmul.f32 %v3296, %v3297
    %v3299 = vsub.f32 1.0, %v3298
    %v3300 = vmul.f32 %v3297, %v3299
    %v3301 = vadd.f32 %v3297, %v3300
    %vm3302 = vweird.f32 %v3296
    %vm3303 = vweird.f32 %v3297
    %vm3304 = vmor %vm3302, %vm3303
    %v3305 = vsel %vm3304, %v3297, %v3301
    %v3306 = vand.u32 2147483647, %v3296
    %vm3307 = vcmp.eq.f32.partialorder %v3306, 8.507059e+37
    %v3308 = vand.u32 %v3296, 2147483648
    %v3309 = vor.u32 1.1754944e-38, %v3308
    %v3310 = vsel %vm3307, %v3309, %v3305
    %v3311 = vmul.f32 1.0, %v3310
    %v3312 = vxor.u32 %v3290, 2147483648
    %v3313 = vmul.f32 %v3312, 1.442695
    %v3314 = vpow.pop %v3313
    %v3315 = vadd.f32 %v3314, 1.0
    %v3316 = vrcp.pop %v3315
    %v3317 = vmul.f32 %v3315, %v3316
    %v3318 = vsub.f32 1.0, %v3317
    %v3319 = vmul.f32 %v3316, %v3318
    %v3320 = vadd.f32 %v3316, %v3319
    %vm3321 = vweird.f32 %v3315
    %vm3322 = vweird.f32 %v3316
    %vm3323 = vmor %vm3321, %vm3322
    %v3324 = vsel %vm3323, %v3316, %v3320
    %v3325 = vand.u32 2147483647, %v3315
    %vm3326 = vcmp.eq.f32.partialorder %v3325, 8.507059e+37
    %v3327 = vand.u32 %v3315, 2147483648
    %v3328 = vor.u32 1.1754944e-38, %v3327
    %v3329 = vsel %vm3326, %v3328, %v3324
    %v3330 = vmul.f32 1.0, %v3329
    %v3331 = vtanh.pop %v3291
    %v3332 = vxor.u32 %v3292, 2147483648
    %v3333 = vmul.f32 %v3332, 1.442695
    %v3334 = vpow.pop %v3333
    %v3335 = vadd.f32 %v3334, 1.0
    %v3336 = vrcp.pop %v3335
    %v3337 = vmul.f32 %v3335, %v3336
    %v3338 = vsub.f32 1.0, %v3337
    %v3339 = vmul.f32 %v3336, %v3338
    %v3340 = vadd.f32 %v3336, %v3339
    %vm3341 = vweird.f32 %v3335
    %vm3342 = vweird.f32 %v3336
    %vm3343 = vmor %vm3341, %vm3342
    %v3344 = vsel %vm3343, %v3336, %v3340
    %v3345 = vand.u32 2147483647, %v3335
    %vm3346 = vcmp.eq.f32.partialorder %v3345, 8.507059e+37
    %v3347 = vand.u32 %v3335, 2147483648
    %v3348 = vor.u32 1.1754944e-38, %v3347
    %v3349 = vsel %vm3346, %v3348, %v3344
    %v3350 = vmul.f32 1.0, %v3349
    %v3351 = vmul.f32 %v3330, %v2983
    %v3352 = vmul.f32 %v3311, %v3331
    %v3353 = vadd.f32 %v3351, %v3352
    %v3354 = vtanh.pop %v3353
    %v3355 = vmul.f32 %v3350, %v3354
    %3356 = vmatpush.msra.mxu0 %v541
    %3357 = vmatpush.msra.mxu0 %v537
    %3358 = vmatpush.msra.mxu0 %v533
    %3359 = vmatpush.msra.mxu0 %v529
    %3360 = vmatpush.msra.mxu0 %v525
    %3361 = vmatpush.msra.mxu0 %v521
    %3362 = vmatpush.msra.mxu0 %v517
    %3363 = vmatpush.msra.mxu0 %v513
    %3364 = vmatpush.msra.mxu0 %v509
    %3365 = vmatpush.msra.mxu0 %v505
    %3366 = vmatpush.msra.mxu0 %v501
    %3367 = vmatpush.msra.mxu0 %v497
    %3368 = vmatpush.msra.mxu0 %v493
    %3369 = vmatpush.msra.mxu0 %v489
    %3370 = vmatpush.msra.mxu0 %v485
    %3371 = vmatpush.msra.mxu0 %v481
    %3372 = vmatmul.f32.gmra.mxu0 %v3355
    %v3373 = vpop.f32.mrf.mxu0
    %v3374 = vadd.f32 %v758, %v3373
    %3375 = vdwg.mxu0
    %3376 = vmatpush.msra.mxu0 %v605
    %3377 = vmatpush.msra.mxu0 %v601
    %3378 = vmatpush.msra.mxu0 %v597
    %3379 = vmatpush.msra.mxu0 %v593
    %3380 = vmatpush.msra.mxu0 %v589
    %3381 = vmatpush.msra.mxu0 %v585
    %3382 = vmatpush.msra.mxu0 %v581
    %3383 = vmatpush.msra.mxu0 %v577
    %3384 = vmatpush.msra.mxu0 %v573
    %3385 = vmatpush.msra.mxu0 %v569
    %3386 = vmatpush.msra.mxu0 %v565
    %3387 = vmatpush.msra.mxu0 %v561
    %3388 = vmatpush.msra.mxu0 %v557
    %3389 = vmatpush.msra.mxu0 %v553
    %3390 = vmatpush.msra.mxu0 %v549
    %3391 = vmatpush.msra.mxu0 %v545
    %3392 = vmatmul.f32.gmra.mxu0 %v3208
    %v3393 = vpop.f32.mrf.mxu0
    %v3394 = vadd.f32 %v3374, %v3393
    %3395 = vdwg.mxu0
    %3396 = vmatpush.msra.mxu0 %v542
    %3397 = vmatpush.msra.mxu0 %v538
    %3398 = vmatpush.msra.mxu0 %v534
    %3399 = vmatpush.msra.mxu0 %v530
    %3400 = vmatpush.msra.mxu0 %v526
    %3401 = vmatpush.msra.mxu0 %v522
    %3402 = vmatpush.msra.mxu0 %v518
    %3403 = vmatpush.msra.mxu0 %v514
    %3404 = vmatpush.msra.mxu0 %v510
    %3405 = vmatpush.msra.mxu0 %v506
    %3406 = vmatpush.msra.mxu0 %v502
    %3407 = vmatpush.msra.mxu0 %v498
    %3408 = vmatpush.msra.mxu0 %v494
    %3409 = vmatpush.msra.mxu0 %v490
    %3410 = vmatpush.msra.mxu0 %v486
    %3411 = vmatpush.msra.mxu0 %v482
    %3412 = vmatmul.f32.gmra.mxu0 %v3355
    %v3413 = vpop.f32.mrf.mxu0
    %v3414 = vadd.f32 %v759, %v3413
    %3415 = vdwg.mxu0
    %3416 = vmatpush.msra.mxu0 %v606
    %3417 = vmatpush.msra.mxu0 %v602
    %3418 = vmatpush.msra.mxu0 %v598
    %3419 = vmatpush.msra.mxu0 %v594
    %3420 = vmatpush.msra.mxu0 %v590
    %3421 = vmatpush.msra.mxu0 %v586
    %3422 = vmatpush.msra.mxu0 %v582
    %3423 = vmatpush.msra.mxu0 %v578
    %3424 = vmatpush.msra.mxu0 %v574
    %3425 = vmatpush.msra.mxu0 %v570
    %3426 = vmatpush.msra.mxu0 %v566
    %3427 = vmatpush.msra.mxu0 %v562
    %3428 = vmatpush.msra.mxu0 %v558
    %3429 = vmatpush.msra.mxu0 %v554
    %3430 = vmatpush.msra.mxu0 %v550
    %3431 = vmatpush.msra.mxu0 %v546
    %3432 = vmatmul.f32.gmra.mxu0 %v3208
    %v3433 = vpop.f32.mrf.mxu0
    %v3434 = vadd.f32 %v3414, %v3433
    %3435 = vdwg.mxu0
    %3436 = vmatpush.msra.mxu0 %v543
    %3437 = vmatpush.msra.mxu0 %v539
    %3438 = vmatpush.msra.mxu0 %v535
    %3439 = vmatpush.msra.mxu0 %v531
    %3440 = vmatpush.msra.mxu0 %v527
    %3441 = vmatpush.msra.mxu0 %v523
    %3442 = vmatpush.msra.mxu0 %v519
    %3443 = vmatpush.msra.mxu0 %v515
    %3444 = vmatpush.msra.mxu0 %v511
    %3445 = vmatpush.msra.mxu0 %v507
    %3446 = vmatpush.msra.mxu0 %v503
    %3447 = vmatpush.msra.mxu0 %v499
    %3448 = vmatpush.msra.mxu0 %v495
    %3449 = vmatpush.msra.mxu0 %v491
    %3450 = vmatpush.msra.mxu0 %v487
    %3451 = vmatpush.msra.mxu0 %v483
    %3452 = vmatmul.f32.gmra.mxu0 %v3355
    %v3453 = vpop.f32.mrf.mxu0
    %v3454 = vadd.f32 %v760, %v3453
    %3455 = vdwg.mxu0
    %3456 = vmatpush.msra.mxu0 %v607
    %3457 = vmatpush.msra.mxu0 %v603
    %3458 = vmatpush.msra.mxu0 %v599
    %3459 = vmatpush.msra.mxu0 %v595
    %3460 = vmatpush.msra.mxu0 %v591
    %3461 = vmatpush.msra.mxu0 %v587
    %3462 = vmatpush.msra.mxu0 %v583
    %3463 = vmatpush.msra.mxu0 %v579
    %3464 = vmatpush.msra.mxu0 %v575
    %3465 = vmatpush.msra.mxu0 %v571
    %3466 = vmatpush.msra.mxu0 %v567
    %3467 = vmatpush.msra.mxu0 %v563
    %3468 = vmatpush.msra.mxu0 %v559
    %3469 = vmatpush.msra.mxu0 %v555
    %3470 = vmatpush.msra.mxu0 %v551
    %3471 = vmatpush.msra.mxu0 %v547
    %3472 = vmatmul.f32.gmra.mxu0 %v3208
    %v3473 = vpop.f32.mrf.mxu0
    %v3474 = vadd.f32 %v3454, %v3473
    %3475 = vdwg.mxu0
    %3476 = vmatpush.msra.mxu0 %v544
    %3477 = vmatpush.msra.mxu0 %v540
    %3478 = vmatpush.msra.mxu0 %v536
    %3479 = vmatpush.msra.mxu0 %v532
    %3480 = vmatpush.msra.mxu0 %v528
    %3481 = vmatpush.msra.mxu0 %v524
    %3482 = vmatpush.msra.mxu0 %v520
    %3483 = vmatpush.msra.mxu0 %v516
    %3484 = vmatpush.msra.mxu0 %v512
    %3485 = vmatpush.msra.mxu0 %v508
    %3486 = vmatpush.msra.mxu0 %v504
    %3487 = vmatpush.msra.mxu0 %v500
    %3488 = vmatpush.msra.mxu0 %v496
    %3489 = vmatpush.msra.mxu0 %v492
    %3490 = vmatpush.msra.mxu0 %v488
    %3491 = vmatpush.msra.mxu0 %v484
    %3492 = vmatmul.f32.gmra.mxu0 %v3355
    %v3493 = vpop.f32.mrf.mxu0
    %v3494 = vadd.f32 %v761, %v3493
    %3495 = vdwg.mxu0
    %3496 = vmatpush.msra.mxu0 %v608
    %3497 = vmatpush.msra.mxu0 %v604
    %3498 = vmatpush.msra.mxu0 %v600
    %3499 = vmatpush.msra.mxu0 %v596
    %3500 = vmatpush.msra.mxu0 %v592
    %3501 = vmatpush.msra.mxu0 %v588
    %3502 = vmatpush.msra.mxu0 %v584
    %3503 = vmatpush.msra.mxu0 %v580
    %3504 = vmatpush.msra.mxu0 %v576
    %3505 = vmatpush.msra.mxu0 %v572
    %3506 = vmatpush.msra.mxu0 %v568
    %3507 = vmatpush.msra.mxu0 %v564
    %3508 = vmatpush.msra.mxu0 %v560
    %3509 = vmatpush.msra.mxu0 %v556
    %3510 = vmatpush.msra.mxu0 %v552
    %3511 = vmatpush.msra.mxu0 %v548
    %3512 = vmatmul.f32.gmra.mxu0 %v3208
    %v3513 = vpop.f32.mrf.mxu0
    %v3514 = vadd.f32 %v3494, %v3513
    %3515 = vdwg.mxu0
    %v3516 = vxor.u32 %v3394, 2147483648
    %v3517 = vmul.f32 %v3516, 1.442695
    %v3518 = vpow.pop %v3517
    %v3519 = vadd.f32 %v3518, 1.0
    %v3520 = vrcp.pop %v3519
    %v3521 = vmul.f32 %v3519, %v3520
    %v3522 = vsub.f32 1.0, %v3521
    %v3523 = vmul.f32 %v3520, %v3522
    %v3524 = vadd.f32 %v3520, %v3523
    %vm3525 = vweird.f32 %v3519
    %vm3526 = vweird.f32 %v3520
    %vm3527 = vmor %vm3525, %vm3526
    %v3528 = vsel %vm3527, %v3520, %v3524
    %v3529 = vand.u32 2147483647, %v3519
    %vm3530 = vcmp.eq.f32.partialorder %v3529, 8.507059e+37
    %v3531 = vand.u32 %v3519, 2147483648
    %v3532 = vor.u32 1.1754944e-38, %v3531
    %v3533 = vsel %vm3530, %v3532, %v3528
    %v3534 = vmul.f32 1.0, %v3533
    %v3535 = vxor.u32 %v3434, 2147483648
    %v3536 = vmul.f32 %v3535, 1.442695
    %v3537 = vpow.pop %v3536
    %v3538 = vadd.f32 %v3537, 1.0
    %v3539 = vrcp.pop %v3538
    %v3540 = vmul.f32 %v3538, %v3539
    %v3541 = vsub.f32 1.0, %v3540
    %v3542 = vmul.f32 %v3539, %v3541
    %v3543 = vadd.f32 %v3539, %v3542
    %vm3544 = vweird.f32 %v3538
    %vm3545 = vweird.f32 %v3539
    %vm3546 = vmor %vm3544, %vm3545
    %v3547 = vsel %vm3546, %v3539, %v3543
    %v3548 = vand.u32 2147483647, %v3538
    %vm3549 = vcmp.eq.f32.partialorder %v3548, 8.507059e+37
    %v3550 = vand.u32 %v3538, 2147483648
    %v3551 = vor.u32 1.1754944e-38, %v3550
    %v3552 = vsel %vm3549, %v3551, %v3547
    %v3553 = vmul.f32 1.0, %v3552
    %v3554 = vtanh.pop %v3474
    %v3555 = vxor.u32 %v3514, 2147483648
    %v3556 = vmul.f32 %v3555, 1.442695
    %v3557 = vpow.pop %v3556
    %v3558 = vadd.f32 %v3557, 1.0
    %v3559 = vrcp.pop %v3558
    %v3560 = vmul.f32 %v3558, %v3559
    %v3561 = vsub.f32 1.0, %v3560
    %v3562 = vmul.f32 %v3559, %v3561
    %v3563 = vadd.f32 %v3559, %v3562
    %vm3564 = vweird.f32 %v3558
    %vm3565 = vweird.f32 %v3559
    %vm3566 = vmor %vm3564, %vm3565
    %v3567 = vsel %vm3566, %v3559, %v3563
    %v3568 = vand.u32 2147483647, %v3558
    %vm3569 = vcmp.eq.f32.partialorder %v3568, 8.507059e+37
    %v3570 = vand.u32 %v3558, 2147483648
    %v3571 = vor.u32 1.1754944e-38, %v3570
    %v3572 = vsel %vm3569, %v3571, %v3567
    %v3573 = vmul.f32 1.0, %v3572
    %v3574 = vmul.f32 %v3553, %v3206
    %v3575 = vmul.f32 %v3534, %v3554
    %v3576 = vadd.f32 %v3574, %v3575
    %v3577 = vtanh.pop %v3576
    %v3578 = vmul.f32 %v3573, %v3577
    %v3579 = vld [vmem:[#allocation10] sm:$0xff]
    %v3580 = vld [vmem:[#allocation10 + $0x8] sm:$0xff]
    %v3581 = vld [vmem:[#allocation10 + $0x10] sm:$0xff]
    %v3582 = vld [vmem:[#allocation10 + $0x18] sm:$0xff]
    %v3583 = vld [vmem:[#allocation10 + $0x20] sm:$0xff]
    %v3584 = vld [vmem:[#allocation10 + $0x28] sm:$0xff]
    %v3585 = vld [vmem:[#allocation10 + $0x30] sm:$0xff]
    %v3586 = vld [vmem:[#allocation10 + $0x38] sm:$0xff]
    %v3587 = vld [vmem:[#allocation10 + $0x40] sm:$0xff]
    %v3588 = vld [vmem:[#allocation10 + $0x48] sm:$0xff]
    %v3589 = vld [vmem:[#allocation10 + $0x50] sm:$0xff]
    %v3590 = vld [vmem:[#allocation10 + $0x58] sm:$0xff]
    %v3591 = vld [vmem:[#allocation10 + $0x60] sm:$0xff]
    %v3592 = vld [vmem:[#allocation10 + $0x68] sm:$0xff]
    %v3593 = vld [vmem:[#allocation10 + $0x70] sm:$0xff]
    %v3594 = vld [vmem:[#allocation10 + $0x78] sm:$0xff]
    %v3595 = vld [vmem:[%s12] sm:$0x1]
    %v3597 = vperm.slane %v3595, 0
    %3599 = vmatpush.msra.mxu0 %v3594
    %3600 = vmatpush.msra.mxu0 %v3593
    %3601 = vmatpush.msra.mxu0 %v3592
    %3602 = vmatpush.msra.mxu0 %v3591
    %3603 = vmatpush.msra.mxu0 %v3590
    %3604 = vmatpush.msra.mxu0 %v3589
    %3605 = vmatpush.msra.mxu0 %v3588
    %3606 = vmatpush.msra.mxu0 %v3587
    %3607 = vmatpush.msra.mxu0 %v3586
    %3608 = vmatpush.msra.mxu0 %v3585
    %3609 = vmatpush.msra.mxu0 %v3584
    %3610 = vmatpush.msra.mxu0 %v3583
    %3611 = vmatpush.msra.mxu0 %v3582
    %3612 = vmatpush.msra.mxu0 %v3581
    %3613 = vmatpush.msra.mxu0 %v3580
    %3614 = vmatpush.msra.mxu0 %v3579
    %3615 = vmatmul.f32.gmra.mxu0 %v988
    %v3616 = vpop.f32.mrf.mxu0
    %v3617 = vadd.f32 %v3597, %v3616
    %3618 = vmatmul.f32.gmra.mxu0 %v1358
    %v3619 = vpop.f32.mrf.mxu0
    %v3620 = vadd.f32 %v3597, %v3619
    %3621 = vmatmul.f32.gmra.mxu0 %v1728
    %v3622 = vpop.f32.mrf.mxu0
    %v3623 = vadd.f32 %v3597, %v3622
    %3624 = vmatmul.f32.gmra.mxu0 %v2098
    %v3625 = vpop.f32.mrf.mxu0
    %v3626 = vadd.f32 %v3597, %v3625
    %3627 = vmatmul.f32.gmra.mxu0 %v2468
    %v3628 = vpop.f32.mrf.mxu0
    %v3629 = vadd.f32 %v3597, %v3628
    %3630 = vmatmul.f32.gmra.mxu0 %v2838
    %v3631 = vpop.f32.mrf.mxu0
    %v3632 = vadd.f32 %v3597, %v3631
    %3633 = vmatmul.f32.gmra.mxu0 %v3208
    %v3634 = vpop.f32.mrf.mxu0
    %v3635 = vadd.f32 %v3597, %v3634
    %3636 = vmatmul.f32.gmra.mxu0 %v3578
    %v3637 = vpop.f32.mrf.mxu0
    %v3638 = vadd.f32 %v3597, %v3637
    %3639 = vdwg.mxu0
    %3640 = vst [vmem:[#allocation11] sm:$0xff] %v3617
    %3641 = vst [vmem:[#allocation11 + $0x8] sm:$0xff] %v3620
    %3642 = vst [vmem:[#allocation11 + $0x10] sm:$0xff] %v3623
    %3643 = vst [vmem:[#allocation11 + $0x18] sm:$0xff] %v3626
    %3644 = vst [vmem:[#allocation11 + $0x20] sm:$0xff] %v3629
    %3645 = vst [vmem:[#allocation11 + $0x28] sm:$0xff] %v3632
    %3646 = vst [vmem:[#allocation11 + $0x30] sm:$0xff] %v3635
    %3647 = vst [vmem:[#allocation11 + $0x38] sm:$0xff] %v3638
    // Predicated region
    $region74: #{tpu_custom_call.1} parent=1 // pred_check
      _
    $region75: #{tpu_custom_call.1} parent=1 // pred_check_branch
      %3649 = sbr.rel (0) target = $region77
    $region76: #{tpu_custom_call.1} parent=1 // pred_region
      %3651 = vsyncadd [#allocation4], 0
      %s3652 = sshll.u32 [#allocation11], 4
      %s3653 = int_to_ptr.vmem [resolvable:$true] %s3652
      %s3654 = sshll.u32 %s13, 4
      %s3655 = int_to_ptr.hbm [resolvable:$true] %s3654
      %3660 = dma.vmem_to_hbm [thread:$0]  %s3653, 1024, %s3655, [#allocation4], 128, 128, 8
    $region77: #{tpu_custom_call.1} parent=1 // pred_fallthru
      _
    // Predicated region
    $region78: #{tpu_custom_call.1} parent=1 // pred_check
      _
    $region79: #{tpu_custom_call.1} parent=1 // pred_check_branch
      %3662 = sbr.rel (0) target = $region81
    $region80: #{tpu_custom_call.1} parent=1 // pred_region
      %3664 = dma.done [#allocation4], 1024
    $region81: #{tpu_custom_call.1} parent=1 // pred_fallthru
      _
    %3665 = vsyncpa [#allocation3], 1
    %3666 = vsyncpa [#allocation6], 1
    %3667 = vsyncpa [#allocation9], 1
    %3668 = vsyncpa [#allocation4], 1

</llo_original>
